<compile_context>
chip_gen: v7x
topology: tpu7x:2x2x1
jax: 0.10.0
libtpu: 0.0.40
codegen_flags: <defaults>
</compile_context>

<pallas_src>
import functools

import jax
import jax.numpy as jnp
import numpy as np
from jax.experimental import pallas as pl
from jax.experimental.pallas import tpu as pltpu

KSIZE = 7
PAD = (KSIZE - 1) // 2


def cbam_kernel(x_ref, w1_ref, b1_ref, w2_ref, b2_ref, cw_ref, cb_ref,
                o_ref, pad_ref, *, H, W):
    # x_ref block: (Bt, C, H*W), lane-dense along H*W.
    Bt, C, HW = x_ref.shape
    Hp, Wp = H + 2 * PAD, W + 2 * PAD
    xb = x_ref[...]                                     # (Bt, C, HW) f32

    # ---------------- Channel attention ----------------
    avg_c = jnp.mean(xb, axis=2)                        # (Bt, C)
    max_c = jnp.max(xb, axis=2)                         # (Bt, C)
    pooled = jnp.concatenate([avg_c, max_c], axis=0)    # (2*Bt, C)

    # Fused MLP: one matmul pair for both the avg- and max-pooled rows.
    h = jnp.dot(pooled, w1_ref[...],
                preferred_element_type=jnp.float32) + b1_ref[...]
    h = jnp.maximum(h, 0.0)
    mlp_out = jnp.dot(h, w2_ref[...],
                      preferred_element_type=jnp.float32) + b2_ref[...]
    ca = jax.nn.sigmoid(mlp_out[:Bt] + mlp_out[Bt:])    # (Bt, C)

    xc = xb * ca[:, :, None]                            # (Bt, C, HW) channel-attended

    # ---------------- Spatial attention ----------------
    mean_hw = jnp.mean(xc, axis=1)                      # (Bt, HW)
    max_hw = jnp.max(xc, axis=1)                        # (Bt, HW)

    # Zero only the PAD-wide halo of the padded scratch; the interior is fully
    # overwritten below.  (Safe under "parallel" batch semantics, unlike a
    # program_id(0)==0 one-time memset.)
    pad_ref[:, :, :PAD, :] = jnp.zeros((2, Bt, PAD, Wp), jnp.float32)
    pad_ref[:, :, PAD + H:, :] = jnp.zeros((2, Bt, PAD, Wp), jnp.float32)
    pad_ref[:, :, :, :PAD] = jnp.zeros((2, Bt, Hp, PAD), jnp.float32)
    pad_ref[:, :, :, PAD + W:] = jnp.zeros((2, Bt, Hp, PAD), jnp.float32)

    # Materialize the true 2D (H, W) planes only for the conv neighborhood.
    pad_ref[0, :, PAD:PAD + H, PAD:PAD + W] = mean_hw.reshape(Bt, H, W)
    pad_ref[1, :, PAD:PAD + H, PAD:PAD + W] = max_hw.reshape(Bt, H, W)

    # 7x7 cross-correlation (matches nn.Conv2d), fully unrolled MAC loop with
    # scalar weights/bias read from SMEM; both planes fused per tap.
    acc = jnp.zeros((Bt, H, W), jnp.float32) + cb_ref[0, 0]
    for ki in range(KSIZE):
        for kj in range(KSIZE):
            idx = ki * KSIZE + kj
            acc = acc + (cw_ref[0, idx] * pad_ref[0, :, ki:ki + H, kj:kj + W]
                         + cw_ref[1, idx] * pad_ref[1, :, ki:ki + H, kj:kj + W])

    sa = jax.nn.sigmoid(acc).reshape(Bt, HW)            # back to lane-dense
    o_ref[...] = (xc * sa[:, None, :]).astype(o_ref.dtype)


def _pick_batch_block(B, per_batch_bytes, budget_bytes=1 << 20):
    """Largest divisor of B whose input tile stays under ~1 MiB."""
    bt = 1
    for cand in range(1, B + 1):
        if B % cand == 0 and cand * per_batch_bytes <= budget_bytes:
            bt = cand
    return bt


@jax.jit
def cbam_pallas(x, w1, b1, w2, b2, cw, cb):
    B, C, H, W = x.shape
    HW = H * W
    Cr = w1.shape[1]

    # Lane-dense view: last dim H*W (multiple of 128 for typical sizes).
    x_flat = x.reshape(B, C, HW)

    Bt = _pick_batch_block(B, C * HW * 4)

    grid_spec = pltpu.PrefetchScalarGridSpec(
        num_scalar_prefetch=0,
        grid=(B // Bt,),
        in_specs=[
            pl.BlockSpec((Bt, C, HW), lambda b: (b, 0, 0)),
            pl.BlockSpec((C, Cr), lambda b: (0, 0)),
            pl.BlockSpec((1, Cr), lambda b: (0, 0)),
            pl.BlockSpec((Cr, C), lambda b: (0, 0)),
            pl.BlockSpec((1, C), lambda b: (0, 0)),
            pl.BlockSpec(memory_space=pltpu.MemorySpace.SMEM),  # conv weight (2, 49)
            pl.BlockSpec(memory_space=pltpu.MemorySpace.SMEM),  # conv bias (1, 1)
        ],
        out_specs=pl.BlockSpec((Bt, C, HW), lambda b: (b, 0, 0)),
        scratch_shapes=[
            pltpu.VMEM((2, Bt, H + 2 * PAD, W + 2 * PAD), jnp.float32)],
    )

    out_flat = pl.pallas_call(
        functools.partial(cbam_kernel, H=H, W=W),
        out_shape=jax.ShapeDtypeStruct((B, C, HW), x.dtype),
        grid_spec=grid_spec,
        compiler_params=pltpu.CompilerParams(
            dimension_semantics=("parallel",),       # batch is independent
            vmem_limit_bytes=64 * 1024 * 1024),      # headroom for larger shapes
    )(x_flat, w1, b1, w2, b2, cw, cb)

    return out_flat.reshape(B, C, H, W)


def cbam_reference(x, w1, b1, w2, b2, cw, cb):
    """Pure-JAX reference mirroring the PyTorch forward."""
    B, C, H, W = x.shape
    avg = x.mean(axis=(2, 3))
    mx = x.max(axis=(2, 3))

    def mlp(v):
        return jnp.maximum(v @ w1 + b1, 0.0) @ w2 + b2

    ca = jax.nn.sigmoid(mlp(avg) + mlp(mx))
    xc = x * ca[:, :, None, None]

    mean_hw = xc.mean(axis=1, keepdims=True)
    max_hw = xc.max(axis=1, keepdims=True)
    concat = jnp.concatenate([mean_hw, max_hw], axis=1)        # (B, 2, H, W)
    w4 = cw.reshape(1, 2, KSIZE, KSIZE)
    conv = jax.lax.conv_general_dilated(
        concat, w4, window_strides=(1, 1),
        padding=((PAD, PAD), (PAD, PAD)),
        dimension_numbers=("NCHW", "OIHW", "NCHW")) + cb[0, 0]
    sa = jax.nn.sigmoid(conv)
    return xc * sa


if __name__ == "__main__":
    # Small, module-consistent shapes: in_channels must be >= reduction_ratio (16).
    B, C, H, W = 2, 32, 16, 16
    RR = 16
    Cr = C // RR  # hidden = 2

    key = jax.random.PRNGKey(0)
    kx, k1, k2, k3, k4, k5, k6 = jax.random.split(key, 7)

    x = jax.random.normal(kx, (B, C, H, W), jnp.float32)

    # Deterministic synthetic parameters (stored pre-transposed for y = v @ W + b).
    w1 = 0.2 * jax.random.normal(k1, (C, Cr), jnp.float32)     # Linear(C -> Cr).weight.T
    b1 = 0.1 * jax.random.normal(k2, (1, Cr), jnp.float32)
    w2 = 0.2 * jax.random.normal(k3, (Cr, C), jnp.float32)     # Linear(Cr -> C).weight.T
    b2 = 0.1 * jax.random.normal(k4, (1, C), jnp.float32)
    cw = 0.2 * jax.random.normal(k5, (2, KSIZE * KSIZE), jnp.float32)  # Conv2d(2,1,7) weight
    cb = 0.1 * jax.random.normal(k6, (1, 1), jnp.float32)              # Conv2d bias

    out = cbam_pallas(x, w1, b1, w2, b2, cw, cb)
    out = jax.block_until_ready(out)

    ref = jax.block_until_ready(cbam_reference(x, w1, b1, w2, b2, cw, cb))
    np.testing.assert_allclose(np.asarray(out), np.asarray(ref), atol=1e-4, rtol=1e-4)

    print("KERNEL_OK")
</pallas_src>

<mosaic_0001>
module attributes {stable_mosaic.version = 11 : i64} {
  func.func @cbam_kernel(%arg0: i32, %arg1: memref<2x32x256xf32, #tpu.memory_space<vmem>>, %arg2: memref<32x2xf32, #tpu.memory_space<vmem>>, %arg3: memref<1x2xf32, #tpu.memory_space<vmem>>, %arg4: memref<2x32xf32, #tpu.memory_space<vmem>>, %arg5: memref<1x32xf32, #tpu.memory_space<vmem>>, %arg6: memref<2x49xf32, #tpu.memory_space<smem>>, %arg7: memref<1x1xf32, #tpu.memory_space<smem>>, %arg8: memref<2x32x256xf32, #tpu.memory_space<vmem>>, %arg9: memref<2x2x22x22xf32, #tpu.memory_space<vmem>>) attributes {dimension_semantics = [#tpu.dimension_semantics<parallel>], iteration_bounds = array<i64: 1>, scalar_prefetch = 0 : i64, scratch_operands = 1 : i64, tpu.core_type = #tpu.core_type<tc>, window_params = [{transform_indices = @transform_0, window_bounds = array<i64: 2, 32, 256>}, {pipeline_mode = #tpu.pipeline_mode<synchronous>, transform_indices = @transform_1, window_bounds = array<i64: 32, 2>}, {pipeline_mode = #tpu.pipeline_mode<synchronous>, transform_indices = @transform_2, window_bounds = array<i64: 1, 2>}, {pipeline_mode = #tpu.pipeline_mode<synchronous>, transform_indices = @transform_3, window_bounds = array<i64: 2, 32>}, {pipeline_mode = #tpu.pipeline_mode<synchronous>, transform_indices = @transform_4, window_bounds = array<i64: 1, 32>}, {transform_indices = @transform_5, window_bounds = array<i64: 2, 49>}, {transform_indices = @transform_6, window_bounds = array<i64: 1, 1>}, {transform_indices = @transform_7, window_bounds = array<i64: 2, 32, 256>}]} {
    %c0 = arith.constant 0 : index
    %c0_0 = arith.constant 0 : index
    %c0_1 = arith.constant 0 : index
    %0 = vector.load %arg1[%c0, %c0_0, %c0_1] : memref<2x32x256xf32, #tpu.memory_space<vmem>>, vector<2x32x256xf32>
    %cst = arith.constant dense<0.000000e+00> : vector<2x32xf32>
    %1 = vector.multi_reduction <add>, %0, %cst [2] : vector<2x32x256xf32> to vector<2x32xf32>
    %cst_2 = arith.constant 2.560000e+02 : f32
    %2 = vector.broadcast %cst_2 : f32 to vector<2x32xf32>
    %3 = arith.divf %1, %2 : vector<2x32xf32>
    %cst_3 = arith.constant dense<0xFF800000> : vector<2x32xf32>
    %4 = vector.multi_reduction <maximumf>, %0, %cst_3 [2] : vector<2x32x256xf32> to vector<2x32xf32>
    %5 = tpu.concatenate %3, %4 in 0 : vector<2x32xf32>, vector<2x32xf32> -> vector<4x32xf32>
    %c0_4 = arith.constant 0 : index
    %c0_5 = arith.constant 0 : index
    %6 = vector.load %arg2[%c0_4, %c0_5] : memref<32x2xf32, #tpu.memory_space<vmem>>, vector<32x2xf32>
    %cst_6 = arith.constant dense<0.000000e+00> : vector<4x2xf32>
    %7 = tpu.matmul %5, %6, %cst_6 {dimension_numbers = #tpu.dot_dimension_numbers<[1], [0], [0], [1], [0, 0, 1, 1], [], []>} : vector<4x32xf32>, vector<32x2xf32>, vector<4x2xf32> -> vector<4x2xf32>
    %c0_7 = arith.constant 0 : index
    %c0_8 = arith.constant 0 : index
    %8 = vector.load %arg3[%c0_7, %c0_8] : memref<1x2xf32, #tpu.memory_space<vmem>>, vector<1x2xf32>
    %9 = vector.broadcast %8 : vector<1x2xf32> to vector<4x2xf32>
    %10 = arith.addf %7, %9 : vector<4x2xf32>
    %cst_9 = arith.constant 0.000000e+00 : f32
    %11 = vector.broadcast %cst_9 : f32 to vector<4x2xf32>
    %12 = arith.maximumf %10, %11 : vector<4x2xf32>
    %c0_10 = arith.constant 0 : index
    %c0_11 = arith.constant 0 : index
    %13 = vector.load %arg4[%c0_10, %c0_11] : memref<2x32xf32, #tpu.memory_space<vmem>>, vector<2x32xf32>
    %cst_12 = arith.constant dense<0.000000e+00> : vector<4x32xf32>
    %14 = tpu.matmul %12, %13, %cst_12 {dimension_numbers = #tpu.dot_dimension_numbers<[1], [0], [0], [1], [0, 0, 1, 1], [], []>} : vector<4x2xf32>, vector<2x32xf32>, vector<4x32xf32> -> vector<4x32xf32>
    %c0_13 = arith.constant 0 : index
    %c0_14 = arith.constant 0 : index
    %15 = vector.load %arg5[%c0_13, %c0_14] : memref<1x32xf32, #tpu.memory_space<vmem>>, vector<1x32xf32>
    %16 = vector.broadcast %15 : vector<1x32xf32> to vector<4x32xf32>
    %17 = arith.addf %14, %16 : vector<4x32xf32>
    %18 = vector.extract_strided_slice %17 {offsets = [0, 0], sizes = [2, 32], strides = [1, 1]} : vector<4x32xf32> to vector<2x32xf32>
    %19 = vector.extract_strided_slice %17 {offsets = [2, 0], sizes = [2, 32], strides = [1, 1]} : vector<4x32xf32> to vector<2x32xf32>
    %20 = arith.addf %18, %19 : vector<2x32xf32>
    %21 = arith.negf %20 : vector<2x32xf32>
    %22 = math.exp %21 : vector<2x32xf32>
    %cst_15 = arith.constant 1.000000e+00 : f32
    %23 = vector.broadcast %cst_15 : f32 to vector<2x32xf32>
    %24 = arith.addf %23, %22 : vector<2x32xf32>
    %25 = arith.divf %23, %24 : vector<2x32xf32>
    %26 = vector.shape_cast %25 : vector<2x32xf32> to vector<2x32x1xf32>
    %27 = vector.broadcast %26 : vector<2x32x1xf32> to vector<2x32x256xf32>
    %28 = arith.mulf %0, %27 : vector<2x32x256xf32>
    %cst_16 = arith.constant dense<0.000000e+00> : vector<2x256xf32>
    %29 = vector.multi_reduction <add>, %28, %cst_16 [1] : vector<2x32x256xf32> to vector<2x256xf32>
    %cst_17 = arith.constant 3.200000e+01 : f32
    %30 = vector.broadcast %cst_17 : f32 to vector<2x256xf32>
    %31 = arith.divf %29, %30 : vector<2x256xf32>
    %cst_18 = arith.constant dense<0xFF800000> : vector<2x256xf32>
    %32 = vector.multi_reduction <maximumf>, %28, %cst_18 [1] : vector<2x32x256xf32> to vector<2x256xf32>
    %cst_19 = arith.constant 0.000000e+00 : f32
    %33 = vector.broadcast %cst_19 : f32 to vector<2x2x3x22xf32>
    %c0_20 = arith.constant 0 : index
    %c0_21 = arith.constant 0 : index
    %c0_22 = arith.constant 0 : index
    %c0_23 = arith.constant 0 : index
    %34 = vector.load %arg9[%c0_20, %c0_21, %c0_22, %c0_23] : memref<2x2x22x22xf32, #tpu.memory_space<vmem>>, vector<2x2x3x22xf32>
    tpu.vector_store %arg9[%c0_20, %c0_21, %c0_22, %c0_23], %33 {strides = array<i32>} : memref<2x2x22x22xf32, #tpu.memory_space<vmem>>, vector<2x2x3x22xf32>,
    %cst_24 = arith.constant 0.000000e+00 : f32
    %35 = vector.broadcast %cst_24 : f32 to vector<2x2x3x22xf32>
    %c0_25 = arith.constant 0 : index
    %c0_26 = arith.constant 0 : index
    %c19 = arith.constant 19 : index
    %c0_27 = arith.constant 0 : index
    %36 = vector.load %arg9[%c0_25, %c0_26, %c19, %c0_27] : memref<2x2x22x22xf32, #tpu.memory_space<vmem>>, vector<2x2x3x22xf32>
    tpu.vector_store %arg9[%c0_25, %c0_26, %c19, %c0_27], %35 {strides = array<i32>} : memref<2x2x22x22xf32, #tpu.memory_space<vmem>>, vector<2x2x3x22xf32>,
    %cst_28 = arith.constant 0.000000e+00 : f32
    %37 = vector.broadcast %cst_28 : f32 to vector<2x2x22x3xf32>
    %c0_29 = arith.constant 0 : index
    %c0_30 = arith.constant 0 : index
    %c0_31 = arith.constant 0 : index
    %c0_32 = arith.constant 0 : index
    %38 = vector.load %arg9[%c0_29, %c0_30, %c0_31, %c0_32] : memref<2x2x22x22xf32, #tpu.memory_space<vmem>>, vector<2x2x22x3xf32>
    tpu.vector_store %arg9[%c0_29, %c0_30, %c0_31, %c0_32], %37 {strides = array<i32>} : memref<2x2x22x22xf32, #tpu.memory_space<vmem>>, vector<2x2x22x3xf32>,
    %cst_33 = arith.constant 0.000000e+00 : f32
    %39 = vector.broadcast %cst_33 : f32 to vector<2x2x22x3xf32>
    %c0_34 = arith.constant 0 : index
    %c0_35 = arith.constant 0 : index
    %c0_36 = arith.constant 0 : index
    %c19_37 = arith.constant 19 : index
    %40 = vector.load %arg9[%c0_34, %c0_35, %c0_36, %c19_37] : memref<2x2x22x22xf32, #tpu.memory_space<vmem>>, vector<2x2x22x3xf32>
    tpu.vector_store %arg9[%c0_34, %c0_35, %c0_36, %c19_37], %39 {strides = array<i32>} : memref<2x2x22x22xf32, #tpu.memory_space<vmem>>, vector<2x2x22x3xf32>,
    %41 = vector.shape_cast %31 : vector<2x256xf32> to vector<2x16x16xf32>
    %c0_38 = arith.constant 0 : index
    %c0_39 = arith.constant 0 : index
    %c3 = arith.constant 3 : index
    %c3_40 = arith.constant 3 : index
    %42 = vector.load %arg9[%c0_38, %c0_39, %c3, %c3_40] : memref<2x2x22x22xf32, #tpu.memory_space<vmem>>, vector<1x2x16x16xf32>
    %43 = vector.shape_cast %42 : vector<1x2x16x16xf32> to vector<2x16x16xf32>
    %44 = vector.shape_cast %41 : vector<2x16x16xf32> to vector<1x2x16x16xf32>
    tpu.vector_store %arg9[%c0_38, %c0_39, %c3, %c3_40], %44 {strides = array<i32>} : memref<2x2x22x22xf32, #tpu.memory_space<vmem>>, vector<1x2x16x16xf32>,
    %45 = vector.shape_cast %32 : vector<2x256xf32> to vector<2x16x16xf32>
    %c1 = arith.constant 1 : index
    %c0_41 = arith.constant 0 : index
    %c3_42 = arith.constant 3 : index
    %c3_43 = arith.constant 3 : index
    %46 = vector.load %arg9[%c1, %c0_41, %c3_42, %c3_43] : memref<2x2x22x22xf32, #tpu.memory_space<vmem>>, vector<1x2x16x16xf32>
    %47 = vector.shape_cast %46 : vector<1x2x16x16xf32> to vector<2x16x16xf32>
    %48 = vector.shape_cast %45 : vector<2x16x16xf32> to vector<1x2x16x16xf32>
    tpu.vector_store %arg9[%c1, %c0_41, %c3_42, %c3_43], %48 {strides = array<i32>} : memref<2x2x22x22xf32, #tpu.memory_space<vmem>>, vector<1x2x16x16xf32>,
    %cst_44 = arith.constant 0.000000e+00 : f32
    %49 = vector.broadcast %cst_44 : f32 to vector<2x16x16xf32>
    %c0_45 = arith.constant 0 : index
    %c0_46 = arith.constant 0 : index
    %50 = memref.load %arg7[%c0_45, %c0_46] : memref<1x1xf32, #tpu.memory_space<smem>>
    %51 = vector.broadcast %50 : f32 to vector<2x16x16xf32>
    %52 = arith.addf %49, %51 : vector<2x16x16xf32>
    %c0_47 = arith.constant 0 : index
    %c0_48 = arith.constant 0 : index
    %53 = memref.load %arg6[%c0_47, %c0_48] : memref<2x49xf32, #tpu.memory_space<smem>>
    %c0_49 = arith.constant 0 : index
    %c0_50 = arith.constant 0 : index
    %c0_51 = arith.constant 0 : index
    %c0_52 = arith.constant 0 : index
    %54 = vector.load %arg9[%c0_49, %c0_50, %c0_51, %c0_52] : memref<2x2x22x22xf32, #tpu.memory_space<vmem>>, vector<1x2x16x16xf32>
    %55 = vector.shape_cast %54 : vector<1x2x16x16xf32> to vector<2x16x16xf32>
    %56 = vector.broadcast %53 : f32 to vector<2x16x16xf32>
    %57 = arith.mulf %56, %55 : vector<2x16x16xf32>
    %c1_53 = arith.constant 1 : index
    %c0_54 = arith.constant 0 : index
    %58 = memref.load %arg6[%c1_53, %c0_54] : memref<2x49xf32, #tpu.memory_space<smem>>
    %c1_55 = arith.constant 1 : index
    %c0_56 = arith.constant 0 : index
    %c0_57 = arith.constant 0 : index
    %c0_58 = arith.constant 0 : index
    %59 = vector.load %arg9[%c1_55, %c0_56, %c0_57, %c0_58] : memref<2x2x22x22xf32, #tpu.memory_space<vmem>>, vector<1x2x16x16xf32>
    %60 = vector.shape_cast %59 : vector<1x2x16x16xf32> to vector<2x16x16xf32>
    %61 = vector.broadcast %58 : f32 to vector<2x16x16xf32>
    %62 = arith.mulf %61, %60 : vector<2x16x16xf32>
    %63 = arith.addf %57, %62 : vector<2x16x16xf32>
    %64 = arith.addf %52, %63 : vector<2x16x16xf32>
    %c0_59 = arith.constant 0 : index
    %c1_60 = arith.constant 1 : index
    %65 = memref.load %arg6[%c0_59, %c1_60] : memref<2x49xf32, #tpu.memory_space<smem>>
    %c0_61 = arith.constant 0 : index
    %c0_62 = arith.constant 0 : index
    %c0_63 = arith.constant 0 : index
    %c1_64 = arith.constant 1 : index
    %66 = vector.load %arg9[%c0_61, %c0_62, %c0_63, %c1_64] : memref<2x2x22x22xf32, #tpu.memory_space<vmem>>, vector<1x2x16x16xf32>
    %67 = vector.shape_cast %66 : vector<1x2x16x16xf32> to vector<2x16x16xf32>
    %68 = vector.broadcast %65 : f32 to vector<2x16x16xf32>
    %69 = arith.mulf %68, %67 : vector<2x16x16xf32>
    %c1_65 = arith.constant 1 : index
    %c1_66 = arith.constant 1 : index
    %70 = memref.load %arg6[%c1_65, %c1_66] : memref<2x49xf32, #tpu.memory_space<smem>>
    %c1_67 = arith.constant 1 : index
    %c0_68 = arith.constant 0 : index
    %c0_69 = arith.constant 0 : index
    %c1_70 = arith.constant 1 : index
    %71 = vector.load %arg9[%c1_67, %c0_68, %c0_69, %c1_70] : memref<2x2x22x22xf32, #tpu.memory_space<vmem>>, vector<1x2x16x16xf32>
    %72 = vector.shape_cast %71 : vector<1x2x16x16xf32> to vector<2x16x16xf32>
    %73 = vector.broadcast %70 : f32 to vector<2x16x16xf32>
    %74 = arith.mulf %73, %72 : vector<2x16x16xf32>
    %75 = arith.addf %69, %74 : vector<2x16x16xf32>
    %76 = arith.addf %64, %75 : vector<2x16x16xf32>
    %c0_71 = arith.constant 0 : index
    %c2 = arith.constant 2 : index
    %77 = memref.load %arg6[%c0_71, %c2] : memref<2x49xf32, #tpu.memory_space<smem>>
    %c0_72 = arith.constant 0 : index
    %c0_73 = arith.constant 0 : index
    %c0_74 = arith.constant 0 : index
    %c2_75 = arith.constant 2 : index
    %78 = vector.load %arg9[%c0_72, %c0_73, %c0_74, %c2_75] : memref<2x2x22x22xf32, #tpu.memory_space<vmem>>, vector<1x2x16x16xf32>
    %79 = vector.shape_cast %78 : vector<1x2x16x16xf32> to vector<2x16x16xf32>
    %80 = vector.broadcast %77 : f32 to vector<2x16x16xf32>
    %81 = arith.mulf %80, %79 : vector<2x16x16xf32>
    %c1_76 = arith.constant 1 : index
    %c2_77 = arith.constant 2 : index
    %82 = memref.load %arg6[%c1_76, %c2_77] : memref<2x49xf32, #tpu.memory_space<smem>>
    %c1_78 = arith.constant 1 : index
    %c0_79 = arith.constant 0 : index
    %c0_80 = arith.constant 0 : index
    %c2_81 = arith.constant 2 : index
    %83 = vector.load %arg9[%c1_78, %c0_79, %c0_80, %c2_81] : memref<2x2x22x22xf32, #tpu.memory_space<vmem>>, vector<1x2x16x16xf32>
    %84 = vector.shape_cast %83 : vector<1x2x16x16xf32> to vector<2x16x16xf32>
    %85 = vector.broadcast %82 : f32 to vector<2x16x16xf32>
    %86 = arith.mulf %85, %84 : vector<2x16x16xf32>
    %87 = arith.addf %81, %86 : vector<2x16x16xf32>
    %88 = arith.addf %76, %87 : vector<2x16x16xf32>
    %c0_82 = arith.constant 0 : index
    %c3_83 = arith.constant 3 : index
    %89 = memref.load %arg6[%c0_82, %c3_83] : memref<2x49xf32, #tpu.memory_space<smem>>
    %c0_84 = arith.constant 0 : index
    %c0_85 = arith.constant 0 : index
    %c0_86 = arith.constant 0 : index
    %c3_87 = arith.constant 3 : index
    %90 = vector.load %arg9[%c0_84, %c0_85, %c0_86, %c3_87] : memref<2x2x22x22xf32, #tpu.memory_space<vmem>>, vector<1x2x16x16xf32>
    %91 = vector.shape_cast %90 : vector<1x2x16x16xf32> to vector<2x16x16xf32>
    %92 = vector.broadcast %89 : f32 to vector<2x16x16xf32>
    %93 = arith.mulf %92, %91 : vector<2x16x16xf32>
    %c1_88 = arith.constant 1 : index
    %c3_89 = arith.constant 3 : index
    %94 = memref.load %arg6[%c1_88, %c3_89] : memref<2x49xf32, #tpu.memory_space<smem>>
    %c1_90 = arith.constant 1 : index
    %c0_91 = arith.constant 0 : index
    %c0_92 = arith.constant 0 : index
    %c3_93 = arith.constant 3 : index
    %95 = vector.load %arg9[%c1_90, %c0_91, %c0_92, %c3_93] : memref<2x2x22x22xf32, #tpu.memory_space<vmem>>, vector<1x2x16x16xf32>
    %96 = vector.shape_cast %95 : vector<1x2x16x16xf32> to vector<2x16x16xf32>
    %97 = vector.broadcast %94 : f32 to vector<2x16x16xf32>
    %98 = arith.mulf %97, %96 : vector<2x16x16xf32>
    %99 = arith.addf %93, %98 : vector<2x16x16xf32>
    %100 = arith.addf %88, %99 : vector<2x16x16xf32>
    %c0_94 = arith.constant 0 : index
    %c4 = arith.constant 4 : index
    %101 = memref.load %arg6[%c0_94, %c4] : memref<2x49xf32, #tpu.memory_space<smem>>
    %c0_95 = arith.constant 0 : index
    %c0_96 = arith.constant 0 : index
    %c0_97 = arith.constant 0 : index
    %c4_98 = arith.constant 4 : index
    %102 = vector.load %arg9[%c0_95, %c0_96, %c0_97, %c4_98] : memref<2x2x22x22xf32, #tpu.memory_space<vmem>>, vector<1x2x16x16xf32>
    %103 = vector.shape_cast %102 : vector<1x2x16x16xf32> to vector<2x16x16xf32>
    %104 = vector.broadcast %101 : f32 to vector<2x16x16xf32>
    %105 = arith.mulf %104, %103 : vector<2x16x16xf32>
    %c1_99 = arith.constant 1 : index
    %c4_100 = arith.constant 4 : index
    %106 = memref.load %arg6[%c1_99, %c4_100] : memref<2x49xf32, #tpu.memory_space<smem>>
    %c1_101 = arith.constant 1 : index
    %c0_102 = arith.constant 0 : index
    %c0_103 = arith.constant 0 : index
    %c4_104 = arith.constant 4 : index
    %107 = vector.load %arg9[%c1_101, %c0_102, %c0_103, %c4_104] : memref<2x2x22x22xf32, #tpu.memory_space<vmem>>, vector<1x2x16x16xf32>
    %108 = vector.shape_cast %107 : vector<1x2x16x16xf32> to vector<2x16x16xf32>
    %109 = vector.broadcast %106 : f32 to vector<2x16x16xf32>
    %110 = arith.mulf %109, %108 : vector<2x16x16xf32>
    %111 = arith.addf %105, %110 : vector<2x16x16xf32>
    %112 = arith.addf %100, %111 : vector<2x16x16xf32>
    %c0_105 = arith.constant 0 : index
    %c5 = arith.constant 5 : index
    %113 = memref.load %arg6[%c0_105, %c5] : memref<2x49xf32, #tpu.memory_space<smem>>
    %c0_106 = arith.constant 0 : index
    %c0_107 = arith.constant 0 : index
    %c0_108 = arith.constant 0 : index
    %c5_109 = arith.constant 5 : index
    %114 = vector.load %arg9[%c0_106, %c0_107, %c0_108, %c5_109] : memref<2x2x22x22xf32, #tpu.memory_space<vmem>>, vector<1x2x16x16xf32>
    %115 = vector.shape_cast %114 : vector<1x2x16x16xf32> to vector<2x16x16xf32>
    %116 = vector.broadcast %113 : f32 to vector<2x16x16xf32>
    %117 = arith.mulf %116, %115 : vector<2x16x16xf32>
    %c1_110 = arith.constant 1 : index
    %c5_111 = arith.constant 5 : index
    %118 = memref.load %arg6[%c1_110, %c5_111] : memref<2x49xf32, #tpu.memory_space<smem>>
    %c1_112 = arith.constant 1 : index
    %c0_113 = arith.constant 0 : index
    %c0_114 = arith.constant 0 : index
    %c5_115 = arith.constant 5 : index
    %119 = vector.load %arg9[%c1_112, %c0_113, %c0_114, %c5_115] : memref<2x2x22x22xf32, #tpu.memory_space<vmem>>, vector<1x2x16x16xf32>
    %120 = vector.shape_cast %119 : vector<1x2x16x16xf32> to vector<2x16x16xf32>
    %121 = vector.broadcast %118 : f32 to vector<2x16x16xf32>
    %122 = arith.mulf %121, %120 : vector<2x16x16xf32>
    %123 = arith.addf %117, %122 : vector<2x16x16xf32>
    %124 = arith.addf %112, %123 : vector<2x16x16xf32>
    %c0_116 = arith.constant 0 : index
    %c6 = arith.constant 6 : index
    %125 = memref.load %arg6[%c0_116, %c6] : memref<2x49xf32, #tpu.memory_space<smem>>
    %c0_117 = arith.constant 0 : index
    %c0_118 = arith.constant 0 : index
    %c0_119 = arith.constant 0 : index
    %c6_120 = arith.constant 6 : index
    %126 = vector.load %arg9[%c0_117, %c0_118, %c0_119, %c6_120] : memref<2x2x22x22xf32, #tpu.memory_space<vmem>>, vector<1x2x16x16xf32>
    %127 = vector.shape_cast %126 : vector<1x2x16x16xf32> to vector<2x16x16xf32>
    %128 = vector.broadcast %125 : f32 to vector<2x16x16xf32>
    %129 = arith.mulf %128, %127 : vector<2x16x16xf32>
    %c1_121 = arith.constant 1 : index
    %c6_122 = arith.constant 6 : index
    %130 = memref.load %arg6[%c1_121, %c6_122] : memref<2x49xf32, #tpu.memory_space<smem>>
    %c1_123 = arith.constant 1 : index
    %c0_124 = arith.constant 0 : index
    %c0_125 = arith.constant 0 : index
    %c6_126 = arith.constant 6 : index
    %131 = vector.load %arg9[%c1_123, %c0_124, %c0_125, %c6_126] : memref<2x2x22x22xf32, #tpu.memory_space<vmem>>, vector<1x2x16x16xf32>
    %132 = vector.shape_cast %131 : vector<1x2x16x16xf32> to vector<2x16x16xf32>
    %133 = vector.broadcast %130 : f32 to vector<2x16x16xf32>
    %134 = arith.mulf %133, %132 : vector<2x16x16xf32>
    %135 = arith.addf %129, %134 : vector<2x16x16xf32>
    %136 = arith.addf %124, %135 : vector<2x16x16xf32>
    %c0_127 = arith.constant 0 : index
    %c7 = arith.constant 7 : index
    %137 = memref.load %arg6[%c0_127, %c7] : memref<2x49xf32, #tpu.memory_space<smem>>
    %c0_128 = arith.constant 0 : index
    %c0_129 = arith.constant 0 : index
    %c1_130 = arith.constant 1 : index
    %c0_131 = arith.constant 0 : index
    %138 = vector.load %arg9[%c0_128, %c0_129, %c1_130, %c0_131] : memref<2x2x22x22xf32, #tpu.memory_space<vmem>>, vector<1x2x16x16xf32>
    %139 = vector.shape_cast %138 : vector<1x2x16x16xf32> to vector<2x16x16xf32>
    %140 = vector.broadcast %137 : f32 to vector<2x16x16xf32>
    %141 = arith.mulf %140, %139 : vector<2x16x16xf32>
    %c1_132 = arith.constant 1 : index
    %c7_133 = arith.constant 7 : index
    %142 = memref.load %arg6[%c1_132, %c7_133] : memref<2x49xf32, #tpu.memory_space<smem>>
    %c1_134 = arith.constant 1 : index
    %c0_135 = arith.constant 0 : index
    %c1_136 = arith.constant 1 : index
    %c0_137 = arith.constant 0 : index
    %143 = vector.load %arg9[%c1_134, %c0_135, %c1_136, %c0_137] : memref<2x2x22x22xf32, #tpu.memory_space<vmem>>, vector<1x2x16x16xf32>
    %144 = vector.shape_cast %143 : vector<1x2x16x16xf32> to vector<2x16x16xf32>
    %145 = vector.broadcast %142 : f32 to vector<2x16x16xf32>
    %146 = arith.mulf %145, %144 : vector<2x16x16xf32>
    %147 = arith.addf %141, %146 : vector<2x16x16xf32>
    %148 = arith.addf %136, %147 : vector<2x16x16xf32>
    %c0_138 = arith.constant 0 : index
    %c8 = arith.constant 8 : index
    %149 = memref.load %arg6[%c0_138, %c8] : memref<2x49xf32, #tpu.memory_space<smem>>
    %c0_139 = arith.constant 0 : index
    %c0_140 = arith.constant 0 : index
    %c1_141 = arith.constant 1 : index
    %c1_142 = arith.constant 1 : index
    %150 = vector.load %arg9[%c0_139, %c0_140, %c1_141, %c1_142] : memref<2x2x22x22xf32, #tpu.memory_space<vmem>>, vector<1x2x16x16xf32>
    %151 = vector.shape_cast %150 : vector<1x2x16x16xf32> to vector<2x16x16xf32>
    %152 = vector.broadcast %149 : f32 to vector<2x16x16xf32>
    %153 = arith.mulf %152, %151 : vector<2x16x16xf32>
    %c1_143 = arith.constant 1 : index
    %c8_144 = arith.constant 8 : index
    %154 = memref.load %arg6[%c1_143, %c8_144] : memref<2x49xf32, #tpu.memory_space<smem>>
    %c1_145 = arith.constant 1 : index
    %c0_146 = arith.constant 0 : index
    %c1_147 = arith.constant 1 : index
    %c1_148 = arith.constant 1 : index
    %155 = vector.load %arg9[%c1_145, %c0_146, %c1_147, %c1_148] : memref<2x2x22x22xf32, #tpu.memory_space<vmem>>, vector<1x2x16x16xf32>
    %156 = vector.shape_cast %155 : vector<1x2x16x16xf32> to vector<2x16x16xf32>
    %157 = vector.broadcast %154 : f32 to vector<2x16x16xf32>
    %158 = arith.mulf %157, %156 : vector<2x16x16xf32>
    %159 = arith.addf %153, %158 : vector<2x16x16xf32>
    %160 = arith.addf %148, %159 : vector<2x16x16xf32>
    %c0_149 = arith.constant 0 : index
    %c9 = arith.constant 9 : index
    %161 = memref.load %arg6[%c0_149, %c9] : memref<2x49xf32, #tpu.memory_space<smem>>
    %c0_150 = arith.constant 0 : index
    %c0_151 = arith.constant 0 : index
    %c1_152 = arith.constant 1 : index
    %c2_153 = arith.constant 2 : index
    %162 = vector.load %arg9[%c0_150, %c0_151, %c1_152, %c2_153] : memref<2x2x22x22xf32, #tpu.memory_space<vmem>>, vector<1x2x16x16xf32>
    %163 = vector.shape_cast %162 : vector<1x2x16x16xf32> to vector<2x16x16xf32>
    %164 = vector.broadcast %161 : f32 to vector<2x16x16xf32>
    %165 = arith.mulf %164, %163 : vector<2x16x16xf32>
    %c1_154 = arith.constant 1 : index
    %c9_155 = arith.constant 9 : index
    %166 = memref.load %arg6[%c1_154, %c9_155] : memref<2x49xf32, #tpu.memory_space<smem>>
    %c1_156 = arith.constant 1 : index
    %c0_157 = arith.constant 0 : index
    %c1_158 = arith.constant 1 : index
    %c2_159 = arith.constant 2 : index
    %167 = vector.load %arg9[%c1_156, %c0_157, %c1_158, %c2_159] : memref<2x2x22x22xf32, #tpu.memory_space<vmem>>, vector<1x2x16x16xf32>
    %168 = vector.shape_cast %167 : vector<1x2x16x16xf32> to vector<2x16x16xf32>
    %169 = vector.broadcast %166 : f32 to vector<2x16x16xf32>
    %170 = arith.mulf %169, %168 : vector<2x16x16xf32>
    %171 = arith.addf %165, %170 : vector<2x16x16xf32>
    %172 = arith.addf %160, %171 : vector<2x16x16xf32>
    %c0_160 = arith.constant 0 : index
    %c10 = arith.constant 10 : index
    %173 = memref.load %arg6[%c0_160, %c10] : memref<2x49xf32, #tpu.memory_space<smem>>
    %c0_161 = arith.constant 0 : index
    %c0_162 = arith.constant 0 : index
    %c1_163 = arith.constant 1 : index
    %c3_164 = arith.constant 3 : index
    %174 = vector.load %arg9[%c0_161, %c0_162, %c1_163, %c3_164] : memref<2x2x22x22xf32, #tpu.memory_space<vmem>>, vector<1x2x16x16xf32>
    %175 = vector.shape_cast %174 : vector<1x2x16x16xf32> to vector<2x16x16xf32>
    %176 = vector.broadcast %173 : f32 to vector<2x16x16xf32>
    %177 = arith.mulf %176, %175 : vector<2x16x16xf32>
    %c1_165 = arith.constant 1 : index
    %c10_166 = arith.constant 10 : index
    %178 = memref.load %arg6[%c1_165, %c10_166] : memref<2x49xf32, #tpu.memory_space<smem>>
    %c1_167 = arith.constant 1 : index
    %c0_168 = arith.constant 0 : index
    %c1_169 = arith.constant 1 : index
    %c3_170 = arith.constant 3 : index
    %179 = vector.load %arg9[%c1_167, %c0_168, %c1_169, %c3_170] : memref<2x2x22x22xf32, #tpu.memory_space<vmem>>, vector<1x2x16x16xf32>
    %180 = vector.shape_cast %179 : vector<1x2x16x16xf32> to vector<2x16x16xf32>
    %181 = vector.broadcast %178 : f32 to vector<2x16x16xf32>
    %182 = arith.mulf %181, %180 : vector<2x16x16xf32>
    %183 = arith.addf %177, %182 : vector<2x16x16xf32>
    %184 = arith.addf %172, %183 : vector<2x16x16xf32>
    %c0_171 = arith.constant 0 : index
    %c11 = arith.constant 11 : index
    %185 = memref.load %arg6[%c0_171, %c11] : memref<2x49xf32, #tpu.memory_space<smem>>
    %c0_172 = arith.constant 0 : index
    %c0_173 = arith.constant 0 : index
    %c1_174 = arith.constant 1 : index
    %c4_175 = arith.constant 4 : index
    %186 = vector.load %arg9[%c0_172, %c0_173, %c1_174, %c4_175] : memref<2x2x22x22xf32, #tpu.memory_space<vmem>>, vector<1x2x16x16xf32>
    %187 = vector.shape_cast %186 : vector<1x2x16x16xf32> to vector<2x16x16xf32>
    %188 = vector.broadcast %185 : f32 to vector<2x16x16xf32>
    %189 = arith.mulf %188, %187 : vector<2x16x16xf32>
    %c1_176 = arith.constant 1 : index
    %c11_177 = arith.constant 11 : index
    %190 = memref.load %arg6[%c1_176, %c11_177] : memref<2x49xf32, #tpu.memory_space<smem>>
    %c1_178 = arith.constant 1 : index
    %c0_179 = arith.constant 0 : index
    %c1_180 = arith.constant 1 : index
    %c4_181 = arith.constant 4 : index
    %191 = vector.load %arg9[%c1_178, %c0_179, %c1_180, %c4_181] : memref<2x2x22x22xf32, #tpu.memory_space<vmem>>, vector<1x2x16x16xf32>
    %192 = vector.shape_cast %191 : vector<1x2x16x16xf32> to vector<2x16x16xf32>
    %193 = vector.broadcast %190 : f32 to vector<2x16x16xf32>
    %194 = arith.mulf %193, %192 : vector<2x16x16xf32>
    %195 = arith.addf %189, %194 : vector<2x16x16xf32>
    %196 = arith.addf %184, %195 : vector<2x16x16xf32>
    %c0_182 = arith.constant 0 : index
    %c12 = arith.constant 12 : index
    %197 = memref.load %arg6[%c0_182, %c12] : memref<2x49xf32, #tpu.memory_space<smem>>
    %c0_183 = arith.constant 0 : index
    %c0_184 = arith.constant 0 : index
    %c1_185 = arith.constant 1 : index
    %c5_186 = arith.constant 5 : index
    %198 = vector.load %arg9[%c0_183, %c0_184, %c1_185, %c5_186] : memref<2x2x22x22xf32, #tpu.memory_space<vmem>>, vector<1x2x16x16xf32>
    %199 = vector.shape_cast %198 : vector<1x2x16x16xf32> to vector<2x16x16xf32>
    %200 = vector.broadcast %197 : f32 to vector<2x16x16xf32>
    %201 = arith.mulf %200, %199 : vector<2x16x16xf32>
    %c1_187 = arith.constant 1 : index
    %c12_188 = arith.constant 12 : index
    %202 = memref.load %arg6[%c1_187, %c12_188] : memref<2x49xf32, #tpu.memory_space<smem>>
    %c1_189 = arith.constant 1 : index
    %c0_190 = arith.constant 0 : index
    %c1_191 = arith.constant 1 : index
    %c5_192 = arith.constant 5 : index
    %203 = vector.load %arg9[%c1_189, %c0_190, %c1_191, %c5_192] : memref<2x2x22x22xf32, #tpu.memory_space<vmem>>, vector<1x2x16x16xf32>
    %204 = vector.shape_cast %203 : vector<1x2x16x16xf32> to vector<2x16x16xf32>
    %205 = vector.broadcast %202 : f32 to vector<2x16x16xf32>
    %206 = arith.mulf %205, %204 : vector<2x16x16xf32>
    %207 = arith.addf %201, %206 : vector<2x16x16xf32>
    %208 = arith.addf %196, %207 : vector<2x16x16xf32>
    %c0_193 = arith.constant 0 : index
    %c13 = arith.constant 13 : index
    %209 = memref.load %arg6[%c0_193, %c13] : memref<2x49xf32, #tpu.memory_space<smem>>
    %c0_194 = arith.constant 0 : index
    %c0_195 = arith.constant 0 : index
    %c1_196 = arith.constant 1 : index
    %c6_197 = arith.constant 6 : index
    %210 = vector.load %arg9[%c0_194, %c0_195, %c1_196, %c6_197] : memref<2x2x22x22xf32, #tpu.memory_space<vmem>>, vector<1x2x16x16xf32>
    %211 = vector.shape_cast %210 : vector<1x2x16x16xf32> to vector<2x16x16xf32>
    %212 = vector.broadcast %209 : f32 to vector<2x16x16xf32>
    %213 = arith.mulf %212, %211 : vector<2x16x16xf32>
    %c1_198 = arith.constant 1 : index
    %c13_199 = arith.constant 13 : index
    %214 = memref.load %arg6[%c1_198, %c13_199] : memref<2x49xf32, #tpu.memory_space<smem>>
    %c1_200 = arith.constant 1 : index
    %c0_201 = arith.constant 0 : index
    %c1_202 = arith.constant 1 : index
    %c6_203 = arith.constant 6 : index
    %215 = vector.load %arg9[%c1_200, %c0_201, %c1_202, %c6_203] : memref<2x2x22x22xf32, #tpu.memory_space<vmem>>, vector<1x2x16x16xf32>
    %216 = vector.shape_cast %215 : vector<1x2x16x16xf32> to vector<2x16x16xf32>
    %217 = vector.broadcast %214 : f32 to vector<2x16x16xf32>
    %218 = arith.mulf %217, %216 : vector<2x16x16xf32>
    %219 = arith.addf %213, %218 : vector<2x16x16xf32>
    %220 = arith.addf %208, %219 : vector<2x16x16xf32>
    %c0_204 = arith.constant 0 : index
    %c14 = arith.constant 14 : index
    %221 = memref.load %arg6[%c0_204, %c14] : memref<2x49xf32, #tpu.memory_space<smem>>
    %c0_205 = arith.constant 0 : index
    %c0_206 = arith.constant 0 : index
    %c2_207 = arith.constant 2 : index
    %c0_208 = arith.constant 0 : index
    %222 = vector.load %arg9[%c0_205, %c0_206, %c2_207, %c0_208] : memref<2x2x22x22xf32, #tpu.memory_space<vmem>>, vector<1x2x16x16xf32>
    %223 = vector.shape_cast %222 : vector<1x2x16x16xf32> to vector<2x16x16xf32>
    %224 = vector.broadcast %221 : f32 to vector<2x16x16xf32>
    %225 = arith.mulf %224, %223 : vector<2x16x16xf32>
    %c1_209 = arith.constant 1 : index
    %c14_210 = arith.constant 14 : index
    %226 = memref.load %arg6[%c1_209, %c14_210] : memref<2x49xf32, #tpu.memory_space<smem>>
    %c1_211 = arith.constant 1 : index
    %c0_212 = arith.constant 0 : index
    %c2_213 = arith.constant 2 : index
    %c0_214 = arith.constant 0 : index
    %227 = vector.load %arg9[%c1_211, %c0_212, %c2_213, %c0_214] : memref<2x2x22x22xf32, #tpu.memory_space<vmem>>, vector<1x2x16x16xf32>
    %228 = vector.shape_cast %227 : vector<1x2x16x16xf32> to vector<2x16x16xf32>
    %229 = vector.broadcast %226 : f32 to vector<2x16x16xf32>
    %230 = arith.mulf %229, %228 : vector<2x16x16xf32>
    %231 = arith.addf %225, %230 : vector<2x16x16xf32>
    %232 = arith.addf %220, %231 : vector<2x16x16xf32>
    %c0_215 = arith.constant 0 : index
    %c15 = arith.constant 15 : index
    %233 = memref.load %arg6[%c0_215, %c15] : memref<2x49xf32, #tpu.memory_space<smem>>
    %c0_216 = arith.constant 0 : index
    %c0_217 = arith.constant 0 : index
    %c2_218 = arith.constant 2 : index
    %c1_219 = arith.constant 1 : index
    %234 = vector.load %arg9[%c0_216, %c0_217, %c2_218, %c1_219] : memref<2x2x22x22xf32, #tpu.memory_space<vmem>>, vector<1x2x16x16xf32>
    %235 = vector.shape_cast %234 : vector<1x2x16x16xf32> to vector<2x16x16xf32>
    %236 = vector.broadcast %233 : f32 to vector<2x16x16xf32>
    %237 = arith.mulf %236, %235 : vector<2x16x16xf32>
    %c1_220 = arith.constant 1 : index
    %c15_221 = arith.constant 15 : index
    %238 = memref.load %arg6[%c1_220, %c15_221] : memref<2x49xf32, #tpu.memory_space<smem>>
    %c1_222 = arith.constant 1 : index
    %c0_223 = arith.constant 0 : index
    %c2_224 = arith.constant 2 : index
    %c1_225 = arith.constant 1 : index
    %239 = vector.load %arg9[%c1_222, %c0_223, %c2_224, %c1_225] : memref<2x2x22x22xf32, #tpu.memory_space<vmem>>, vector<1x2x16x16xf32>
    %240 = vector.shape_cast %239 : vector<1x2x16x16xf32> to vector<2x16x16xf32>
    %241 = vector.broadcast %238 : f32 to vector<2x16x16xf32>
    %242 = arith.mulf %241, %240 : vector<2x16x16xf32>
    %243 = arith.addf %237, %242 : vector<2x16x16xf32>
    %244 = arith.addf %232, %243 : vector<2x16x16xf32>
    %c0_226 = arith.constant 0 : index
    %c16 = arith.constant 16 : index
    %245 = memref.load %arg6[%c0_226, %c16] : memref<2x49xf32, #tpu.memory_space<smem>>
    %c0_227 = arith.constant 0 : index
    %c0_228 = arith.constant 0 : index
    %c2_229 = arith.constant 2 : index
    %c2_230 = arith.constant 2 : index
    %246 = vector.load %arg9[%c0_227, %c0_228, %c2_229, %c2_230] : memref<2x2x22x22xf32, #tpu.memory_space<vmem>>, vector<1x2x16x16xf32>
    %247 = vector.shape_cast %246 : vector<1x2x16x16xf32> to vector<2x16x16xf32>
    %248 = vector.broadcast %245 : f32 to vector<2x16x16xf32>
    %249 = arith.mulf %248, %247 : vector<2x16x16xf32>
    %c1_231 = arith.constant 1 : index
    %c16_232 = arith.constant 16 : index
    %250 = memref.load %arg6[%c1_231, %c16_232] : memref<2x49xf32, #tpu.memory_space<smem>>
    %c1_233 = arith.constant 1 : index
    %c0_234 = arith.constant 0 : index
    %c2_235 = arith.constant 2 : index
    %c2_236 = arith.constant 2 : index
    %251 = vector.load %arg9[%c1_233, %c0_234, %c2_235, %c2_236] : memref<2x2x22x22xf32, #tpu.memory_space<vmem>>, vector<1x2x16x16xf32>
    %252 = vector.shape_cast %251 : vector<1x2x16x16xf32> to vector<2x16x16xf32>
    %253 = vector.broadcast %250 : f32 to vector<2x16x16xf32>
    %254 = arith.mulf %253, %252 : vector<2x16x16xf32>
    %255 = arith.addf %249, %254 : vector<2x16x16xf32>
    %256 = arith.addf %244, %255 : vector<2x16x16xf32>
    %c0_237 = arith.constant 0 : index
    %c17 = arith.constant 17 : index
    %257 = memref.load %arg6[%c0_237, %c17] : memref<2x49xf32, #tpu.memory_space<smem>>
    %c0_238 = arith.constant 0 : index
    %c0_239 = arith.constant 0 : index
    %c2_240 = arith.constant 2 : index
    %c3_241 = arith.constant 3 : index
    %258 = vector.load %arg9[%c0_238, %c0_239, %c2_240, %c3_241] : memref<2x2x22x22xf32, #tpu.memory_space<vmem>>, vector<1x2x16x16xf32>
    %259 = vector.shape_cast %258 : vector<1x2x16x16xf32> to vector<2x16x16xf32>
    %260 = vector.broadcast %257 : f32 to vector<2x16x16xf32>
    %261 = arith.mulf %260, %259 : vector<2x16x16xf32>
    %c1_242 = arith.constant 1 : index
    %c17_243 = arith.constant 17 : index
    %262 = memref.load %arg6[%c1_242, %c17_243] : memref<2x49xf32, #tpu.memory_space<smem>>
    %c1_244 = arith.constant 1 : index
    %c0_245 = arith.constant 0 : index
    %c2_246 = arith.constant 2 : index
    %c3_247 = arith.constant 3 : index
    %263 = vector.load %arg9[%c1_244, %c0_245, %c2_246, %c3_247] : memref<2x2x22x22xf32, #tpu.memory_space<vmem>>, vector<1x2x16x16xf32>
    %264 = vector.shape_cast %263 : vector<1x2x16x16xf32> to vector<2x16x16xf32>
    %265 = vector.broadcast %262 : f32 to vector<2x16x16xf32>
    %266 = arith.mulf %265, %264 : vector<2x16x16xf32>
    %267 = arith.addf %261, %266 : vector<2x16x16xf32>
    %268 = arith.addf %256, %267 : vector<2x16x16xf32>
    %c0_248 = arith.constant 0 : index
    %c18 = arith.constant 18 : index
    %269 = memref.load %arg6[%c0_248, %c18] : memref<2x49xf32, #tpu.memory_space<smem>>
    %c0_249 = arith.constant 0 : index
    %c0_250 = arith.constant 0 : index
    %c2_251 = arith.constant 2 : index
    %c4_252 = arith.constant 4 : index
    %270 = vector.load %arg9[%c0_249, %c0_250, %c2_251, %c4_252] : memref<2x2x22x22xf32, #tpu.memory_space<vmem>>, vector<1x2x16x16xf32>
    %271 = vector.shape_cast %270 : vector<1x2x16x16xf32> to vector<2x16x16xf32>
    %272 = vector.broadcast %269 : f32 to vector<2x16x16xf32>
    %273 = arith.mulf %272, %271 : vector<2x16x16xf32>
    %c1_253 = arith.constant 1 : index
    %c18_254 = arith.constant 18 : index
    %274 = memref.load %arg6[%c1_253, %c18_254] : memref<2x49xf32, #tpu.memory_space<smem>>
    %c1_255 = arith.constant 1 : index
    %c0_256 = arith.constant 0 : index
    %c2_257 = arith.constant 2 : index
    %c4_258 = arith.constant 4 : index
    %275 = vector.load %arg9[%c1_255, %c0_256, %c2_257, %c4_258] : memref<2x2x22x22xf32, #tpu.memory_space<vmem>>, vector<1x2x16x16xf32>
    %276 = vector.shape_cast %275 : vector<1x2x16x16xf32> to vector<2x16x16xf32>
    %277 = vector.broadcast %274 : f32 to vector<2x16x16xf32>
    %278 = arith.mulf %277, %276 : vector<2x16x16xf32>
    %279 = arith.addf %273, %278 : vector<2x16x16xf32>
    %280 = arith.addf %268, %279 : vector<2x16x16xf32>
    %c0_259 = arith.constant 0 : index
    %c19_260 = arith.constant 19 : index
    %281 = memref.load %arg6[%c0_259, %c19_260] : memref<2x49xf32, #tpu.memory_space<smem>>
    %c0_261 = arith.constant 0 : index
    %c0_262 = arith.constant 0 : index
    %c2_263 = arith.constant 2 : index
    %c5_264 = arith.constant 5 : index
    %282 = vector.load %arg9[%c0_261, %c0_262, %c2_263, %c5_264] : memref<2x2x22x22xf32, #tpu.memory_space<vmem>>, vector<1x2x16x16xf32>
    %283 = vector.shape_cast %282 : vector<1x2x16x16xf32> to vector<2x16x16xf32>
    %284 = vector.broadcast %281 : f32 to vector<2x16x16xf32>
    %285 = arith.mulf %284, %283 : vector<2x16x16xf32>
    %c1_265 = arith.constant 1 : index
    %c19_266 = arith.constant 19 : index
    %286 = memref.load %arg6[%c1_265, %c19_266] : memref<2x49xf32, #tpu.memory_space<smem>>
    %c1_267 = arith.constant 1 : index
    %c0_268 = arith.constant 0 : index
    %c2_269 = arith.constant 2 : index
    %c5_270 = arith.constant 5 : index
    %287 = vector.load %arg9[%c1_267, %c0_268, %c2_269, %c5_270] : memref<2x2x22x22xf32, #tpu.memory_space<vmem>>, vector<1x2x16x16xf32>
    %288 = vector.shape_cast %287 : vector<1x2x16x16xf32> to vector<2x16x16xf32>
    %289 = vector.broadcast %286 : f32 to vector<2x16x16xf32>
    %290 = arith.mulf %289, %288 : vector<2x16x16xf32>
    %291 = arith.addf %285, %290 : vector<2x16x16xf32>
    %292 = arith.addf %280, %291 : vector<2x16x16xf32>
    %c0_271 = arith.constant 0 : index
    %c20 = arith.constant 20 : index
    %293 = memref.load %arg6[%c0_271, %c20] : memref<2x49xf32, #tpu.memory_space<smem>>
    %c0_272 = arith.constant 0 : index
    %c0_273 = arith.constant 0 : index
    %c2_274 = arith.constant 2 : index
    %c6_275 = arith.constant 6 : index
    %294 = vector.load %arg9[%c0_272, %c0_273, %c2_274, %c6_275] : memref<2x2x22x22xf32, #tpu.memory_space<vmem>>, vector<1x2x16x16xf32>
    %295 = vector.shape_cast %294 : vector<1x2x16x16xf32> to vector<2x16x16xf32>
    %296 = vector.broadcast %293 : f32 to vector<2x16x16xf32>
    %297 = arith.mulf %296, %295 : vector<2x16x16xf32>
    %c1_276 = arith.constant 1 : index
    %c20_277 = arith.constant 20 : index
    %298 = memref.load %arg6[%c1_276, %c20_277] : memref<2x49xf32, #tpu.memory_space<smem>>
    %c1_278 = arith.constant 1 : index
    %c0_279 = arith.constant 0 : index
    %c2_280 = arith.constant 2 : index
    %c6_281 = arith.constant 6 : index
    %299 = vector.load %arg9[%c1_278, %c0_279, %c2_280, %c6_281] : memref<2x2x22x22xf32, #tpu.memory_space<vmem>>, vector<1x2x16x16xf32>
    %300 = vector.shape_cast %299 : vector<1x2x16x16xf32> to vector<2x16x16xf32>
    %301 = vector.broadcast %298 : f32 to vector<2x16x16xf32>
    %302 = arith.mulf %301, %300 : vector<2x16x16xf32>
    %303 = arith.addf %297, %302 : vector<2x16x16xf32>
    %304 = arith.addf %292, %303 : vector<2x16x16xf32>
    %c0_282 = arith.constant 0 : index
    %c21 = arith.constant 21 : index
    %305 = memref.load %arg6[%c0_282, %c21] : memref<2x49xf32, #tpu.memory_space<smem>>
    %c0_283 = arith.constant 0 : index
    %c0_284 = arith.constant 0 : index
    %c3_285 = arith.constant 3 : index
    %c0_286 = arith.constant 0 : index
    %306 = vector.load %arg9[%c0_283, %c0_284, %c3_285, %c0_286] : memref<2x2x22x22xf32, #tpu.memory_space<vmem>>, vector<1x2x16x16xf32>
    %307 = vector.shape_cast %306 : vector<1x2x16x16xf32> to vector<2x16x16xf32>
    %308 = vector.broadcast %305 : f32 to vector<2x16x16xf32>
    %309 = arith.mulf %308, %307 : vector<2x16x16xf32>
    %c1_287 = arith.constant 1 : index
    %c21_288 = arith.constant 21 : index
    %310 = memref.load %arg6[%c1_287, %c21_288] : memref<2x49xf32, #tpu.memory_space<smem>>
    %c1_289 = arith.constant 1 : index
    %c0_290 = arith.constant 0 : index
    %c3_291 = arith.constant 3 : index
    %c0_292 = arith.constant 0 : index
    %311 = vector.load %arg9[%c1_289, %c0_290, %c3_291, %c0_292] : memref<2x2x22x22xf32, #tpu.memory_space<vmem>>, vector<1x2x16x16xf32>
    %312 = vector.shape_cast %311 : vector<1x2x16x16xf32> to vector<2x16x16xf32>
    %313 = vector.broadcast %310 : f32 to vector<2x16x16xf32>
    %314 = arith.mulf %313, %312 : vector<2x16x16xf32>
    %315 = arith.addf %309, %314 : vector<2x16x16xf32>
    %316 = arith.addf %304, %315 : vector<2x16x16xf32>
    %c0_293 = arith.constant 0 : index
    %c22 = arith.constant 22 : index
    %317 = memref.load %arg6[%c0_293, %c22] : memref<2x49xf32, #tpu.memory_space<smem>>
    %c0_294 = arith.constant 0 : index
    %c0_295 = arith.constant 0 : index
    %c3_296 = arith.constant 3 : index
    %c1_297 = arith.constant 1 : index
    %318 = vector.load %arg9[%c0_294, %c0_295, %c3_296, %c1_297] : memref<2x2x22x22xf32, #tpu.memory_space<vmem>>, vector<1x2x16x16xf32>
    %319 = vector.shape_cast %318 : vector<1x2x16x16xf32> to vector<2x16x16xf32>
    %320 = vector.broadcast %317 : f32 to vector<2x16x16xf32>
    %321 = arith.mulf %320, %319 : vector<2x16x16xf32>
    %c1_298 = arith.constant 1 : index
    %c22_299 = arith.constant 22 : index
    %322 = memref.load %arg6[%c1_298, %c22_299] : memref<2x49xf32, #tpu.memory_space<smem>>
    %c1_300 = arith.constant 1 : index
    %c0_301 = arith.constant 0 : index
    %c3_302 = arith.constant 3 : index
    %c1_303 = arith.constant 1 : index
    %323 = vector.load %arg9[%c1_300, %c0_301, %c3_302, %c1_303] : memref<2x2x22x22xf32, #tpu.memory_space<vmem>>, vector<1x2x16x16xf32>
    %324 = vector.shape_cast %323 : vector<1x2x16x16xf32> to vector<2x16x16xf32>
    %325 = vector.broadcast %322 : f32 to vector<2x16x16xf32>
    %326 = arith.mulf %325, %324 : vector<2x16x16xf32>
    %327 = arith.addf %321, %326 : vector<2x16x16xf32>
    %328 = arith.addf %316, %327 : vector<2x16x16xf32>
    %c0_304 = arith.constant 0 : index
    %c23 = arith.constant 23 : index
    %329 = memref.load %arg6[%c0_304, %c23] : memref<2x49xf32, #tpu.memory_space<smem>>
    %c0_305 = arith.constant 0 : index
    %c0_306 = arith.constant 0 : index
    %c3_307 = arith.constant 3 : index
    %c2_308 = arith.constant 2 : index
    %330 = vector.load %arg9[%c0_305, %c0_306, %c3_307, %c2_308] : memref<2x2x22x22xf32, #tpu.memory_space<vmem>>, vector<1x2x16x16xf32>
    %331 = vector.shape_cast %330 : vector<1x2x16x16xf32> to vector<2x16x16xf32>
    %332 = vector.broadcast %329 : f32 to vector<2x16x16xf32>
    %333 = arith.mulf %332, %331 : vector<2x16x16xf32>
    %c1_309 = arith.constant 1 : index
    %c23_310 = arith.constant 23 : index
    %334 = memref.load %arg6[%c1_309, %c23_310] : memref<2x49xf32, #tpu.memory_space<smem>>
    %c1_311 = arith.constant 1 : index
    %c0_312 = arith.constant 0 : index
    %c3_313 = arith.constant 3 : index
    %c2_314 = arith.constant 2 : index
    %335 = vector.load %arg9[%c1_311, %c0_312, %c3_313, %c2_314] : memref<2x2x22x22xf32, #tpu.memory_space<vmem>>, vector<1x2x16x16xf32>
    %336 = vector.shape_cast %335 : vector<1x2x16x16xf32> to vector<2x16x16xf32>
    %337 = vector.broadcast %334 : f32 to vector<2x16x16xf32>
    %338 = arith.mulf %337, %336 : vector<2x16x16xf32>
    %339 = arith.addf %333, %338 : vector<2x16x16xf32>
    %340 = arith.addf %328, %339 : vector<2x16x16xf32>
    %c0_315 = arith.constant 0 : index
    %c24 = arith.constant 24 : index
    %341 = memref.load %arg6[%c0_315, %c24] : memref<2x49xf32, #tpu.memory_space<smem>>
    %c0_316 = arith.constant 0 : index
    %c0_317 = arith.constant 0 : index
    %c3_318 = arith.constant 3 : index
    %c3_319 = arith.constant 3 : index
    %342 = vector.load %arg9[%c0_316, %c0_317, %c3_318, %c3_319] : memref<2x2x22x22xf32, #tpu.memory_space<vmem>>, vector<1x2x16x16xf32>
    %343 = vector.shape_cast %342 : vector<1x2x16x16xf32> to vector<2x16x16xf32>
    %344 = vector.broadcast %341 : f32 to vector<2x16x16xf32>
    %345 = arith.mulf %344, %343 : vector<2x16x16xf32>
    %c1_320 = arith.constant 1 : index
    %c24_321 = arith.constant 24 : index
    %346 = memref.load %arg6[%c1_320, %c24_321] : memref<2x49xf32, #tpu.memory_space<smem>>
    %c1_322 = arith.constant 1 : index
    %c0_323 = arith.constant 0 : index
    %c3_324 = arith.constant 3 : index
    %c3_325 = arith.constant 3 : index
    %347 = vector.load %arg9[%c1_322, %c0_323, %c3_324, %c3_325] : memref<2x2x22x22xf32, #tpu.memory_space<vmem>>, vector<1x2x16x16xf32>
    %348 = vector.shape_cast %347 : vector<1x2x16x16xf32> to vector<2x16x16xf32>
    %349 = vector.broadcast %346 : f32 to vector<2x16x16xf32>
    %350 = arith.mulf %349, %348 : vector<2x16x16xf32>
    %351 = arith.addf %345, %350 : vector<2x16x16xf32>
    %352 = arith.addf %340, %351 : vector<2x16x16xf32>
    %c0_326 = arith.constant 0 : index
    %c25 = arith.constant 25 : index
    %353 = memref.load %arg6[%c0_326, %c25] : memref<2x49xf32, #tpu.memory_space<smem>>
    %c0_327 = arith.constant 0 : index
    %c0_328 = arith.constant 0 : index
    %c3_329 = arith.constant 3 : index
    %c4_330 = arith.constant 4 : index
    %354 = vector.load %arg9[%c0_327, %c0_328, %c3_329, %c4_330] : memref<2x2x22x22xf32, #tpu.memory_space<vmem>>, vector<1x2x16x16xf32>
    %355 = vector.shape_cast %354 : vector<1x2x16x16xf32> to vector<2x16x16xf32>
    %356 = vector.broadcast %353 : f32 to vector<2x16x16xf32>
    %357 = arith.mulf %356, %355 : vector<2x16x16xf32>
    %c1_331 = arith.constant 1 : index
    %c25_332 = arith.constant 25 : index
    %358 = memref.load %arg6[%c1_331, %c25_332] : memref<2x49xf32, #tpu.memory_space<smem>>
    %c1_333 = arith.constant 1 : index
    %c0_334 = arith.constant 0 : index
    %c3_335 = arith.constant 3 : index
    %c4_336 = arith.constant 4 : index
    %359 = vector.load %arg9[%c1_333, %c0_334, %c3_335, %c4_336] : memref<2x2x22x22xf32, #tpu.memory_space<vmem>>, vector<1x2x16x16xf32>
    %360 = vector.shape_cast %359 : vector<1x2x16x16xf32> to vector<2x16x16xf32>
    %361 = vector.broadcast %358 : f32 to vector<2x16x16xf32>
    %362 = arith.mulf %361, %360 : vector<2x16x16xf32>
    %363 = arith.addf %357, %362 : vector<2x16x16xf32>
    %364 = arith.addf %352, %363 : vector<2x16x16xf32>
    %c0_337 = arith.constant 0 : index
    %c26 = arith.constant 26 : index
    %365 = memref.load %arg6[%c0_337, %c26] : memref<2x49xf32, #tpu.memory_space<smem>>
    %c0_338 = arith.constant 0 : index
    %c0_339 = arith.constant 0 : index
    %c3_340 = arith.constant 3 : index
    %c5_341 = arith.constant 5 : index
    %366 = vector.load %arg9[%c0_338, %c0_339, %c3_340, %c5_341] : memref<2x2x22x22xf32, #tpu.memory_space<vmem>>, vector<1x2x16x16xf32>
    %367 = vector.shape_cast %366 : vector<1x2x16x16xf32> to vector<2x16x16xf32>
    %368 = vector.broadcast %365 : f32 to vector<2x16x16xf32>
    %369 = arith.mulf %368, %367 : vector<2x16x16xf32>
    %c1_342 = arith.constant 1 : index
    %c26_343 = arith.constant 26 : index
    %370 = memref.load %arg6[%c1_342, %c26_343] : memref<2x49xf32, #tpu.memory_space<smem>>
    %c1_344 = arith.constant 1 : index
    %c0_345 = arith.constant 0 : index
    %c3_346 = arith.constant 3 : index
    %c5_347 = arith.constant 5 : index
    %371 = vector.load %arg9[%c1_344, %c0_345, %c3_346, %c5_347] : memref<2x2x22x22xf32, #tpu.memory_space<vmem>>, vector<1x2x16x16xf32>
    %372 = vector.shape_cast %371 : vector<1x2x16x16xf32> to vector<2x16x16xf32>
    %373 = vector.broadcast %370 : f32 to vector<2x16x16xf32>
    %374 = arith.mulf %373, %372 : vector<2x16x16xf32>
    %375 = arith.addf %369, %374 : vector<2x16x16xf32>
    %376 = arith.addf %364, %375 : vector<2x16x16xf32>
    %c0_348 = arith.constant 0 : index
    %c27 = arith.constant 27 : index
    %377 = memref.load %arg6[%c0_348, %c27] : memref<2x49xf32, #tpu.memory_space<smem>>
    %c0_349 = arith.constant 0 : index
    %c0_350 = arith.constant 0 : index
    %c3_351 = arith.constant 3 : index
    %c6_352 = arith.constant 6 : index
    %378 = vector.load %arg9[%c0_349, %c0_350, %c3_351, %c6_352] : memref<2x2x22x22xf32, #tpu.memory_space<vmem>>, vector<1x2x16x16xf32>
    %379 = vector.shape_cast %378 : vector<1x2x16x16xf32> to vector<2x16x16xf32>
    %380 = vector.broadcast %377 : f32 to vector<2x16x16xf32>
    %381 = arith.mulf %380, %379 : vector<2x16x16xf32>
    %c1_353 = arith.constant 1 : index
    %c27_354 = arith.constant 27 : index
    %382 = memref.load %arg6[%c1_353, %c27_354] : memref<2x49xf32, #tpu.memory_space<smem>>
    %c1_355 = arith.constant 1 : index
    %c0_356 = arith.constant 0 : index
    %c3_357 = arith.constant 3 : index
    %c6_358 = arith.constant 6 : index
    %383 = vector.load %arg9[%c1_355, %c0_356, %c3_357, %c6_358] : memref<2x2x22x22xf32, #tpu.memory_space<vmem>>, vector<1x2x16x16xf32>
    %384 = vector.shape_cast %383 : vector<1x2x16x16xf32> to vector<2x16x16xf32>
    %385 = vector.broadcast %382 : f32 to vector<2x16x16xf32>
    %386 = arith.mulf %385, %384 : vector<2x16x16xf32>
    %387 = arith.addf %381, %386 : vector<2x16x16xf32>
    %388 = arith.addf %376, %387 : vector<2x16x16xf32>
    %c0_359 = arith.constant 0 : index
    %c28 = arith.constant 28 : index
    %389 = memref.load %arg6[%c0_359, %c28] : memref<2x49xf32, #tpu.memory_space<smem>>
    %c0_360 = arith.constant 0 : index
    %c0_361 = arith.constant 0 : index
    %c4_362 = arith.constant 4 : index
    %c0_363 = arith.constant 0 : index
    %390 = vector.load %arg9[%c0_360, %c0_361, %c4_362, %c0_363] : memref<2x2x22x22xf32, #tpu.memory_space<vmem>>, vector<1x2x16x16xf32>
    %391 = vector.shape_cast %390 : vector<1x2x16x16xf32> to vector<2x16x16xf32>
    %392 = vector.broadcast %389 : f32 to vector<2x16x16xf32>
    %393 = arith.mulf %392, %391 : vector<2x16x16xf32>
    %c1_364 = arith.constant 1 : index
    %c28_365 = arith.constant 28 : index
    %394 = memref.load %arg6[%c1_364, %c28_365] : memref<2x49xf32, #tpu.memory_space<smem>>
    %c1_366 = arith.constant 1 : index
    %c0_367 = arith.constant 0 : index
    %c4_368 = arith.constant 4 : index
    %c0_369 = arith.constant 0 : index
    %395 = vector.load %arg9[%c1_366, %c0_367, %c4_368, %c0_369] : memref<2x2x22x22xf32, #tpu.memory_space<vmem>>, vector<1x2x16x16xf32>
    %396 = vector.shape_cast %395 : vector<1x2x16x16xf32> to vector<2x16x16xf32>
    %397 = vector.broadcast %394 : f32 to vector<2x16x16xf32>
    %398 = arith.mulf %397, %396 : vector<2x16x16xf32>
    %399 = arith.addf %393, %398 : vector<2x16x16xf32>
    %400 = arith.addf %388, %399 : vector<2x16x16xf32>
    %c0_370 = arith.constant 0 : index
    %c29 = arith.constant 29 : index
    %401 = memref.load %arg6[%c0_370, %c29] : memref<2x49xf32, #tpu.memory_space<smem>>
    %c0_371 = arith.constant 0 : index
    %c0_372 = arith.constant 0 : index
    %c4_373 = arith.constant 4 : index
    %c1_374 = arith.constant 1 : index
    %402 = vector.load %arg9[%c0_371, %c0_372, %c4_373, %c1_374] : memref<2x2x22x22xf32, #tpu.memory_space<vmem>>, vector<1x2x16x16xf32>
    %403 = vector.shape_cast %402 : vector<1x2x16x16xf32> to vector<2x16x16xf32>
    %404 = vector.broadcast %401 : f32 to vector<2x16x16xf32>
    %405 = arith.mulf %404, %403 : vector<2x16x16xf32>
    %c1_375 = arith.constant 1 : index
    %c29_376 = arith.constant 29 : index
    %406 = memref.load %arg6[%c1_375, %c29_376] : memref<2x49xf32, #tpu.memory_space<smem>>
    %c1_377 = arith.constant 1 : index
    %c0_378 = arith.constant 0 : index
    %c4_379 = arith.constant 4 : index
    %c1_380 = arith.constant 1 : index
    %407 = vector.load %arg9[%c1_377, %c0_378, %c4_379, %c1_380] : memref<2x2x22x22xf32, #tpu.memory_space<vmem>>, vector<1x2x16x16xf32>
    %408 = vector.shape_cast %407 : vector<1x2x16x16xf32> to vector<2x16x16xf32>
    %409 = vector.broadcast %406 : f32 to vector<2x16x16xf32>
    %410 = arith.mulf %409, %408 : vector<2x16x16xf32>
    %411 = arith.addf %405, %410 : vector<2x16x16xf32>
    %412 = arith.addf %400, %411 : vector<2x16x16xf32>
    %c0_381 = arith.constant 0 : index
    %c30 = arith.constant 30 : index
    %413 = memref.load %arg6[%c0_381, %c30] : memref<2x49xf32, #tpu.memory_space<smem>>
    %c0_382 = arith.constant 0 : index
    %c0_383 = arith.constant 0 : index
    %c4_384 = arith.constant 4 : index
    %c2_385 = arith.constant 2 : index
    %414 = vector.load %arg9[%c0_382, %c0_383, %c4_384, %c2_385] : memref<2x2x22x22xf32, #tpu.memory_space<vmem>>, vector<1x2x16x16xf32>
    %415 = vector.shape_cast %414 : vector<1x2x16x16xf32> to vector<2x16x16xf32>
    %416 = vector.broadcast %413 : f32 to vector<2x16x16xf32>
    %417 = arith.mulf %416, %415 : vector<2x16x16xf32>
    %c1_386 = arith.constant 1 : index
    %c30_387 = arith.constant 30 : index
    %418 = memref.load %arg6[%c1_386, %c30_387] : memref<2x49xf32, #tpu.memory_space<smem>>
    %c1_388 = arith.constant 1 : index
    %c0_389 = arith.constant 0 : index
    %c4_390 = arith.constant 4 : index
    %c2_391 = arith.constant 2 : index
    %419 = vector.load %arg9[%c1_388, %c0_389, %c4_390, %c2_391] : memref<2x2x22x22xf32, #tpu.memory_space<vmem>>, vector<1x2x16x16xf32>
    %420 = vector.shape_cast %419 : vector<1x2x16x16xf32> to vector<2x16x16xf32>
    %421 = vector.broadcast %418 : f32 to vector<2x16x16xf32>
    %422 = arith.mulf %421, %420 : vector<2x16x16xf32>
    %423 = arith.addf %417, %422 : vector<2x16x16xf32>
    %424 = arith.addf %412, %423 : vector<2x16x16xf32>
    %c0_392 = arith.constant 0 : index
    %c31 = arith.constant 31 : index
    %425 = memref.load %arg6[%c0_392, %c31] : memref<2x49xf32, #tpu.memory_space<smem>>
    %c0_393 = arith.constant 0 : index
    %c0_394 = arith.constant 0 : index
    %c4_395 = arith.constant 4 : index
    %c3_396 = arith.constant 3 : index
    %426 = vector.load %arg9[%c0_393, %c0_394, %c4_395, %c3_396] : memref<2x2x22x22xf32, #tpu.memory_space<vmem>>, vector<1x2x16x16xf32>
    %427 = vector.shape_cast %426 : vector<1x2x16x16xf32> to vector<2x16x16xf32>
    %428 = vector.broadcast %425 : f32 to vector<2x16x16xf32>
    %429 = arith.mulf %428, %427 : vector<2x16x16xf32>
    %c1_397 = arith.constant 1 : index
    %c31_398 = arith.constant 31 : index
    %430 = memref.load %arg6[%c1_397, %c31_398] : memref<2x49xf32, #tpu.memory_space<smem>>
    %c1_399 = arith.constant 1 : index
    %c0_400 = arith.constant 0 : index
    %c4_401 = arith.constant 4 : index
    %c3_402 = arith.constant 3 : index
    %431 = vector.load %arg9[%c1_399, %c0_400, %c4_401, %c3_402] : memref<2x2x22x22xf32, #tpu.memory_space<vmem>>, vector<1x2x16x16xf32>
    %432 = vector.shape_cast %431 : vector<1x2x16x16xf32> to vector<2x16x16xf32>
    %433 = vector.broadcast %430 : f32 to vector<2x16x16xf32>
    %434 = arith.mulf %433, %432 : vector<2x16x16xf32>
    %435 = arith.addf %429, %434 : vector<2x16x16xf32>
    %436 = arith.addf %424, %435 : vector<2x16x16xf32>
    %c0_403 = arith.constant 0 : index
    %c32 = arith.constant 32 : index
    %437 = memref.load %arg6[%c0_403, %c32] : memref<2x49xf32, #tpu.memory_space<smem>>
    %c0_404 = arith.constant 0 : index
    %c0_405 = arith.constant 0 : index
    %c4_406 = arith.constant 4 : index
    %c4_407 = arith.constant 4 : index
    %438 = vector.load %arg9[%c0_404, %c0_405, %c4_406, %c4_407] : memref<2x2x22x22xf32, #tpu.memory_space<vmem>>, vector<1x2x16x16xf32>
    %439 = vector.shape_cast %438 : vector<1x2x16x16xf32> to vector<2x16x16xf32>
    %440 = vector.broadcast %437 : f32 to vector<2x16x16xf32>
    %441 = arith.mulf %440, %439 : vector<2x16x16xf32>
    %c1_408 = arith.constant 1 : index
    %c32_409 = arith.constant 32 : index
    %442 = memref.load %arg6[%c1_408, %c32_409] : memref<2x49xf32, #tpu.memory_space<smem>>
    %c1_410 = arith.constant 1 : index
    %c0_411 = arith.constant 0 : index
    %c4_412 = arith.constant 4 : index
    %c4_413 = arith.constant 4 : index
    %443 = vector.load %arg9[%c1_410, %c0_411, %c4_412, %c4_413] : memref<2x2x22x22xf32, #tpu.memory_space<vmem>>, vector<1x2x16x16xf32>
    %444 = vector.shape_cast %443 : vector<1x2x16x16xf32> to vector<2x16x16xf32>
    %445 = vector.broadcast %442 : f32 to vector<2x16x16xf32>
    %446 = arith.mulf %445, %444 : vector<2x16x16xf32>
    %447 = arith.addf %441, %446 : vector<2x16x16xf32>
    %448 = arith.addf %436, %447 : vector<2x16x16xf32>
    %c0_414 = arith.constant 0 : index
    %c33 = arith.constant 33 : index
    %449 = memref.load %arg6[%c0_414, %c33] : memref<2x49xf32, #tpu.memory_space<smem>>
    %c0_415 = arith.constant 0 : index
    %c0_416 = arith.constant 0 : index
    %c4_417 = arith.constant 4 : index
    %c5_418 = arith.constant 5 : index
    %450 = vector.load %arg9[%c0_415, %c0_416, %c4_417, %c5_418] : memref<2x2x22x22xf32, #tpu.memory_space<vmem>>, vector<1x2x16x16xf32>
    %451 = vector.shape_cast %450 : vector<1x2x16x16xf32> to vector<2x16x16xf32>
    %452 = vector.broadcast %449 : f32 to vector<2x16x16xf32>
    %453 = arith.mulf %452, %451 : vector<2x16x16xf32>
    %c1_419 = arith.constant 1 : index
    %c33_420 = arith.constant 33 : index
    %454 = memref.load %arg6[%c1_419, %c33_420] : memref<2x49xf32, #tpu.memory_space<smem>>
    %c1_421 = arith.constant 1 : index
    %c0_422 = arith.constant 0 : index
    %c4_423 = arith.constant 4 : index
    %c5_424 = arith.constant 5 : index
    %455 = vector.load %arg9[%c1_421, %c0_422, %c4_423, %c5_424] : memref<2x2x22x22xf32, #tpu.memory_space<vmem>>, vector<1x2x16x16xf32>
    %456 = vector.shape_cast %455 : vector<1x2x16x16xf32> to vector<2x16x16xf32>
    %457 = vector.broadcast %454 : f32 to vector<2x16x16xf32>
    %458 = arith.mulf %457, %456 : vector<2x16x16xf32>
    %459 = arith.addf %453, %458 : vector<2x16x16xf32>
    %460 = arith.addf %448, %459 : vector<2x16x16xf32>
    %c0_425 = arith.constant 0 : index
    %c34 = arith.constant 34 : index
    %461 = memref.load %arg6[%c0_425, %c34] : memref<2x49xf32, #tpu.memory_space<smem>>
    %c0_426 = arith.constant 0 : index
    %c0_427 = arith.constant 0 : index
    %c4_428 = arith.constant 4 : index
    %c6_429 = arith.constant 6 : index
    %462 = vector.load %arg9[%c0_426, %c0_427, %c4_428, %c6_429] : memref<2x2x22x22xf32, #tpu.memory_space<vmem>>, vector<1x2x16x16xf32>
    %463 = vector.shape_cast %462 : vector<1x2x16x16xf32> to vector<2x16x16xf32>
    %464 = vector.broadcast %461 : f32 to vector<2x16x16xf32>
    %465 = arith.mulf %464, %463 : vector<2x16x16xf32>
    %c1_430 = arith.constant 1 : index
    %c34_431 = arith.constant 34 : index
    %466 = memref.load %arg6[%c1_430, %c34_431] : memref<2x49xf32, #tpu.memory_space<smem>>
    %c1_432 = arith.constant 1 : index
    %c0_433 = arith.constant 0 : index
    %c4_434 = arith.constant 4 : index
    %c6_435 = arith.constant 6 : index
    %467 = vector.load %arg9[%c1_432, %c0_433, %c4_434, %c6_435] : memref<2x2x22x22xf32, #tpu.memory_space<vmem>>, vector<1x2x16x16xf32>
    %468 = vector.shape_cast %467 : vector<1x2x16x16xf32> to vector<2x16x16xf32>
    %469 = vector.broadcast %466 : f32 to vector<2x16x16xf32>
    %470 = arith.mulf %469, %468 : vector<2x16x16xf32>
    %471 = arith.addf %465, %470 : vector<2x16x16xf32>
    %472 = arith.addf %460, %471 : vector<2x16x16xf32>
    %c0_436 = arith.constant 0 : index
    %c35 = arith.constant 35 : index
    %473 = memref.load %arg6[%c0_436, %c35] : memref<2x49xf32, #tpu.memory_space<smem>>
    %c0_437 = arith.constant 0 : index
    %c0_438 = arith.constant 0 : index
    %c5_439 = arith.constant 5 : index
    %c0_440 = arith.constant 0 : index
    %474 = vector.load %arg9[%c0_437, %c0_438, %c5_439, %c0_440] : memref<2x2x22x22xf32, #tpu.memory_space<vmem>>, vector<1x2x16x16xf32>
    %475 = vector.shape_cast %474 : vector<1x2x16x16xf32> to vector<2x16x16xf32>
    %476 = vector.broadcast %473 : f32 to vector<2x16x16xf32>
    %477 = arith.mulf %476, %475 : vector<2x16x16xf32>
    %c1_441 = arith.constant 1 : index
    %c35_442 = arith.constant 35 : index
    %478 = memref.load %arg6[%c1_441, %c35_442] : memref<2x49xf32, #tpu.memory_space<smem>>
    %c1_443 = arith.constant 1 : index
    %c0_444 = arith.constant 0 : index
    %c5_445 = arith.constant 5 : index
    %c0_446 = arith.constant 0 : index
    %479 = vector.load %arg9[%c1_443, %c0_444, %c5_445, %c0_446] : memref<2x2x22x22xf32, #tpu.memory_space<vmem>>, vector<1x2x16x16xf32>
    %480 = vector.shape_cast %479 : vector<1x2x16x16xf32> to vector<2x16x16xf32>
    %481 = vector.broadcast %478 : f32 to vector<2x16x16xf32>
    %482 = arith.mulf %481, %480 : vector<2x16x16xf32>
    %483 = arith.addf %477, %482 : vector<2x16x16xf32>
    %484 = arith.addf %472, %483 : vector<2x16x16xf32>
    %c0_447 = arith.constant 0 : index
    %c36 = arith.constant 36 : index
    %485 = memref.load %arg6[%c0_447, %c36] : memref<2x49xf32, #tpu.memory_space<smem>>
    %c0_448 = arith.constant 0 : index
    %c0_449 = arith.constant 0 : index
    %c5_450 = arith.constant 5 : index
    %c1_451 = arith.constant 1 : index
    %486 = vector.load %arg9[%c0_448, %c0_449, %c5_450, %c1_451] : memref<2x2x22x22xf32, #tpu.memory_space<vmem>>, vector<1x2x16x16xf32>
    %487 = vector.shape_cast %486 : vector<1x2x16x16xf32> to vector<2x16x16xf32>
    %488 = vector.broadcast %485 : f32 to vector<2x16x16xf32>
    %489 = arith.mulf %488, %487 : vector<2x16x16xf32>
    %c1_452 = arith.constant 1 : index
    %c36_453 = arith.constant 36 : index
    %490 = memref.load %arg6[%c1_452, %c36_453] : memref<2x49xf32, #tpu.memory_space<smem>>
    %c1_454 = arith.constant 1 : index
    %c0_455 = arith.constant 0 : index
    %c5_456 = arith.constant 5 : index
    %c1_457 = arith.constant 1 : index
    %491 = vector.load %arg9[%c1_454, %c0_455, %c5_456, %c1_457] : memref<2x2x22x22xf32, #tpu.memory_space<vmem>>, vector<1x2x16x16xf32>
    %492 = vector.shape_cast %491 : vector<1x2x16x16xf32> to vector<2x16x16xf32>
    %493 = vector.broadcast %490 : f32 to vector<2x16x16xf32>
    %494 = arith.mulf %493, %492 : vector<2x16x16xf32>
    %495 = arith.addf %489, %494 : vector<2x16x16xf32>
    %496 = arith.addf %484, %495 : vector<2x16x16xf32>
    %c0_458 = arith.constant 0 : index
    %c37 = arith.constant 37 : index
    %497 = memref.load %arg6[%c0_458, %c37] : memref<2x49xf32, #tpu.memory_space<smem>>
    %c0_459 = arith.constant 0 : index
    %c0_460 = arith.constant 0 : index
    %c5_461 = arith.constant 5 : index
    %c2_462 = arith.constant 2 : index
    %498 = vector.load %arg9[%c0_459, %c0_460, %c5_461, %c2_462] : memref<2x2x22x22xf32, #tpu.memory_space<vmem>>, vector<1x2x16x16xf32>
    %499 = vector.shape_cast %498 : vector<1x2x16x16xf32> to vector<2x16x16xf32>
    %500 = vector.broadcast %497 : f32 to vector<2x16x16xf32>
    %501 = arith.mulf %500, %499 : vector<2x16x16xf32>
    %c1_463 = arith.constant 1 : index
    %c37_464 = arith.constant 37 : index
    %502 = memref.load %arg6[%c1_463, %c37_464] : memref<2x49xf32, #tpu.memory_space<smem>>
    %c1_465 = arith.constant 1 : index
    %c0_466 = arith.constant 0 : index
    %c5_467 = arith.constant 5 : index
    %c2_468 = arith.constant 2 : index
    %503 = vector.load %arg9[%c1_465, %c0_466, %c5_467, %c2_468] : memref<2x2x22x22xf32, #tpu.memory_space<vmem>>, vector<1x2x16x16xf32>
    %504 = vector.shape_cast %503 : vector<1x2x16x16xf32> to vector<2x16x16xf32>
    %505 = vector.broadcast %502 : f32 to vector<2x16x16xf32>
    %506 = arith.mulf %505, %504 : vector<2x16x16xf32>
    %507 = arith.addf %501, %506 : vector<2x16x16xf32>
    %508 = arith.addf %496, %507 : vector<2x16x16xf32>
    %c0_469 = arith.constant 0 : index
    %c38 = arith.constant 38 : index
    %509 = memref.load %arg6[%c0_469, %c38] : memref<2x49xf32, #tpu.memory_space<smem>>
    %c0_470 = arith.constant 0 : index
    %c0_471 = arith.constant 0 : index
    %c5_472 = arith.constant 5 : index
    %c3_473 = arith.constant 3 : index
    %510 = vector.load %arg9[%c0_470, %c0_471, %c5_472, %c3_473] : memref<2x2x22x22xf32, #tpu.memory_space<vmem>>, vector<1x2x16x16xf32>
    %511 = vector.shape_cast %510 : vector<1x2x16x16xf32> to vector<2x16x16xf32>
    %512 = vector.broadcast %509 : f32 to vector<2x16x16xf32>
    %513 = arith.mulf %512, %511 : vector<2x16x16xf32>
    %c1_474 = arith.constant 1 : index
    %c38_475 = arith.constant 38 : index
    %514 = memref.load %arg6[%c1_474, %c38_475] : memref<2x49xf32, #tpu.memory_space<smem>>
    %c1_476 = arith.constant 1 : index
    %c0_477 = arith.constant 0 : index
    %c5_478 = arith.constant 5 : index
    %c3_479 = arith.constant 3 : index
    %515 = vector.load %arg9[%c1_476, %c0_477, %c5_478, %c3_479] : memref<2x2x22x22xf32, #tpu.memory_space<vmem>>, vector<1x2x16x16xf32>
    %516 = vector.shape_cast %515 : vector<1x2x16x16xf32> to vector<2x16x16xf32>
    %517 = vector.broadcast %514 : f32 to vector<2x16x16xf32>
    %518 = arith.mulf %517, %516 : vector<2x16x16xf32>
    %519 = arith.addf %513, %518 : vector<2x16x16xf32>
    %520 = arith.addf %508, %519 : vector<2x16x16xf32>
    %c0_480 = arith.constant 0 : index
    %c39 = arith.constant 39 : index
    %521 = memref.load %arg6[%c0_480, %c39] : memref<2x49xf32, #tpu.memory_space<smem>>
    %c0_481 = arith.constant 0 : index
    %c0_482 = arith.constant 0 : index
    %c5_483 = arith.constant 5 : index
    %c4_484 = arith.constant 4 : index
    %522 = vector.load %arg9[%c0_481, %c0_482, %c5_483, %c4_484] : memref<2x2x22x22xf32, #tpu.memory_space<vmem>>, vector<1x2x16x16xf32>
    %523 = vector.shape_cast %522 : vector<1x2x16x16xf32> to vector<2x16x16xf32>
    %524 = vector.broadcast %521 : f32 to vector<2x16x16xf32>
    %525 = arith.mulf %524, %523 : vector<2x16x16xf32>
    %c1_485 = arith.constant 1 : index
    %c39_486 = arith.constant 39 : index
    %526 = memref.load %arg6[%c1_485, %c39_486] : memref<2x49xf32, #tpu.memory_space<smem>>
    %c1_487 = arith.constant 1 : index
    %c0_488 = arith.constant 0 : index
    %c5_489 = arith.constant 5 : index
    %c4_490 = arith.constant 4 : index
    %527 = vector.load %arg9[%c1_487, %c0_488, %c5_489, %c4_490] : memref<2x2x22x22xf32, #tpu.memory_space<vmem>>, vector<1x2x16x16xf32>
    %528 = vector.shape_cast %527 : vector<1x2x16x16xf32> to vector<2x16x16xf32>
    %529 = vector.broadcast %526 : f32 to vector<2x16x16xf32>
    %530 = arith.mulf %529, %528 : vector<2x16x16xf32>
    %531 = arith.addf %525, %530 : vector<2x16x16xf32>
    %532 = arith.addf %520, %531 : vector<2x16x16xf32>
    %c0_491 = arith.constant 0 : index
    %c40 = arith.constant 40 : index
    %533 = memref.load %arg6[%c0_491, %c40] : memref<2x49xf32, #tpu.memory_space<smem>>
    %c0_492 = arith.constant 0 : index
    %c0_493 = arith.constant 0 : index
    %c5_494 = arith.constant 5 : index
    %c5_495 = arith.constant 5 : index
    %534 = vector.load %arg9[%c0_492, %c0_493, %c5_494, %c5_495] : memref<2x2x22x22xf32, #tpu.memory_space<vmem>>, vector<1x2x16x16xf32>
    %535 = vector.shape_cast %534 : vector<1x2x16x16xf32> to vector<2x16x16xf32>
    %536 = vector.broadcast %533 : f32 to vector<2x16x16xf32>
    %537 = arith.mulf %536, %535 : vector<2x16x16xf32>
    %c1_496 = arith.constant 1 : index
    %c40_497 = arith.constant 40 : index
    %538 = memref.load %arg6[%c1_496, %c40_497] : memref<2x49xf32, #tpu.memory_space<smem>>
    %c1_498 = arith.constant 1 : index
    %c0_499 = arith.constant 0 : index
    %c5_500 = arith.constant 5 : index
    %c5_501 = arith.constant 5 : index
    %539 = vector.load %arg9[%c1_498, %c0_499, %c5_500, %c5_501] : memref<2x2x22x22xf32, #tpu.memory_space<vmem>>, vector<1x2x16x16xf32>
    %540 = vector.shape_cast %539 : vector<1x2x16x16xf32> to vector<2x16x16xf32>
    %541 = vector.broadcast %538 : f32 to vector<2x16x16xf32>
    %542 = arith.mulf %541, %540 : vector<2x16x16xf32>
    %543 = arith.addf %537, %542 : vector<2x16x16xf32>
    %544 = arith.addf %532, %543 : vector<2x16x16xf32>
    %c0_502 = arith.constant 0 : index
    %c41 = arith.constant 41 : index
    %545 = memref.load %arg6[%c0_502, %c41] : memref<2x49xf32, #tpu.memory_space<smem>>
    %c0_503 = arith.constant 0 : index
    %c0_504 = arith.constant 0 : index
    %c5_505 = arith.constant 5 : index
    %c6_506 = arith.constant 6 : index
    %546 = vector.load %arg9[%c0_503, %c0_504, %c5_505, %c6_506] : memref<2x2x22x22xf32, #tpu.memory_space<vmem>>, vector<1x2x16x16xf32>
    %547 = vector.shape_cast %546 : vector<1x2x16x16xf32> to vector<2x16x16xf32>
    %548 = vector.broadcast %545 : f32 to vector<2x16x16xf32>
    %549 = arith.mulf %548, %547 : vector<2x16x16xf32>
    %c1_507 = arith.constant 1 : index
    %c41_508 = arith.constant 41 : index
    %550 = memref.load %arg6[%c1_507, %c41_508] : memref<2x49xf32, #tpu.memory_space<smem>>
    %c1_509 = arith.constant 1 : index
    %c0_510 = arith.constant 0 : index
    %c5_511 = arith.constant 5 : index
    %c6_512 = arith.constant 6 : index
    %551 = vector.load %arg9[%c1_509, %c0_510, %c5_511, %c6_512] : memref<2x2x22x22xf32, #tpu.memory_space<vmem>>, vector<1x2x16x16xf32>
    %552 = vector.shape_cast %551 : vector<1x2x16x16xf32> to vector<2x16x16xf32>
    %553 = vector.broadcast %550 : f32 to vector<2x16x16xf32>
    %554 = arith.mulf %553, %552 : vector<2x16x16xf32>
    %555 = arith.addf %549, %554 : vector<2x16x16xf32>
    %556 = arith.addf %544, %555 : vector<2x16x16xf32>
    %c0_513 = arith.constant 0 : index
    %c42 = arith.constant 42 : index
    %557 = memref.load %arg6[%c0_513, %c42] : memref<2x49xf32, #tpu.memory_space<smem>>
    %c0_514 = arith.constant 0 : index
    %c0_515 = arith.constant 0 : index
    %c6_516 = arith.constant 6 : index
    %c0_517 = arith.constant 0 : index
    %558 = vector.load %arg9[%c0_514, %c0_515, %c6_516, %c0_517] : memref<2x2x22x22xf32, #tpu.memory_space<vmem>>, vector<1x2x16x16xf32>
    %559 = vector.shape_cast %558 : vector<1x2x16x16xf32> to vector<2x16x16xf32>
    %560 = vector.broadcast %557 : f32 to vector<2x16x16xf32>
    %561 = arith.mulf %560, %559 : vector<2x16x16xf32>
    %c1_518 = arith.constant 1 : index
    %c42_519 = arith.constant 42 : index
    %562 = memref.load %arg6[%c1_518, %c42_519] : memref<2x49xf32, #tpu.memory_space<smem>>
    %c1_520 = arith.constant 1 : index
    %c0_521 = arith.constant 0 : index
    %c6_522 = arith.constant 6 : index
    %c0_523 = arith.constant 0 : index
    %563 = vector.load %arg9[%c1_520, %c0_521, %c6_522, %c0_523] : memref<2x2x22x22xf32, #tpu.memory_space<vmem>>, vector<1x2x16x16xf32>
    %564 = vector.shape_cast %563 : vector<1x2x16x16xf32> to vector<2x16x16xf32>
    %565 = vector.broadcast %562 : f32 to vector<2x16x16xf32>
    %566 = arith.mulf %565, %564 : vector<2x16x16xf32>
    %567 = arith.addf %561, %566 : vector<2x16x16xf32>
    %568 = arith.addf %556, %567 : vector<2x16x16xf32>
    %c0_524 = arith.constant 0 : index
    %c43 = arith.constant 43 : index
    %569 = memref.load %arg6[%c0_524, %c43] : memref<2x49xf32, #tpu.memory_space<smem>>
    %c0_525 = arith.constant 0 : index
    %c0_526 = arith.constant 0 : index
    %c6_527 = arith.constant 6 : index
    %c1_528 = arith.constant 1 : index
    %570 = vector.load %arg9[%c0_525, %c0_526, %c6_527, %c1_528] : memref<2x2x22x22xf32, #tpu.memory_space<vmem>>, vector<1x2x16x16xf32>
    %571 = vector.shape_cast %570 : vector<1x2x16x16xf32> to vector<2x16x16xf32>
    %572 = vector.broadcast %569 : f32 to vector<2x16x16xf32>
    %573 = arith.mulf %572, %571 : vector<2x16x16xf32>
    %c1_529 = arith.constant 1 : index
    %c43_530 = arith.constant 43 : index
    %574 = memref.load %arg6[%c1_529, %c43_530] : memref<2x49xf32, #tpu.memory_space<smem>>
    %c1_531 = arith.constant 1 : index
    %c0_532 = arith.constant 0 : index
    %c6_533 = arith.constant 6 : index
    %c1_534 = arith.constant 1 : index
    %575 = vector.load %arg9[%c1_531, %c0_532, %c6_533, %c1_534] : memref<2x2x22x22xf32, #tpu.memory_space<vmem>>, vector<1x2x16x16xf32>
    %576 = vector.shape_cast %575 : vector<1x2x16x16xf32> to vector<2x16x16xf32>
    %577 = vector.broadcast %574 : f32 to vector<2x16x16xf32>
    %578 = arith.mulf %577, %576 : vector<2x16x16xf32>
    %579 = arith.addf %573, %578 : vector<2x16x16xf32>
    %580 = arith.addf %568, %579 : vector<2x16x16xf32>
    %c0_535 = arith.constant 0 : index
    %c44 = arith.constant 44 : index
    %581 = memref.load %arg6[%c0_535, %c44] : memref<2x49xf32, #tpu.memory_space<smem>>
    %c0_536 = arith.constant 0 : index
    %c0_537 = arith.constant 0 : index
    %c6_538 = arith.constant 6 : index
    %c2_539 = arith.constant 2 : index
    %582 = vector.load %arg9[%c0_536, %c0_537, %c6_538, %c2_539] : memref<2x2x22x22xf32, #tpu.memory_space<vmem>>, vector<1x2x16x16xf32>
    %583 = vector.shape_cast %582 : vector<1x2x16x16xf32> to vector<2x16x16xf32>
    %584 = vector.broadcast %581 : f32 to vector<2x16x16xf32>
    %585 = arith.mulf %584, %583 : vector<2x16x16xf32>
    %c1_540 = arith.constant 1 : index
    %c44_541 = arith.constant 44 : index
    %586 = memref.load %arg6[%c1_540, %c44_541] : memref<2x49xf32, #tpu.memory_space<smem>>
    %c1_542 = arith.constant 1 : index
    %c0_543 = arith.constant 0 : index
    %c6_544 = arith.constant 6 : index
    %c2_545 = arith.constant 2 : index
    %587 = vector.load %arg9[%c1_542, %c0_543, %c6_544, %c2_545] : memref<2x2x22x22xf32, #tpu.memory_space<vmem>>, vector<1x2x16x16xf32>
    %588 = vector.shape_cast %587 : vector<1x2x16x16xf32> to vector<2x16x16xf32>
    %589 = vector.broadcast %586 : f32 to vector<2x16x16xf32>
    %590 = arith.mulf %589, %588 : vector<2x16x16xf32>
    %591 = arith.addf %585, %590 : vector<2x16x16xf32>
    %592 = arith.addf %580, %591 : vector<2x16x16xf32>
    %c0_546 = arith.constant 0 : index
    %c45 = arith.constant 45 : index
    %593 = memref.load %arg6[%c0_546, %c45] : memref<2x49xf32, #tpu.memory_space<smem>>
    %c0_547 = arith.constant 0 : index
    %c0_548 = arith.constant 0 : index
    %c6_549 = arith.constant 6 : index
    %c3_550 = arith.constant 3 : index
    %594 = vector.load %arg9[%c0_547, %c0_548, %c6_549, %c3_550] : memref<2x2x22x22xf32, #tpu.memory_space<vmem>>, vector<1x2x16x16xf32>
    %595 = vector.shape_cast %594 : vector<1x2x16x16xf32> to vector<2x16x16xf32>
    %596 = vector.broadcast %593 : f32 to vector<2x16x16xf32>
    %597 = arith.mulf %596, %595 : vector<2x16x16xf32>
    %c1_551 = arith.constant 1 : index
    %c45_552 = arith.constant 45 : index
    %598 = memref.load %arg6[%c1_551, %c45_552] : memref<2x49xf32, #tpu.memory_space<smem>>
    %c1_553 = arith.constant 1 : index
    %c0_554 = arith.constant 0 : index
    %c6_555 = arith.constant 6 : index
    %c3_556 = arith.constant 3 : index
    %599 = vector.load %arg9[%c1_553, %c0_554, %c6_555, %c3_556] : memref<2x2x22x22xf32, #tpu.memory_space<vmem>>, vector<1x2x16x16xf32>
    %600 = vector.shape_cast %599 : vector<1x2x16x16xf32> to vector<2x16x16xf32>
    %601 = vector.broadcast %598 : f32 to vector<2x16x16xf32>
    %602 = arith.mulf %601, %600 : vector<2x16x16xf32>
    %603 = arith.addf %597, %602 : vector<2x16x16xf32>
    %604 = arith.addf %592, %603 : vector<2x16x16xf32>
    %c0_557 = arith.constant 0 : index
    %c46 = arith.constant 46 : index
    %605 = memref.load %arg6[%c0_557, %c46] : memref<2x49xf32, #tpu.memory_space<smem>>
    %c0_558 = arith.constant 0 : index
    %c0_559 = arith.constant 0 : index
    %c6_560 = arith.constant 6 : index
    %c4_561 = arith.constant 4 : index
    %606 = vector.load %arg9[%c0_558, %c0_559, %c6_560, %c4_561] : memref<2x2x22x22xf32, #tpu.memory_space<vmem>>, vector<1x2x16x16xf32>
    %607 = vector.shape_cast %606 : vector<1x2x16x16xf32> to vector<2x16x16xf32>
    %608 = vector.broadcast %605 : f32 to vector<2x16x16xf32>
    %609 = arith.mulf %608, %607 : vector<2x16x16xf32>
    %c1_562 = arith.constant 1 : index
    %c46_563 = arith.constant 46 : index
    %610 = memref.load %arg6[%c1_562, %c46_563] : memref<2x49xf32, #tpu.memory_space<smem>>
    %c1_564 = arith.constant 1 : index
    %c0_565 = arith.constant 0 : index
    %c6_566 = arith.constant 6 : index
    %c4_567 = arith.constant 4 : index
    %611 = vector.load %arg9[%c1_564, %c0_565, %c6_566, %c4_567] : memref<2x2x22x22xf32, #tpu.memory_space<vmem>>, vector<1x2x16x16xf32>
    %612 = vector.shape_cast %611 : vector<1x2x16x16xf32> to vector<2x16x16xf32>
    %613 = vector.broadcast %610 : f32 to vector<2x16x16xf32>
    %614 = arith.mulf %613, %612 : vector<2x16x16xf32>
    %615 = arith.addf %609, %614 : vector<2x16x16xf32>
    %616 = arith.addf %604, %615 : vector<2x16x16xf32>
    %c0_568 = arith.constant 0 : index
    %c47 = arith.constant 47 : index
    %617 = memref.load %arg6[%c0_568, %c47] : memref<2x49xf32, #tpu.memory_space<smem>>
    %c0_569 = arith.constant 0 : index
    %c0_570 = arith.constant 0 : index
    %c6_571 = arith.constant 6 : index
    %c5_572 = arith.constant 5 : index
    %618 = vector.load %arg9[%c0_569, %c0_570, %c6_571, %c5_572] : memref<2x2x22x22xf32, #tpu.memory_space<vmem>>, vector<1x2x16x16xf32>
    %619 = vector.shape_cast %618 : vector<1x2x16x16xf32> to vector<2x16x16xf32>
    %620 = vector.broadcast %617 : f32 to vector<2x16x16xf32>
    %621 = arith.mulf %620, %619 : vector<2x16x16xf32>
    %c1_573 = arith.constant 1 : index
    %c47_574 = arith.constant 47 : index
    %622 = memref.load %arg6[%c1_573, %c47_574] : memref<2x49xf32, #tpu.memory_space<smem>>
    %c1_575 = arith.constant 1 : index
    %c0_576 = arith.constant 0 : index
    %c6_577 = arith.constant 6 : index
    %c5_578 = arith.constant 5 : index
    %623 = vector.load %arg9[%c1_575, %c0_576, %c6_577, %c5_578] : memref<2x2x22x22xf32, #tpu.memory_space<vmem>>, vector<1x2x16x16xf32>
    %624 = vector.shape_cast %623 : vector<1x2x16x16xf32> to vector<2x16x16xf32>
    %625 = vector.broadcast %622 : f32 to vector<2x16x16xf32>
    %626 = arith.mulf %625, %624 : vector<2x16x16xf32>
    %627 = arith.addf %621, %626 : vector<2x16x16xf32>
    %628 = arith.addf %616, %627 : vector<2x16x16xf32>
    %c0_579 = arith.constant 0 : index
    %c48 = arith.constant 48 : index
    %629 = memref.load %arg6[%c0_579, %c48] : memref<2x49xf32, #tpu.memory_space<smem>>
    %c0_580 = arith.constant 0 : index
    %c0_581 = arith.constant 0 : index
    %c6_582 = arith.constant 6 : index
    %c6_583 = arith.constant 6 : index
    %630 = vector.load %arg9[%c0_580, %c0_581, %c6_582, %c6_583] : memref<2x2x22x22xf32, #tpu.memory_space<vmem>>, vector<1x2x16x16xf32>
    %631 = vector.shape_cast %630 : vector<1x2x16x16xf32> to vector<2x16x16xf32>
    %632 = vector.broadcast %629 : f32 to vector<2x16x16xf32>
    %633 = arith.mulf %632, %631 : vector<2x16x16xf32>
    %c1_584 = arith.constant 1 : index
    %c48_585 = arith.constant 48 : index
    %634 = memref.load %arg6[%c1_584, %c48_585] : memref<2x49xf32, #tpu.memory_space<smem>>
    %c1_586 = arith.constant 1 : index
    %c0_587 = arith.constant 0 : index
    %c6_588 = arith.constant 6 : index
    %c6_589 = arith.constant 6 : index
    %635 = vector.load %arg9[%c1_586, %c0_587, %c6_588, %c6_589] : memref<2x2x22x22xf32, #tpu.memory_space<vmem>>, vector<1x2x16x16xf32>
    %636 = vector.shape_cast %635 : vector<1x2x16x16xf32> to vector<2x16x16xf32>
    %637 = vector.broadcast %634 : f32 to vector<2x16x16xf32>
    %638 = arith.mulf %637, %636 : vector<2x16x16xf32>
    %639 = arith.addf %633, %638 : vector<2x16x16xf32>
    %640 = arith.addf %628, %639 : vector<2x16x16xf32>
    %641 = arith.negf %640 : vector<2x16x16xf32>
    %642 = math.exp %641 : vector<2x16x16xf32>
    %cst_590 = arith.constant 1.000000e+00 : f32
    %643 = vector.broadcast %cst_590 : f32 to vector<2x16x16xf32>
    %644 = arith.addf %643, %642 : vector<2x16x16xf32>
    %645 = arith.divf %643, %644 : vector<2x16x16xf32>
    %646 = vector.shape_cast %645 : vector<2x16x16xf32> to vector<2x256xf32>
    %647 = vector.shape_cast %646 : vector<2x256xf32> to vector<2x1x256xf32>
    %648 = vector.broadcast %647 : vector<2x1x256xf32> to vector<2x32x256xf32>
    %649 = arith.mulf %28, %648 : vector<2x32x256xf32>
    %c0_591 = arith.constant 0 : index
    %c0_592 = arith.constant 0 : index
    %c0_593 = arith.constant 0 : index
    %650 = vector.load %arg8[%c0_591, %c0_592, %c0_593] : memref<2x32x256xf32, #tpu.memory_space<vmem>>, vector<2x32x256xf32>
    tpu.vector_store %arg8[%c0_591, %c0_592, %c0_593], %649 {strides = array<i32>} : memref<2x32x256xf32, #tpu.memory_space<vmem>>, vector<2x32x256xf32>,
    return
  }
  func.func @transform_0(%arg0: i32) -> (i32, i32, i32) {
    %c0_i32 = arith.constant 0 : i32
    %c0_i32_0 = arith.constant 0 : i32
    %c0_i32_1 = arith.constant 0 : i32
    return %arg0, %c0_i32, %c0_i32_0 : i32, i32, i32
  }
  func.func @transform_1(%arg0: i32) -> (i32, i32) {
    %c0_i32 = arith.constant 0 : i32
    %c0_i32_0 = arith.constant 0 : i32
    %c0_i32_1 = arith.constant 0 : i32
    return %c0_i32, %c0_i32_0 : i32, i32
  }
  func.func @transform_2(%arg0: i32) -> (i32, i32) {
    %c0_i32 = arith.constant 0 : i32
    %c0_i32_0 = arith.constant 0 : i32
    %c0_i32_1 = arith.constant 0 : i32
    return %c0_i32, %c0_i32_0 : i32, i32
  }
  func.func @transform_3(%arg0: i32) -> (i32, i32) {
    %c0_i32 = arith.constant 0 : i32
    %c0_i32_0 = arith.constant 0 : i32
    %c0_i32_1 = arith.constant 0 : i32
    return %c0_i32, %c0_i32_0 : i32, i32
  }
  func.func @transform_4(%arg0: i32) -> (i32, i32) {
    %c0_i32 = arith.constant 0 : i32
    %c0_i32_0 = arith.constant 0 : i32
    %c0_i32_1 = arith.constant 0 : i32
    return %c0_i32, %c0_i32_0 : i32, i32
  }
  func.func @transform_5(%arg0: i32) -> (i32, i32) {
    %c0_i32 = arith.constant 0 : i32
    %c0_i32_0 = arith.constant 0 : i32
    %c0_i32_1 = arith.constant 0 : i32
    return %c0_i32, %c0_i32_0 : i32, i32
  }
  func.func @transform_6(%arg0: i32) -> (i32, i32) {
    %c0_i32 = arith.constant 0 : i32
    %c0_i32_0 = arith.constant 0 : i32
    %c0_i32_1 = arith.constant 0 : i32
    return %c0_i32, %c0_i32_0 : i32, i32
  }
  func.func @transform_7(%arg0: i32) -> (i32, i32, i32) {
    %c0_i32 = arith.constant 0 : i32
    %c0_i32_0 = arith.constant 0 : i32
    %c0_i32_1 = arith.constant 0 : i32
    return %arg0, %c0_i32, %c0_i32_0 : i32, i32, i32
  }
}

</mosaic_0001>

<llo_original>
// kernel: cbam_pallas.1
$region0: #{cbam_pallas.1}
  #allocation0 [shape = 'u32[]', space=smem, size = 0x4, offset = 0x4, fixed_abs, tag = 'smem constant byte address 0x4 - core index']
  #allocation1 [shape = 'u32[144,128]{1,0:T(1,128)}', space=vmem, size = 0x12000, scoped, tag = 'internal scratch']
  #allocation2 [shape = 'f32[2,2,22,22]{3,2,1,0:T(8,128)}', space=vmem, size = 0xc000, scoped, tag = 'scratch operand']
  #allocation3 [shape = 'f32[1,1]{1,0:T(1,128)S(6)}', space=smem, size = 0x200, scoped, tag = 'scoped memory for cbam_pallas.1']
  %s0 = inlined_call_operand.hbm [shape: f32[2,32,256], index: 0, kind: input, shape index: {}]
  %s1 = inlined_call_operand.hbm [shape: f32[32,2], index: 1, kind: input, shape index: {}]
  %s2 = inlined_call_operand.hbm [shape: f32[1,2], index: 2, kind: input, shape index: {}]
  %s3 = inlined_call_operand.hbm [shape: f32[2,32], index: 3, kind: input, shape index: {}]
  %s4 = inlined_call_operand.hbm [shape: f32[1,32], index: 4, kind: input, shape index: {}]
  %s5 = inlined_call_operand.hbm [shape: f32[2,49], index: 5, kind: input, shape index: {}]
  %s6 = inlined_call_operand.<no memory space> [shape: f32[1,1], index: 6, kind: input, shape index: {}]
  %s7 = inlined_call_operand.hbm [shape: f32[2,32,256], index: 7, kind: output, shape index: {}]
  %s8 = sld [smem:[#allocation0]]
  $region62: #{cbam_pallas.1} parent=0
    _
  %s10 = ssub.s32 1, %s8
  %s11 = scalar_select 0, %s10, %s8
  %12 = sst [smem:[#allocation3]] %s6
  $region1: #{cbam_pallas.1} parent=0
    #allocation4 [shape = 'u8[65536]{0}', space=vmem, size = 0x10000, scoped, tag = 'input window, operand 0, single buffered']
    #allocation5 [shape = 's32[1]{0}', space=sflag, size = 0x4, scoped, tag = 'scoped memory for cbam_pallas.1']
    #allocation6 [shape = 's32[1]{0}', space=sflag, size = 0x4, scoped, tag = 'scoped memory for cbam_pallas.1']
    #allocation7 [shape = 's32[1]{0}', space=sflag, size = 0x4, scoped, tag = 'scoped memory for cbam_pallas.1']
    #allocation8 [shape = 'u8[16384]{0}', space=vmem, size = 0x4000, scoped, tag = 'input window, operand 1, single buffered']
    #allocation9 [shape = 's32[1]{0}', space=sflag, size = 0x4, scoped, tag = 'scoped memory for cbam_pallas.1']
    #allocation10 [shape = 'u8[512]{0}', space=vmem, size = 0x400, scoped, tag = 'input window, operand 2, single buffered']
    #allocation11 [shape = 'u8[1024]{0}', space=vmem, size = 0x400, scoped, tag = 'input window, operand 3, single buffered']
    #allocation12 [shape = 's32[1]{0}', space=sflag, size = 0x4, scoped, tag = 'scoped memory for cbam_pallas.1']
    #allocation13 [shape = 'u8[512]{0}', space=vmem, size = 0x400, scoped, tag = 'input window, operand 4, single buffered']
    #allocation14 [shape = 'u8[1024]{0}', space=smem, size = 0x400, scoped, tag = 'input window, operand 5, single buffered']
    #allocation15 [shape = 'u8[65536]{0}', space=vmem, size = 0x10000, scoped, tag = 'output window, operand 0, single buffered']
    %13 = vsyncpa [#allocation5], 0
    %14 = vsyncpa [#allocation9], 0
    %15 = vsyncpa [#allocation12], 0
    %16 = vsyncpa [#allocation7], 0
    %17 = vsyncpa [#allocation6], 0
    // Predicated region
    $region2: #{cbam_pallas.1} parent=1 // pred_check
      _
    $region3: #{cbam_pallas.1} parent=1 // pred_check_branch
      %19 = sbr.rel (0) target = $region5
    $region4: #{cbam_pallas.1} parent=1 // pred_region
      %s21 = ssub.s32 2048, 2048
      %22 = vsyncadd [#allocation5], %s21
      %s23 = sshll.u32 [#allocation4], 4
      %s24 = int_to_ptr.vmem [resolvable:$true] %s23
      %29 = dma.hbm_to_vmem [thread:$0]  %s0, 2048, %s24, [#allocation5], 256, 256, 16
    $region5: #{cbam_pallas.1} parent=1 // pred_fallthru
      _
    // Predicated region
    $region6: #{cbam_pallas.1} parent=1 // pred_check
      _
    $region7: #{cbam_pallas.1} parent=1 // pred_check_branch
      %31 = sbr.rel (0) target = $region9
    $region8: #{cbam_pallas.1} parent=1 // pred_region
      %s33 = ssub.s32 512, 512
      %34 = vsyncadd [#allocation9], %s33
      %s35 = sshll.u32 [#allocation8], 4
      %s36 = int_to_ptr.vmem [resolvable:$true] %s35
      %41 = dma.hbm_to_vmem [thread:$0]  %s1, 512, %s36, [#allocation9], 128, 128, 8
    $region9: #{cbam_pallas.1} parent=1 // pred_fallthru
      _
    // Predicated region
    $region10: #{cbam_pallas.1} parent=1 // pred_check
      _
    $region11: #{cbam_pallas.1} parent=1 // pred_check_branch
      %43 = sbr.rel (0) target = $region13
    $region12: #{cbam_pallas.1} parent=1 // pred_region
      %s45 = ssub.s32 16, 16
      %46 = vsyncadd [#allocation9], %s45
      %s48 = sshll.u32 [#allocation10], 4
      %s49 = int_to_ptr.vmem [resolvable:$true] %s48
      %51 = dma.hbm_to_vmem [thread:$0]  %s2, 16, %s49, [#allocation9]
    $region13: #{cbam_pallas.1} parent=1 // pred_fallthru
      _
    // Predicated region
    $region14: #{cbam_pallas.1} parent=1 // pred_check
      _
    $region15: #{cbam_pallas.1} parent=1 // pred_check_branch
      %53 = sbr.rel (0) target = $region17
    $region16: #{cbam_pallas.1} parent=1 // pred_region
      %s55 = ssub.s32 32, 32
      %56 = vsyncadd [#allocation12], %s55
      %s58 = sshll.u32 [#allocation11], 4
      %s59 = int_to_ptr.vmem [resolvable:$true] %s58
      %61 = dma.hbm_to_vmem [thread:$0]  %s3, 32, %s59, [#allocation12]
    $region17: #{cbam_pallas.1} parent=1 // pred_fallthru
      _
    // Predicated region
    $region18: #{cbam_pallas.1} parent=1 // pred_check
      _
    $region19: #{cbam_pallas.1} parent=1 // pred_check_branch
      %63 = sbr.rel (0) target = $region21
    $region20: #{cbam_pallas.1} parent=1 // pred_region
      %s65 = ssub.s32 16, 16
      %66 = vsyncadd [#allocation12], %s65
      %s68 = sshll.u32 [#allocation13], 4
      %s69 = int_to_ptr.vmem [resolvable:$true] %s68
      %71 = dma.hbm_to_vmem [thread:$0]  %s4, 16, %s69, [#allocation12]
    $region21: #{cbam_pallas.1} parent=1 // pred_fallthru
      _
    // Predicated region
    $region22: #{cbam_pallas.1} parent=1 // pred_check
      _
    $region23: #{cbam_pallas.1} parent=1 // pred_check_branch
      %73 = sbr.rel (0) target = $region25
    $region24: #{cbam_pallas.1} parent=1 // pred_region
      %s75 = ssub.s32 32, 32
      %76 = vsyncadd [#allocation7], %s75
      %79 = dma.hbm_to_smem %s5, 32, [#allocation14], [#allocation7]
    $region25: #{cbam_pallas.1} parent=1 // pred_fallthru
      _
    // Predicated region
    $region26: #{cbam_pallas.1} parent=1 // pred_check
      _
    $region27: #{cbam_pallas.1} parent=1 // pred_check_branch
      %81 = sbr.rel (0) target = $region29
    $region28: #{cbam_pallas.1} parent=1 // pred_region
      _
    $region29: #{cbam_pallas.1} parent=1 // pred_fallthru
      _
    // Predicated region
    $region30: #{cbam_pallas.1} parent=1 // pred_check
      _
    $region31: #{cbam_pallas.1} parent=1 // pred_check_branch
      %83 = sbr.rel (0) target = $region33
    $region32: #{cbam_pallas.1} parent=1 // pred_region
      %84 = dma.done [#allocation5], 2048
    $region33: #{cbam_pallas.1} parent=1 // pred_fallthru
      _
    // Predicated region
    $region34: #{cbam_pallas.1} parent=1 // pred_check
      _
    $region35: #{cbam_pallas.1} parent=1 // pred_check_branch
      %86 = sbr.rel (0) target = $region37
    $region36: #{cbam_pallas.1} parent=1 // pred_region
      %87 = dma.done [#allocation9], 512
    $region37: #{cbam_pallas.1} parent=1 // pred_fallthru
      _
    // Predicated region
    $region38: #{cbam_pallas.1} parent=1 // pred_check
      _
    $region39: #{cbam_pallas.1} parent=1 // pred_check_branch
      %89 = sbr.rel (0) target = $region41
    $region40: #{cbam_pallas.1} parent=1 // pred_region
      %90 = dma.done [#allocation9], 16
    $region41: #{cbam_pallas.1} parent=1 // pred_fallthru
      _
    // Predicated region
    $region42: #{cbam_pallas.1} parent=1 // pred_check
      _
    $region43: #{cbam_pallas.1} parent=1 // pred_check_branch
      %92 = sbr.rel (0) target = $region45
    $region44: #{cbam_pallas.1} parent=1 // pred_region
      %93 = dma.done [#allocation12], 32
    $region45: #{cbam_pallas.1} parent=1 // pred_fallthru
      _
    // Predicated region
    $region46: #{cbam_pallas.1} parent=1 // pred_check
      _
    $region47: #{cbam_pallas.1} parent=1 // pred_check_branch
      %95 = sbr.rel (0) target = $region49
    $region48: #{cbam_pallas.1} parent=1 // pred_region
      %96 = dma.done [#allocation12], 16
    $region49: #{cbam_pallas.1} parent=1 // pred_fallthru
      _
    // Predicated region
    $region50: #{cbam_pallas.1} parent=1 // pred_check
      _
    $region51: #{cbam_pallas.1} parent=1 // pred_check_branch
      %98 = sbr.rel (0) target = $region53
    $region52: #{cbam_pallas.1} parent=1 // pred_region
      %99 = dma.done [#allocation7], 32
    $region53: #{cbam_pallas.1} parent=1 // pred_fallthru
      _
    %100 = sfence
    %v101 = vld [vmem:[#allocation4] sm:$0xff]
    %v102 = vld [vmem:[#allocation4 + $0x8] sm:$0xff]
    %v103 = vld [vmem:[#allocation4 + $0x10] sm:$0xff]
    %v104 = vld [vmem:[#allocation4 + $0x18] sm:$0xff]
    %v105 = vld [vmem:[#allocation4 + $0x20] sm:$0xff]
    %v106 = vld [vmem:[#allocation4 + $0x28] sm:$0xff]
    %v107 = vld [vmem:[#allocation4 + $0x30] sm:$0xff]
    %v108 = vld [vmem:[#allocation4 + $0x38] sm:$0xff]
    %v109 = vld [vmem:[#allocation4 + $0x40] sm:$0xff]
    %v110 = vld [vmem:[#allocation4 + $0x48] sm:$0xff]
    %v111 = vld [vmem:[#allocation4 + $0x50] sm:$0xff]
    %v112 = vld [vmem:[#allocation4 + $0x58] sm:$0xff]
    %v113 = vld [vmem:[#allocation4 + $0x60] sm:$0xff]
    %v114 = vld [vmem:[#allocation4 + $0x68] sm:$0xff]
    %v115 = vld [vmem:[#allocation4 + $0x70] sm:$0xff]
    %v116 = vld [vmem:[#allocation4 + $0x78] sm:$0xff]
    %v117 = vadd.f32 %v101, %v102
    %118 = vadd.xlane.f32.xlu0 %v117
    %v119 = vpop.xlane.xlu0 %118
    %v120 = vadd.f32 %v103, %v104
    %121 = vadd.xlane.f32.xlu0 %v120
    %v122 = vpop.xlane.xlu0 %121
    %v123 = vadd.f32 %v105, %v106
    %124 = vadd.xlane.f32.xlu0 %v123
    %v125 = vpop.xlane.xlu0 %124
    %v126 = vadd.f32 %v107, %v108
    %127 = vadd.xlane.f32.xlu0 %v126
    %v128 = vpop.xlane.xlu0 %127
    %v129 = vadd.f32 %v109, %v110
    %130 = vadd.xlane.f32.xlu0 %v129
    %v131 = vpop.xlane.xlu0 %130
    %v132 = vadd.f32 %v111, %v112
    %133 = vadd.xlane.f32.xlu0 %v132
    %v134 = vpop.xlane.xlu0 %133
    %v135 = vadd.f32 %v113, %v114
    %136 = vadd.xlane.f32.xlu0 %v135
    %v137 = vpop.xlane.xlu0 %136
    %v138 = vadd.f32 %v115, %v116
    %139 = vadd.xlane.f32.xlu0 %v138
    %v140 = vpop.xlane.xlu0 %139
    %v141 = vrcp.pop 256.0
    %v142 = vmul.f32 %v119, %v141
    %v143 = vmul.f32 %v122, %v141
    %v144 = vmul.f32 %v125, %v141
    %v145 = vmul.f32 %v128, %v141
    %v146 = vmul.f32 %v131, %v141
    %v147 = vmul.f32 %v134, %v141
    %v148 = vmul.f32 %v137, %v141
    %v149 = vmul.f32 %v140, %v141
    %v150 = vmax.f32 %v101, %v102
    %151 = vmax.xlane.f32.xlu0 %v150
    %v152 = vpop.xlane.xlu0 %151
    %v153 = vmax.f32 %v103, %v104
    %154 = vmax.xlane.f32.xlu0 %v153
    %v155 = vpop.xlane.xlu0 %154
    %v156 = vmax.f32 %v105, %v106
    %157 = vmax.xlane.f32.xlu0 %v156
    %v158 = vpop.xlane.xlu0 %157
    %v159 = vmax.f32 %v107, %v108
    %160 = vmax.xlane.f32.xlu0 %v159
    %v161 = vpop.xlane.xlu0 %160
    %v162 = vmax.f32 %v109, %v110
    %163 = vmax.xlane.f32.xlu0 %v162
    %v164 = vpop.xlane.xlu0 %163
    %v165 = vmax.f32 %v111, %v112
    %166 = vmax.xlane.f32.xlu0 %v165
    %v167 = vpop.xlane.xlu0 %166
    %v168 = vmax.f32 %v113, %v114
    %169 = vmax.xlane.f32.xlu0 %v168
    %v170 = vpop.xlane.xlu0 %169
    %v171 = vmax.f32 %v115, %v116
    %172 = vmax.xlane.f32.xlu0 %v171
    %v173 = vpop.xlane.xlu0 %172
    %v182 = vlaneseq
    %v183 = vand.u32 %v182, 127
    %v184 = vlaneseq
    %v185 = vshrl.u32 %v184, 7
    %v186 = vsub.s32 %v183, %v185
    %v187 = vrot.slane %v142, %v186
    %v188 = vadd.s32 %v183, 4294967288
    %v189 = vlaneseq
    %v190 = vshrl.u32 %v189, 7
    %v191 = vsub.s32 %v188, %v190
    %v192 = vrot.slane %v143, %v191
    %vm193 = vcmask 130112
    %v194 = vsel %vm193, %v192, %v187
    %v195 = vadd.s32 %v183, 4294967280
    %v196 = vlaneseq
    %v197 = vshrl.u32 %v196, 7
    %v198 = vsub.s32 %v195, %v197
    %v199 = vrot.slane %v144, %v198
    %vm200 = vcmask 195712
    %v201 = vsel %vm200, %v199, %v194
    %v202 = vadd.s32 %v183, 4294967272
    %v203 = vlaneseq
    %v204 = vshrl.u32 %v203, 7
    %v205 = vsub.s32 %v202, %v204
    %v206 = vrot.slane %v145, %v205
    %vm207 = vcmask 261312
    %v208 = vsel %vm207, %v206, %v201
    %v209 = vlaneseq
    %v210 = vshrl.u32 %v209, 7
    %v211 = vsub.s32 %v183, %v210
    %v212 = vrot.slane %v146, %v211
    %v213 = vlaneseq
    %v214 = vshrl.u32 %v213, 7
    %v215 = vsub.s32 %v188, %v214
    %v216 = vrot.slane %v147, %v215
    %v217 = vsel %vm193, %v216, %v212
    %v218 = vlaneseq
    %v219 = vshrl.u32 %v218, 7
    %v220 = vsub.s32 %v195, %v219
    %v221 = vrot.slane %v148, %v220
    %v222 = vsel %vm200, %v221, %v217
    %v223 = vlaneseq
    %v224 = vshrl.u32 %v223, 7
    %v225 = vsub.s32 %v202, %v224
    %v226 = vrot.slane %v149, %v225
    %v227 = vsel %vm207, %v226, %v222
    %vm228 = vcmask 1041409
    %v229 = vsel %vm228, %v227, %v208
    %v239 = vlaneseq
    %v240 = vshrl.u32 %v239, 7
    %v241 = vsub.s32 %v183, %v240
    %v242 = vrot.slane %v152, %v241
    %v243 = vlaneseq
    %v244 = vshrl.u32 %v243, 7
    %v245 = vsub.s32 %v188, %v244
    %v246 = vrot.slane %v155, %v245
    %v247 = vsel %vm193, %v246, %v242
    %v248 = vlaneseq
    %v249 = vshrl.u32 %v248, 7
    %v250 = vsub.s32 %v195, %v249
    %v251 = vrot.slane %v158, %v250
    %v252 = vsel %vm200, %v251, %v247
    %v253 = vlaneseq
    %v254 = vshrl.u32 %v253, 7
    %v255 = vsub.s32 %v202, %v254
    %v256 = vrot.slane %v161, %v255
    %v257 = vsel %vm207, %v256, %v252
    %v258 = vlaneseq
    %v259 = vshrl.u32 %v258, 7
    %v260 = vsub.s32 %v183, %v259
    %v261 = vrot.slane %v164, %v260
    %v262 = vlaneseq
    %v263 = vshrl.u32 %v262, 7
    %v264 = vsub.s32 %v188, %v263
    %v265 = vrot.slane %v167, %v264
    %v266 = vsel %vm193, %v265, %v261
    %v267 = vlaneseq
    %v268 = vshrl.u32 %v267, 7
    %v269 = vsub.s32 %v195, %v268
    %v270 = vrot.slane %v170, %v269
    %v271 = vsel %vm200, %v270, %v266
    %v272 = vlaneseq
    %v273 = vshrl.u32 %v272, 7
    %v274 = vsub.s32 %v202, %v273
    %v275 = vrot.slane %v173, %v274
    %v276 = vsel %vm207, %v275, %v271
    %vm277 = vcmask 1043459
    %v278 = vsel %vm277, %v276, %v257
    %vm280 = vcmask 1041408
    %v281 = vsel %vm280, %v229, %v278
    %v282 = vld [vmem:[#allocation8] sm:$0xff]
    %v283 = vld [vmem:[#allocation8 + $0x8] sm:$0xff]
    %v284 = vld [vmem:[#allocation8 + $0x10] sm:$0xff]
    %v285 = vld [vmem:[#allocation8 + $0x18] sm:$0xff]
    %v286 = vld [vmem:[#allocation10] sm:$0x1]
    %v288 = vlaneseq
    %v289 = vshrl.u32 %v288, 7
    %v290 = vsub.s32 0, %v289
    %v291 = vrot.slane %v286, %v290
    %vm293 = vcmask 261120
    %v295 = vsel %vm293, %v281, 0
    %297 = vmatprep.subr.mxu0 0.0
    %298 = vmatpush1.msra.mxu0 %v282
    %299 = vmatprep.subr.mxu0 0.0
    %300 = vmatpush1.msra.mxu0 %v283
    %301 = vmatprep.subr.mxu0 0.0
    %302 = vmatpush1.msra.mxu0 %v284
    %303 = vmatprep.subr.mxu0 0.0
    %304 = vmatpush1.msra.mxu0 %v285
    %305 = vmatprep.subr.mxu0 0.0
    %306 = vmatpush1.msra.mxu0 0.0
    %307 = vmatprep.subr.mxu0 0.0
    %308 = vmatpush1.msra.mxu0 0.0
    %309 = vmatprep.subr.mxu0 0.0
    %310 = vmatpush1.msra.mxu0 0.0
    %311 = vmatprep.subr.mxu0 0.0
    %312 = vmatpush1.msra.mxu0 0.0
    %313 = vmatprep.subr.mxu0 0.0
    %314 = vmatpush1.msra.mxu0 0.0
    %315 = vmatprep.subr.mxu0 0.0
    %316 = vmatpush1.msra.mxu0 0.0
    %317 = vmatprep.subr.mxu0 0.0
    %318 = vmatpush1.msra.mxu0 0.0
    %319 = vmatprep.subr.mxu0 0.0
    %320 = vmatpush1.msra.mxu0 0.0
    %321 = vmatprep.subr.mxu0 0.0
    %322 = vmatpush1.msra.mxu0 0.0
    %323 = vmatprep.subr.mxu0 0.0
    %324 = vmatpush1.msra.mxu0 0.0
    %325 = vmatprep.subr.mxu0 0.0
    %326 = vmatpush1.msra.mxu0 0.0
    %327 = vmatprep.subr.mxu0 0.0
    %328 = vmatpush1.msra.mxu0 0.0
    %329 = vmatprep.subr.mxu0 0.0
    %330 = vmatpush1.msra.mxu0 0.0
    %331 = vmatprep.subr.mxu0 0.0
    %332 = vmatpush1.msra.mxu0 0.0
    %333 = vmatprep.subr.mxu0 0.0
    %334 = vmatpush1.msra.mxu0 0.0
    %335 = vmatprep.subr.mxu0 0.0
    %336 = vmatpush1.msra.mxu0 0.0
    %337 = vmatprep.subr.mxu0 0.0
    %338 = vmatpush1.msra.mxu0 0.0
    %339 = vmatprep.subr.mxu0 0.0
    %340 = vmatpush1.msra.mxu0 0.0
    %341 = vmatprep.subr.mxu0 0.0
    %342 = vmatpush1.msra.mxu0 0.0
    %343 = vmatprep.subr.mxu0 0.0
    %344 = vmatpush1.msra.mxu0 0.0
    %345 = vmatprep.subr.mxu0 0.0
    %346 = vmatpush1.msra.mxu0 0.0
    %347 = vmatprep.subr.mxu0 0.0
    %348 = vmatpush1.msra.mxu0 0.0
    %349 = vmatprep.subr.mxu0 0.0
    %350 = vmatpush1.msra.mxu0 0.0
    %351 = vmatprep.subr.mxu0 0.0
    %352 = vmatpush1.msra.mxu0 0.0
    %353 = vmatprep.subr.mxu0 0.0
    %354 = vmatpush1.msra.mxu0 0.0
    %355 = vmatprep.subr.mxu0 0.0
    %356 = vmatpush1.msra.mxu0 0.0
    %357 = vmatprep.subr.mxu0 0.0
    %358 = vmatpush1.msra.mxu0 0.0
    %359 = vmatprep.subr.mxu0 0.0
    %360 = vmatpush1.msra.mxu0 0.0
    %361 = vmatprep.mubr.f32.mxu0 0.0
    %362 = vmatmul.mubr.f32.gmra.mrb[0].mxu0 %v295
    %v363 = vpop.f32.mrb[0].mxu0
    %v364 = vadd.f32 %v291, %v363
    %v365 = vpop.f32.mrb[0].mxu0
    %366 = vdwg.mxu0
    %v367 = vmax.f32 %v364, 0.0
    %v368 = vld [vmem:[#allocation11] sm:$0x3]
    %v369 = vld [vmem:[#allocation13] sm:$0x1]
    %v371 = vlaneseq
    %v372 = vshrl.u32 %v371, 7
    %v373 = vsub.s32 0, %v372
    %v374 = vrot.slane %v369, %v373
    %vm376 = vcmask 15360
    %v378 = vsel %vm376, %v367, 0
    %v381 = vsel %vm280, %v368, 0
    %383 = vmatprep.subr.mxu0 0.0
    %384 = vmatpush1.msra.mxu0 %v381
    %385 = vmatprep.subr.mxu0 0.0
    %386 = vmatpush1.msra.mxu0 0.0
    %387 = vmatprep.subr.mxu0 0.0
    %388 = vmatpush1.msra.mxu0 0.0
    %389 = vmatprep.subr.mxu0 0.0
    %390 = vmatpush1.msra.mxu0 0.0
    %391 = vmatprep.subr.mxu0 0.0
    %392 = vmatpush1.msra.mxu0 0.0
    %393 = vmatprep.subr.mxu0 0.0
    %394 = vmatpush1.msra.mxu0 0.0
    %395 = vmatprep.subr.mxu0 0.0
    %396 = vmatpush1.msra.mxu0 0.0
    %397 = vmatprep.subr.mxu0 0.0
    %398 = vmatpush1.msra.mxu0 0.0
    %399 = vmatprep.subr.mxu0 0.0
    %400 = vmatpush1.msra.mxu0 0.0
    %401 = vmatprep.subr.mxu0 0.0
    %402 = vmatpush1.msra.mxu0 0.0
    %403 = vmatprep.subr.mxu0 0.0
    %404 = vmatpush1.msra.mxu0 0.0
    %405 = vmatprep.subr.mxu0 0.0
    %406 = vmatpush1.msra.mxu0 0.0
    %407 = vmatprep.subr.mxu0 0.0
    %408 = vmatpush1.msra.mxu0 0.0
    %409 = vmatprep.subr.mxu0 0.0
    %410 = vmatpush1.msra.mxu0 0.0
    %411 = vmatprep.subr.mxu0 0.0
    %412 = vmatpush1.msra.mxu0 0.0
    %413 = vmatprep.subr.mxu0 0.0
    %414 = vmatpush1.msra.mxu0 0.0
    %415 = vmatprep.subr.mxu0 0.0
    %416 = vmatpush1.msra.mxu0 0.0
    %417 = vmatprep.subr.mxu0 0.0
    %418 = vmatpush1.msra.mxu0 0.0
    %419 = vmatprep.subr.mxu0 0.0
    %420 = vmatpush1.msra.mxu0 0.0
    %421 = vmatprep.subr.mxu0 0.0
    %422 = vmatpush1.msra.mxu0 0.0
    %423 = vmatprep.subr.mxu0 0.0
    %424 = vmatpush1.msra.mxu0 0.0
    %425 = vmatprep.subr.mxu0 0.0
    %426 = vmatpush1.msra.mxu0 0.0
    %427 = vmatprep.subr.mxu0 0.0
    %428 = vmatpush1.msra.mxu0 0.0
    %429 = vmatprep.subr.mxu0 0.0
    %430 = vmatpush1.msra.mxu0 0.0
    %431 = vmatprep.subr.mxu0 0.0
    %432 = vmatpush1.msra.mxu0 0.0
    %433 = vmatprep.subr.mxu0 0.0
    %434 = vmatpush1.msra.mxu0 0.0
    %435 = vmatprep.subr.mxu0 0.0
    %436 = vmatpush1.msra.mxu0 0.0
    %437 = vmatprep.subr.mxu0 0.0
    %438 = vmatpush1.msra.mxu0 0.0
    %439 = vmatprep.subr.mxu0 0.0
    %440 = vmatpush1.msra.mxu0 0.0
    %441 = vmatprep.subr.mxu0 0.0
    %442 = vmatpush1.msra.mxu0 0.0
    %443 = vmatprep.subr.mxu0 0.0
    %444 = vmatpush1.msra.mxu0 0.0
    %445 = vmatprep.subr.mxu0 0.0
    %446 = vmatpush1.msra.mxu0 0.0
    %447 = vmatprep.mubr.f32.mxu0 0.0
    %448 = vmatmul.mubr.f32.gmra.mrb[0].mxu0 %v378
    %v449 = vpop.f32.mrb[0].mxu0
    %v450 = vadd.f32 %v374, %v449
    %v451 = vpop.f32.mrb[0].mxu0
    %452 = vdwg.mxu0
    %v454 = vrot.slane %v450, 2
    %v456 = vadd.f32 %v450, %v454
    %v457 = vxor.u32 %v456, 2147483648
    %v458 = vmul.f32 %v457, 1.442695
    %v459 = vpow.pop %v458
    %v460 = vadd.f32 %v459, 1.0
    %v461 = vrcp.pop %v460
    %v462 = vmul.f32 1.0, %v461
    %v463 = vlaneseq
    %v464 = vshrl.u32 %v463, 7
    %v465 = vsub.s32 0, %v464
    %v466 = vrot.slane %v462, %v465
    %468 = vbcast.lane.b32.xlu0 %v466, 256
    %v469 = vpop.permute.xlu0 %468
    %s471 = sor.u32 256, 8
    %472 = vbcast.lane.b32.xlu0 %v466, %s471
    %v473 = vpop.permute.xlu0 %472
    %s475 = sor.u32 256, 16
    %476 = vbcast.lane.b32.xlu0 %v466, %s475
    %v477 = vpop.permute.xlu0 %476
    %s479 = sor.u32 256, 24
    %480 = vbcast.lane.b32.xlu0 %v466, %s479
    %v481 = vpop.permute.xlu0 %480
    %v482 = vlaneseq
    %v483 = vshrl.u32 %v482, 7
    %v484 = vsub.s32 1, %v483
    %v485 = vrot.slane %v462, %v484
    %487 = vbcast.lane.b32.xlu0 %v485, 256
    %v488 = vpop.permute.xlu0 %487
    %s490 = sor.u32 256, 8
    %491 = vbcast.lane.b32.xlu0 %v485, %s490
    %v492 = vpop.permute.xlu0 %491
    %s494 = sor.u32 256, 16
    %495 = vbcast.lane.b32.xlu0 %v485, %s494
    %v496 = vpop.permute.xlu0 %495
    %s498 = sor.u32 256, 24
    %499 = vbcast.lane.b32.xlu0 %v485, %s498
    %v500 = vpop.permute.xlu0 %499
    %v501 = vmul.f32 %v101, %v469
    %v502 = vmul.f32 %v102, %v469
    %v503 = vmul.f32 %v103, %v473
    %v504 = vmul.f32 %v104, %v473
    %v505 = vmul.f32 %v105, %v477
    %v506 = vmul.f32 %v106, %v477
    %v507 = vmul.f32 %v107, %v481
    %v508 = vmul.f32 %v108, %v481
    %v509 = vmul.f32 %v109, %v488
    %v510 = vmul.f32 %v110, %v488
    %v511 = vmul.f32 %v111, %v492
    %v512 = vmul.f32 %v112, %v492
    %v513 = vmul.f32 %v113, %v496
    %v514 = vmul.f32 %v114, %v496
    %v515 = vmul.f32 %v115, %v500
    %v516 = vmul.f32 %v116, %v500
    %v517 = vadd.f32 %v501, %v503
    %v518 = vadd.f32 %v517, %v505
    %v519 = vadd.f32 %v518, %v507
    %v520 = vrot.slane %v519, 4
    %v521 = vadd.f32 %v519, %v520
    %v522 = vrot.slane %v521, 2
    %v523 = vadd.f32 %v521, %v522
    %v524 = vrot.slane %v523, 1
    %v525 = vadd.f32 %v523, %v524
    %v526 = vadd.f32 %v502, %v504
    %v527 = vadd.f32 %v526, %v506
    %v528 = vadd.f32 %v527, %v508
    %v529 = vrot.slane %v528, 4
    %v530 = vadd.f32 %v528, %v529
    %v531 = vrot.slane %v530, 2
    %v532 = vadd.f32 %v530, %v531
    %v533 = vrot.slane %v532, 1
    %v534 = vadd.f32 %v532, %v533
    %v535 = vadd.f32 %v509, %v511
    %v536 = vadd.f32 %v535, %v513
    %v537 = vadd.f32 %v536, %v515
    %v538 = vrot.slane %v537, 4
    %v539 = vadd.f32 %v537, %v538
    %v540 = vrot.slane %v539, 2
    %v541 = vadd.f32 %v539, %v540
    %v542 = vrot.slane %v541, 1
    %v543 = vadd.f32 %v541, %v542
    %v544 = vadd.f32 %v510, %v512
    %v545 = vadd.f32 %v544, %v514
    %v546 = vadd.f32 %v545, %v516
    %v547 = vrot.slane %v546, 4
    %v548 = vadd.f32 %v546, %v547
    %v549 = vrot.slane %v548, 2
    %v550 = vadd.f32 %v548, %v549
    %v551 = vrot.slane %v550, 1
    %v552 = vadd.f32 %v550, %v551
    %v553 = vrcp.pop 32.0
    %v554 = vmul.f32 %v525, %v553
    %v555 = vmul.f32 %v534, %v553
    %v556 = vmul.f32 %v543, %v553
    %v557 = vmul.f32 %v552, %v553
    %v558 = vmax.f32 %v501, %v503
    %v559 = vmax.f32 %v558, %v505
    %v560 = vmax.f32 %v559, %v507
    %v561 = vrot.slane %v560, 4
    %v562 = vmax.f32 %v560, %v561
    %v563 = vrot.slane %v562, 2
    %v564 = vmax.f32 %v562, %v563
    %v565 = vrot.slane %v564, 1
    %v566 = vmax.f32 %v564, %v565
    %v567 = vmax.f32 %v502, %v504
    %v568 = vmax.f32 %v567, %v506
    %v569 = vmax.f32 %v568, %v508
    %v570 = vrot.slane %v569, 4
    %v571 = vmax.f32 %v569, %v570
    %v572 = vrot.slane %v571, 2
    %v573 = vmax.f32 %v571, %v572
    %v574 = vrot.slane %v573, 1
    %v575 = vmax.f32 %v573, %v574
    %v576 = vmax.f32 %v509, %v511
    %v577 = vmax.f32 %v576, %v513
    %v578 = vmax.f32 %v577, %v515
    %v579 = vrot.slane %v578, 4
    %v580 = vmax.f32 %v578, %v579
    %v581 = vrot.slane %v580, 2
    %v582 = vmax.f32 %v580, %v581
    %v583 = vrot.slane %v582, 1
    %v584 = vmax.f32 %v582, %v583
    %v585 = vmax.f32 %v510, %v512
    %v586 = vmax.f32 %v585, %v514
    %v587 = vmax.f32 %v586, %v516
    %v588 = vrot.slane %v587, 4
    %v589 = vmax.f32 %v587, %v588
    %v590 = vrot.slane %v589, 2
    %v591 = vmax.f32 %v589, %v590
    %v592 = vrot.slane %v591, 1
    %v593 = vmax.f32 %v591, %v592
    %vm594 = vcmask 174080
    %595 = vst.msk [vmem:[#allocation2] sm:$0x7] %vm594, 0.0
    %596 = vst.msk [vmem:[#allocation2 + $0x18] sm:$0x7] %vm594, 0.0
    %597 = vst.msk [vmem:[#allocation2 + $0x30] sm:$0x7] %vm594, 0.0
    %598 = vst.msk [vmem:[#allocation2 + $0x48] sm:$0x7] %vm594, 0.0
    %599 = vst.msk [vmem:[#allocation2 + $0x13] sm:$0x7] %vm594, 0.0
    %600 = vst.msk [vmem:[#allocation2 + $0x2b] sm:$0x7] %vm594, 0.0
    %601 = vst.msk [vmem:[#allocation2 + $0x43] sm:$0x7] %vm594, 0.0
    %602 = vst.msk [vmem:[#allocation2 + $0x5b] sm:$0x7] %vm594, 0.0
    %vm603 = vcmask 23552
    %604 = vst.msk [vmem:[#allocation2] sm:$0xff] %vm603, 0.0
    %605 = vst.msk [vmem:[#allocation2 + $0x8] sm:$0xff] %vm603, 0.0
    %vm606 = vcmask 21504
    %607 = vst.msk [vmem:[#allocation2 + $0x10] sm:$0x3f] %vm606, 0.0
    %608 = vst.msk [vmem:[#allocation2 + $0x18] sm:$0xff] %vm603, 0.0
    %609 = vst.msk [vmem:[#allocation2 + $0x20] sm:$0xff] %vm603, 0.0
    %610 = vst.msk [vmem:[#allocation2 + $0x28] sm:$0x3f] %vm606, 0.0
    %611 = vst.msk [vmem:[#allocation2 + $0x30] sm:$0xff] %vm603, 0.0
    %612 = vst.msk [vmem:[#allocation2 + $0x38] sm:$0xff] %vm603, 0.0
    %613 = vst.msk [vmem:[#allocation2 + $0x40] sm:$0x3f] %vm606, 0.0
    %614 = vst.msk [vmem:[#allocation2 + $0x48] sm:$0xff] %vm603, 0.0
    %615 = vst.msk [vmem:[#allocation2 + $0x50] sm:$0xff] %vm603, 0.0
    %616 = vst.msk [vmem:[#allocation2 + $0x58] sm:$0x3f] %vm606, 0.0
    %vm617 = vcmask 179352
    %618 = vst.msk [vmem:[#allocation2] sm:$0xff] %vm617, 0.0
    %619 = vst.msk [vmem:[#allocation2 + $0x8] sm:$0xff] %vm617, 0.0
    %vm620 = vcmask 177304
    %621 = vst.msk [vmem:[#allocation2 + $0x10] sm:$0x3f] %vm620, 0.0
    %622 = vst.msk [vmem:[#allocation2 + $0x18] sm:$0xff] %vm617, 0.0
    %623 = vst.msk [vmem:[#allocation2 + $0x20] sm:$0xff] %vm617, 0.0
    %624 = vst.msk [vmem:[#allocation2 + $0x28] sm:$0x3f] %vm620, 0.0
    %625 = vst.msk [vmem:[#allocation2 + $0x30] sm:$0xff] %vm617, 0.0
    %626 = vst.msk [vmem:[#allocation2 + $0x38] sm:$0xff] %vm617, 0.0
    %627 = vst.msk [vmem:[#allocation2 + $0x40] sm:$0x3f] %vm620, 0.0
    %628 = vst.msk [vmem:[#allocation2 + $0x48] sm:$0xff] %vm617, 0.0
    %629 = vst.msk [vmem:[#allocation2 + $0x50] sm:$0xff] %vm617, 0.0
    %630 = vst.msk [vmem:[#allocation2 + $0x58] sm:$0x3f] %vm620, 0.0
    %633 = vrot.lane.b32.xlu0 %v554, 112
    %v634 = vpop.permute.xlu0 %633
    %635 = vrot.lane.b32.xlu0 %v556, 112
    %v636 = vpop.permute.xlu0 %635
    %637 = vrot.lane.b32.xlu0 %v554, 96
    %v638 = vpop.permute.xlu0 %637
    %639 = vrot.lane.b32.xlu0 %v556, 96
    %v640 = vpop.permute.xlu0 %639
    %641 = vrot.lane.b32.xlu0 %v554, 80
    %v642 = vpop.permute.xlu0 %641
    %643 = vrot.lane.b32.xlu0 %v556, 80
    %v644 = vpop.permute.xlu0 %643
    %645 = vrot.lane.b32.xlu0 %v554, 64
    %v646 = vpop.permute.xlu0 %645
    %647 = vrot.lane.b32.xlu0 %v556, 64
    %v648 = vpop.permute.xlu0 %647
    %649 = vrot.lane.b32.xlu0 %v554, 48
    %v650 = vpop.permute.xlu0 %649
    %651 = vrot.lane.b32.xlu0 %v556, 48
    %v652 = vpop.permute.xlu0 %651
    %653 = vrot.lane.b32.xlu0 %v554, 32
    %v654 = vpop.permute.xlu0 %653
    %655 = vrot.lane.b32.xlu0 %v556, 32
    %v656 = vpop.permute.xlu0 %655
    %657 = vrot.lane.b32.xlu0 %v554, 16
    %v658 = vpop.permute.xlu0 %657
    %659 = vrot.lane.b32.xlu0 %v556, 16
    %v660 = vpop.permute.xlu0 %659
    %663 = vrot.lane.b32.xlu0 %v555, 112
    %v664 = vpop.permute.xlu0 %663
    %665 = vrot.lane.b32.xlu0 %v557, 112
    %v666 = vpop.permute.xlu0 %665
    %667 = vrot.lane.b32.xlu0 %v555, 96
    %v668 = vpop.permute.xlu0 %667
    %669 = vrot.lane.b32.xlu0 %v557, 96
    %v670 = vpop.permute.xlu0 %669
    %671 = vrot.lane.b32.xlu0 %v555, 80
    %v672 = vpop.permute.xlu0 %671
    %673 = vrot.lane.b32.xlu0 %v557, 80
    %v674 = vpop.permute.xlu0 %673
    %675 = vrot.lane.b32.xlu0 %v555, 64
    %v676 = vpop.permute.xlu0 %675
    %677 = vrot.lane.b32.xlu0 %v557, 64
    %v678 = vpop.permute.xlu0 %677
    %679 = vrot.lane.b32.xlu0 %v555, 48
    %v680 = vpop.permute.xlu0 %679
    %681 = vrot.lane.b32.xlu0 %v557, 48
    %v682 = vpop.permute.xlu0 %681
    %683 = vrot.lane.b32.xlu0 %v555, 32
    %v684 = vpop.permute.xlu0 %683
    %685 = vrot.lane.b32.xlu0 %v557, 32
    %v686 = vpop.permute.xlu0 %685
    %687 = vrot.lane.b32.xlu0 %v555, 16
    %v688 = vpop.permute.xlu0 %687
    %689 = vrot.lane.b32.xlu0 %v557, 16
    %v690 = vpop.permute.xlu0 %689
    %v691 = vrot.slane %v556, 7
    %v692 = vsel %vm228, %v691, %v554
    %v693 = vrot.slane %v636, 7
    %v694 = vsel %vm228, %v693, %v634
    %v695 = vrot.slane %v640, 7
    %v696 = vsel %vm228, %v695, %v638
    %v697 = vrot.slane %v644, 7
    %v698 = vsel %vm228, %v697, %v642
    %v699 = vrot.slane %v648, 7
    %v700 = vsel %vm228, %v699, %v646
    %v701 = vrot.slane %v652, 7
    %v702 = vsel %vm228, %v701, %v650
    %v703 = vrot.slane %v656, 7
    %v704 = vsel %vm228, %v703, %v654
    %v705 = vrot.slane %v660, 7
    %v706 = vsel %vm228, %v705, %v658
    %v707 = vrot.slane %v557, 7
    %v708 = vsel %vm228, %v707, %v555
    %v709 = vrot.slane %v666, 7
    %v710 = vsel %vm228, %v709, %v664
    %v711 = vrot.slane %v670, 7
    %v712 = vsel %vm228, %v711, %v668
    %v713 = vrot.slane %v674, 7
    %v714 = vsel %vm228, %v713, %v672
    %v715 = vrot.slane %v678, 7
    %v716 = vsel %vm228, %v715, %v676
    %v717 = vrot.slane %v682, 7
    %v718 = vsel %vm228, %v717, %v680
    %v719 = vrot.slane %v686, 7
    %v720 = vsel %vm228, %v719, %v684
    %v721 = vrot.slane %v690, 7
    %v722 = vsel %vm228, %v721, %v688
    %v739 = vcombine.low %v692, %v696
    %v741 = vunpack.c.l.s4 1983009808
    %v742 = vunpack.c.0.s8 %v741
    %v743 = vlaneseq
    %v744 = vshrl.u32 %v743, 7
    %v745 = vsub.s32 %v742, %v744
    %v746 = vrot.slane %v739, %v745
    %v747 = vcombine.low %v694, %v698
    %v749 = vunpack.c.l.s4 1983009808
    %v750 = vunpack.c.0.s8 %v749
    %v751 = vlaneseq
    %v752 = vshrl.u32 %v751, 7
    %v753 = vsub.s32 %v750, %v752
    %v754 = vrot.slane %v747, %v753
    %v755 = vcombine.low %v700, %v704
    %v757 = vunpack.c.l.s4 1983009808
    %v758 = vunpack.c.0.s8 %v757
    %v759 = vlaneseq
    %v760 = vshrl.u32 %v759, 7
    %v761 = vsub.s32 %v758, %v760
    %v762 = vrot.slane %v755, %v761
    %v763 = vcombine.low %v702, %v706
    %v765 = vunpack.c.l.s4 1983009808
    %v766 = vunpack.c.0.s8 %v765
    %v767 = vlaneseq
    %v768 = vshrl.u32 %v767, 7
    %v769 = vsub.s32 %v766, %v768
    %v770 = vrot.slane %v763, %v769
    %v771 = vcombine.low %v746, %v754
    %v773 = vunpack.c.l.s4 1934713408
    %v774 = vunpack.c.0.s8 %v773
    %v775 = vlaneseq
    %v776 = vshrl.u32 %v775, 7
    %v777 = vsub.s32 %v774, %v776
    %v778 = vrot.slane %v771, %v777
    %v779 = vcombine.low %v762, %v770
    %v781 = vunpack.c.l.s4 1934713408
    %v782 = vunpack.c.0.s8 %v781
    %v783 = vlaneseq
    %v784 = vshrl.u32 %v783, 7
    %v785 = vsub.s32 %v782, %v784
    %v786 = vrot.slane %v779, %v785
    %v787 = vcombine.low %v778, %v786
    %v788 = vcombine.high %v778, %v786
    %v789 = vcombine.low %v708, %v712
    %v791 = vunpack.c.l.s4 1983009808
    %v792 = vunpack.c.0.s8 %v791
    %v793 = vlaneseq
    %v794 = vshrl.u32 %v793, 7
    %v795 = vsub.s32 %v792, %v794
    %v796 = vrot.slane %v789, %v795
    %v797 = vcombine.low %v710, %v714
    %v799 = vunpack.c.l.s4 1983009808
    %v800 = vunpack.c.0.s8 %v799
    %v801 = vlaneseq
    %v802 = vshrl.u32 %v801, 7
    %v803 = vsub.s32 %v800, %v802
    %v804 = vrot.slane %v797, %v803
    %v805 = vcombine.low %v716, %v720
    %v807 = vunpack.c.l.s4 1983009808
    %v808 = vunpack.c.0.s8 %v807
    %v809 = vlaneseq
    %v810 = vshrl.u32 %v809, 7
    %v811 = vsub.s32 %v808, %v810
    %v812 = vrot.slane %v805, %v811
    %v813 = vcombine.low %v718, %v722
    %v815 = vunpack.c.l.s4 1983009808
    %v816 = vunpack.c.0.s8 %v815
    %v817 = vlaneseq
    %v818 = vshrl.u32 %v817, 7
    %v819 = vsub.s32 %v816, %v818
    %v820 = vrot.slane %v813, %v819
    %v821 = vcombine.low %v796, %v804
    %v823 = vunpack.c.l.s4 1934713408
    %v824 = vunpack.c.0.s8 %v823
    %v825 = vlaneseq
    %v826 = vshrl.u32 %v825, 7
    %v827 = vsub.s32 %v824, %v826
    %v828 = vrot.slane %v821, %v827
    %v829 = vcombine.low %v812, %v820
    %v831 = vunpack.c.l.s4 1934713408
    %v832 = vunpack.c.0.s8 %v831
    %v833 = vlaneseq
    %v834 = vshrl.u32 %v833, 7
    %v835 = vsub.s32 %v832, %v834
    %v836 = vrot.slane %v829, %v835
    %v837 = vcombine.low %v828, %v836
    %v838 = vcombine.high %v828, %v836
    %843 = vrot.lane.b32.xlu0 %v787, 3
    %v844 = vpop.permute.xlu0 %843
    %845 = vrot.lane.b32.xlu0 %v837, 3
    %v846 = vpop.permute.xlu0 %845
    %847 = vrot.lane.b32.xlu0 %v788, 3
    %v848 = vpop.permute.xlu0 %847
    %849 = vrot.lane.b32.xlu0 %v838, 3
    %v850 = vpop.permute.xlu0 %849
    %vm855 = vcmask 154648
    %856 = vst.msk [vmem:[#allocation2 + $0x3] sm:$0xff] %vm855, %v844
    %857 = vst.msk [vmem:[#allocation2 + $0xb] sm:$0xff] %vm855, %v846
    %858 = vst.msk [vmem:[#allocation2 + $0x1b] sm:$0xff] %vm855, %v848
    %859 = vst.msk [vmem:[#allocation2 + $0x23] sm:$0xff] %vm855, %v850
    %862 = vrot.lane.b32.xlu0 %v566, 112
    %v863 = vpop.permute.xlu0 %862
    %864 = vrot.lane.b32.xlu0 %v584, 112
    %v865 = vpop.permute.xlu0 %864
    %866 = vrot.lane.b32.xlu0 %v566, 96
    %v867 = vpop.permute.xlu0 %866
    %868 = vrot.lane.b32.xlu0 %v584, 96
    %v869 = vpop.permute.xlu0 %868
    %870 = vrot.lane.b32.xlu0 %v566, 80
    %v871 = vpop.permute.xlu0 %870
    %872 = vrot.lane.b32.xlu0 %v584, 80
    %v873 = vpop.permute.xlu0 %872
    %874 = vrot.lane.b32.xlu0 %v566, 64
    %v875 = vpop.permute.xlu0 %874
    %876 = vrot.lane.b32.xlu0 %v584, 64
    %v877 = vpop.permute.xlu0 %876
    %878 = vrot.lane.b32.xlu0 %v566, 48
    %v879 = vpop.permute.xlu0 %878
    %880 = vrot.lane.b32.xlu0 %v584, 48
    %v881 = vpop.permute.xlu0 %880
    %882 = vrot.lane.b32.xlu0 %v566, 32
    %v883 = vpop.permute.xlu0 %882
    %884 = vrot.lane.b32.xlu0 %v584, 32
    %v885 = vpop.permute.xlu0 %884
    %886 = vrot.lane.b32.xlu0 %v566, 16
    %v887 = vpop.permute.xlu0 %886
    %888 = vrot.lane.b32.xlu0 %v584, 16
    %v889 = vpop.permute.xlu0 %888
    %892 = vrot.lane.b32.xlu0 %v575, 112
    %v893 = vpop.permute.xlu0 %892
    %894 = vrot.lane.b32.xlu0 %v593, 112
    %v895 = vpop.permute.xlu0 %894
    %896 = vrot.lane.b32.xlu0 %v575, 96
    %v897 = vpop.permute.xlu0 %896
    %898 = vrot.lane.b32.xlu0 %v593, 96
    %v899 = vpop.permute.xlu0 %898
    %900 = vrot.lane.b32.xlu0 %v575, 80
    %v901 = vpop.permute.xlu0 %900
    %902 = vrot.lane.b32.xlu0 %v593, 80
    %v903 = vpop.permute.xlu0 %902
    %904 = vrot.lane.b32.xlu0 %v575, 64
    %v905 = vpop.permute.xlu0 %904
    %906 = vrot.lane.b32.xlu0 %v593, 64
    %v907 = vpop.permute.xlu0 %906
    %908 = vrot.lane.b32.xlu0 %v575, 48
    %v909 = vpop.permute.xlu0 %908
    %910 = vrot.lane.b32.xlu0 %v593, 48
    %v911 = vpop.permute.xlu0 %910
    %912 = vrot.lane.b32.xlu0 %v575, 32
    %v913 = vpop.permute.xlu0 %912
    %914 = vrot.lane.b32.xlu0 %v593, 32
    %v915 = vpop.permute.xlu0 %914
    %916 = vrot.lane.b32.xlu0 %v575, 16
    %v917 = vpop.permute.xlu0 %916
    %918 = vrot.lane.b32.xlu0 %v593, 16
    %v919 = vpop.permute.xlu0 %918
    %v920 = vrot.slane %v584, 7
    %v921 = vsel %vm228, %v920, %v566
    %v922 = vrot.slane %v865, 7
    %v923 = vsel %vm228, %v922, %v863
    %v924 = vrot.slane %v869, 7
    %v925 = vsel %vm228, %v924, %v867
    %v926 = vrot.slane %v873, 7
    %v927 = vsel %vm228, %v926, %v871
    %v928 = vrot.slane %v877, 7
    %v929 = vsel %vm228, %v928, %v875
    %v930 = vrot.slane %v881, 7
    %v931 = vsel %vm228, %v930, %v879
    %v932 = vrot.slane %v885, 7
    %v933 = vsel %vm228, %v932, %v883
    %v934 = vrot.slane %v889, 7
    %v935 = vsel %vm228, %v934, %v887
    %v936 = vrot.slane %v593, 7
    %v937 = vsel %vm228, %v936, %v575
    %v938 = vrot.slane %v895, 7
    %v939 = vsel %vm228, %v938, %v893
    %v940 = vrot.slane %v899, 7
    %v941 = vsel %vm228, %v940, %v897
    %v942 = vrot.slane %v903, 7
    %v943 = vsel %vm228, %v942, %v901
    %v944 = vrot.slane %v907, 7
    %v945 = vsel %vm228, %v944, %v905
    %v946 = vrot.slane %v911, 7
    %v947 = vsel %vm228, %v946, %v909
    %v948 = vrot.slane %v915, 7
    %v949 = vsel %vm228, %v948, %v913
    %v950 = vrot.slane %v919, 7
    %v951 = vsel %vm228, %v950, %v917
    %v968 = vcombine.low %v921, %v925
    %v970 = vunpack.c.l.s4 1983009808
    %v971 = vunpack.c.0.s8 %v970
    %v972 = vlaneseq
    %v973 = vshrl.u32 %v972, 7
    %v974 = vsub.s32 %v971, %v973
    %v975 = vrot.slane %v968, %v974
    %v976 = vcombine.low %v923, %v927
    %v978 = vunpack.c.l.s4 1983009808
    %v979 = vunpack.c.0.s8 %v978
    %v980 = vlaneseq
    %v981 = vshrl.u32 %v980, 7
    %v982 = vsub.s32 %v979, %v981
    %v983 = vrot.slane %v976, %v982
    %v984 = vcombine.low %v929, %v933
    %v986 = vunpack.c.l.s4 1983009808
    %v987 = vunpack.c.0.s8 %v986
    %v988 = vlaneseq
    %v989 = vshrl.u32 %v988, 7
    %v990 = vsub.s32 %v987, %v989
    %v991 = vrot.slane %v984, %v990
    %v992 = vcombine.low %v931, %v935
    %v994 = vunpack.c.l.s4 1983009808
    %v995 = vunpack.c.0.s8 %v994
    %v996 = vlaneseq
    %v997 = vshrl.u32 %v996, 7
    %v998 = vsub.s32 %v995, %v997
    %v999 = vrot.slane %v992, %v998
    %v1000 = vcombine.low %v975, %v983
    %v1002 = vunpack.c.l.s4 1934713408
    %v1003 = vunpack.c.0.s8 %v1002
    %v1004 = vlaneseq
    %v1005 = vshrl.u32 %v1004, 7
    %v1006 = vsub.s32 %v1003, %v1005
    %v1007 = vrot.slane %v1000, %v1006
    %v1008 = vcombine.low %v991, %v999
    %v1010 = vunpack.c.l.s4 1934713408
    %v1011 = vunpack.c.0.s8 %v1010
    %v1012 = vlaneseq
    %v1013 = vshrl.u32 %v1012, 7
    %v1014 = vsub.s32 %v1011, %v1013
    %v1015 = vrot.slane %v1008, %v1014
    %v1016 = vcombine.low %v1007, %v1015
    %v1017 = vcombine.high %v1007, %v1015
    %v1018 = vcombine.low %v937, %v941
    %v1020 = vunpack.c.l.s4 1983009808
    %v1021 = vunpack.c.0.s8 %v1020
    %v1022 = vlaneseq
    %v1023 = vshrl.u32 %v1022, 7
    %v1024 = vsub.s32 %v1021, %v1023
    %v1025 = vrot.slane %v1018, %v1024
    %v1026 = vcombine.low %v939, %v943
    %v1028 = vunpack.c.l.s4 1983009808
    %v1029 = vunpack.c.0.s8 %v1028
    %v1030 = vlaneseq
    %v1031 = vshrl.u32 %v1030, 7
    %v1032 = vsub.s32 %v1029, %v1031
    %v1033 = vrot.slane %v1026, %v1032
    %v1034 = vcombine.low %v945, %v949
    %v1036 = vunpack.c.l.s4 1983009808
    %v1037 = vunpack.c.0.s8 %v1036
    %v1038 = vlaneseq
    %v1039 = vshrl.u32 %v1038, 7
    %v1040 = vsub.s32 %v1037, %v1039
    %v1041 = vrot.slane %v1034, %v1040
    %v1042 = vcombine.low %v947, %v951
    %v1044 = vunpack.c.l.s4 1983009808
    %v1045 = vunpack.c.0.s8 %v1044
    %v1046 = vlaneseq
    %v1047 = vshrl.u32 %v1046, 7
    %v1048 = vsub.s32 %v1045, %v1047
    %v1049 = vrot.slane %v1042, %v1048
    %v1050 = vcombine.low %v1025, %v1033
    %v1052 = vunpack.c.l.s4 1934713408
    %v1053 = vunpack.c.0.s8 %v1052
    %v1054 = vlaneseq
    %v1055 = vshrl.u32 %v1054, 7
    %v1056 = vsub.s32 %v1053, %v1055
    %v1057 = vrot.slane %v1050, %v1056
    %v1058 = vcombine.low %v1041, %v1049
    %v1060 = vunpack.c.l.s4 1934713408
    %v1061 = vunpack.c.0.s8 %v1060
    %v1062 = vlaneseq
    %v1063 = vshrl.u32 %v1062, 7
    %v1064 = vsub.s32 %v1061, %v1063
    %v1065 = vrot.slane %v1058, %v1064
    %v1066 = vcombine.low %v1057, %v1065
    %v1067 = vcombine.high %v1057, %v1065
    %1072 = vrot.lane.b32.xlu0 %v1016, 3
    %v1073 = vpop.permute.xlu0 %1072
    %1074 = vrot.lane.b32.xlu0 %v1066, 3
    %v1075 = vpop.permute.xlu0 %1074
    %1076 = vrot.lane.b32.xlu0 %v1017, 3
    %v1077 = vpop.permute.xlu0 %1076
    %1078 = vrot.lane.b32.xlu0 %v1067, 3
    %v1079 = vpop.permute.xlu0 %1078
    %s1084 = scalar_lea.vmem [#allocation2], 48
    %1085 = vst.msk [vmem:[%s1084 + $0x3] sm:$0xff] %vm855, %v1073
    %1086 = vst.msk [vmem:[%s1084 + $0xb] sm:$0xff] %vm855, %v1075
    %1087 = vst.msk [vmem:[%s1084 + $0x1b] sm:$0xff] %vm855, %v1077
    %1088 = vst.msk [vmem:[%s1084 + $0x23] sm:$0xff] %vm855, %v1079
    %s1089 = sld [smem:[#allocation3]]
    %v1090 = vstv %s1089
    %v1091 = vadd.f32 %v1090, 0.0
    %s1092 = sld [smem:[#allocation14]]
    %v1093 = vld [vmem:[#allocation2] sm:$0xff]
    %v1094 = vld [vmem:[#allocation2 + $0x8] sm:$0xff]
    %v1095 = vld [vmem:[#allocation2 + $0x18] sm:$0xff]
    %v1096 = vld [vmem:[#allocation2 + $0x20] sm:$0xff]
    %v1097 = vstv %s1092
    %v1098 = vmul.f32 %v1097, %v1093
    %v1099 = vmul.f32 %v1097, %v1094
    %v1100 = vmul.f32 %v1097, %v1095
    %v1101 = vmul.f32 %v1097, %v1096
    %s1102 = sld [smem:[#allocation14 + $0x80]]
    %v1103 = vld [vmem:[%s1084] sm:$0xff]
    %v1104 = vld [vmem:[%s1084 + $0x8] sm:$0xff]
    %v1105 = vld [vmem:[%s1084 + $0x18] sm:$0xff]
    %v1106 = vld [vmem:[%s1084 + $0x20] sm:$0xff]
    %v1107 = vstv %s1102
    %v1108 = vmul.f32 %v1107, %v1103
    %v1109 = vmul.f32 %v1107, %v1104
    %v1110 = vmul.f32 %v1107, %v1105
    %v1111 = vmul.f32 %v1107, %v1106
    %v1112 = vadd.f32 %v1098, %v1108
    %v1113 = vadd.f32 %v1099, %v1109
    %v1114 = vadd.f32 %v1100, %v1110
    %v1115 = vadd.f32 %v1101, %v1111
    %v1116 = vadd.f32 %v1091, %v1112
    %v1117 = vadd.f32 %v1091, %v1113
    %v1118 = vadd.f32 %v1091, %v1114
    %v1119 = vadd.f32 %v1091, %v1115
    %s1120 = sld [smem:[#allocation14 + $0x1]]
    %v1121 = vstv %s1120
    %v1122 = vmul.f32 %v1121, %v1093
    %v1123 = vmul.f32 %v1121, %v1094
    %v1124 = vmul.f32 %v1121, %v1095
    %v1125 = vmul.f32 %v1121, %v1096
    %s1126 = sld [smem:[#allocation14 + $0x81]]
    %v1127 = vstv %s1126
    %v1128 = vmul.f32 %v1127, %v1103
    %v1129 = vmul.f32 %v1127, %v1104
    %v1130 = vmul.f32 %v1127, %v1105
    %v1131 = vmul.f32 %v1127, %v1106
    %v1132 = vadd.f32 %v1122, %v1128
    %v1133 = vadd.f32 %v1123, %v1129
    %v1134 = vadd.f32 %v1124, %v1130
    %v1135 = vadd.f32 %v1125, %v1131
    %1140 = vrot.lane.b32.xlu0 %v1132, 127
    %v1141 = vpop.permute.xlu0 %1140
    %1142 = vrot.lane.b32.xlu0 %v1133, 127
    %v1143 = vpop.permute.xlu0 %1142
    %1144 = vrot.lane.b32.xlu0 %v1134, 127
    %v1145 = vpop.permute.xlu0 %1144
    %1146 = vrot.lane.b32.xlu0 %v1135, 127
    %v1147 = vpop.permute.xlu0 %1146
    %v1152 = vadd.f32 %v1116, %v1141
    %v1153 = vadd.f32 %v1117, %v1143
    %v1154 = vadd.f32 %v1118, %v1145
    %v1155 = vadd.f32 %v1119, %v1147
    %s1156 = sld [smem:[#allocation14 + $0x2]]
    %v1157 = vstv %s1156
    %v1158 = vmul.f32 %v1157, %v1093
    %v1159 = vmul.f32 %v1157, %v1094
    %v1160 = vmul.f32 %v1157, %v1095
    %v1161 = vmul.f32 %v1157, %v1096
    %s1162 = sld [smem:[#allocation14 + $0x82]]
    %v1163 = vstv %s1162
    %v1164 = vmul.f32 %v1163, %v1103
    %v1165 = vmul.f32 %v1163, %v1104
    %v1166 = vmul.f32 %v1163, %v1105
    %v1167 = vmul.f32 %v1163, %v1106
    %v1168 = vadd.f32 %v1158, %v1164
    %v1169 = vadd.f32 %v1159, %v1165
    %v1170 = vadd.f32 %v1160, %v1166
    %v1171 = vadd.f32 %v1161, %v1167
    %1176 = vrot.lane.b32.xlu0 %v1168, 126
    %v1177 = vpop.permute.xlu0 %1176
    %1178 = vrot.lane.b32.xlu0 %v1169, 126
    %v1179 = vpop.permute.xlu0 %1178
    %1180 = vrot.lane.b32.xlu0 %v1170, 126
    %v1181 = vpop.permute.xlu0 %1180
    %1182 = vrot.lane.b32.xlu0 %v1171, 126
    %v1183 = vpop.permute.xlu0 %1182
    %v1188 = vadd.f32 %v1152, %v1177
    %v1189 = vadd.f32 %v1153, %v1179
    %v1190 = vadd.f32 %v1154, %v1181
    %v1191 = vadd.f32 %v1155, %v1183
    %s1192 = sld [smem:[#allocation14 + $0x3]]
    %v1193 = vstv %s1192
    %v1194 = vmul.f32 %v1193, %v1093
    %v1195 = vmul.f32 %v1193, %v1094
    %v1196 = vmul.f32 %v1193, %v1095
    %v1197 = vmul.f32 %v1193, %v1096
    %s1198 = sld [smem:[#allocation14 + $0x83]]
    %v1199 = vstv %s1198
    %v1200 = vmul.f32 %v1199, %v1103
    %v1201 = vmul.f32 %v1199, %v1104
    %v1202 = vmul.f32 %v1199, %v1105
    %v1203 = vmul.f32 %v1199, %v1106
    %v1204 = vadd.f32 %v1194, %v1200
    %v1205 = vadd.f32 %v1195, %v1201
    %v1206 = vadd.f32 %v1196, %v1202
    %v1207 = vadd.f32 %v1197, %v1203
    %1212 = vrot.lane.b32.xlu0 %v1204, 125
    %v1213 = vpop.permute.xlu0 %1212
    %1214 = vrot.lane.b32.xlu0 %v1205, 125
    %v1215 = vpop.permute.xlu0 %1214
    %1216 = vrot.lane.b32.xlu0 %v1206, 125
    %v1217 = vpop.permute.xlu0 %1216
    %1218 = vrot.lane.b32.xlu0 %v1207, 125
    %v1219 = vpop.permute.xlu0 %1218
    %v1224 = vadd.f32 %v1188, %v1213
    %v1225 = vadd.f32 %v1189, %v1215
    %v1226 = vadd.f32 %v1190, %v1217
    %v1227 = vadd.f32 %v1191, %v1219
    %s1228 = sld [smem:[#allocation14 + $0x4]]
    %v1229 = vstv %s1228
    %v1230 = vmul.f32 %v1229, %v1093
    %v1231 = vmul.f32 %v1229, %v1094
    %v1232 = vmul.f32 %v1229, %v1095
    %v1233 = vmul.f32 %v1229, %v1096
    %s1234 = sld [smem:[#allocation14 + $0x84]]
    %v1235 = vstv %s1234
    %v1236 = vmul.f32 %v1235, %v1103
    %v1237 = vmul.f32 %v1235, %v1104
    %v1238 = vmul.f32 %v1235, %v1105
    %v1239 = vmul.f32 %v1235, %v1106
    %v1240 = vadd.f32 %v1230, %v1236
    %v1241 = vadd.f32 %v1231, %v1237
    %v1242 = vadd.f32 %v1232, %v1238
    %v1243 = vadd.f32 %v1233, %v1239
    %1248 = vrot.lane.b32.xlu0 %v1240, 124
    %v1249 = vpop.permute.xlu0 %1248
    %1250 = vrot.lane.b32.xlu0 %v1241, 124
    %v1251 = vpop.permute.xlu0 %1250
    %1252 = vrot.lane.b32.xlu0 %v1242, 124
    %v1253 = vpop.permute.xlu0 %1252
    %1254 = vrot.lane.b32.xlu0 %v1243, 124
    %v1255 = vpop.permute.xlu0 %1254
    %v1260 = vadd.f32 %v1224, %v1249
    %v1261 = vadd.f32 %v1225, %v1251
    %v1262 = vadd.f32 %v1226, %v1253
    %v1263 = vadd.f32 %v1227, %v1255
    %s1264 = sld [smem:[#allocation14 + $0x5]]
    %v1265 = vstv %s1264
    %v1266 = vmul.f32 %v1265, %v1093
    %v1267 = vmul.f32 %v1265, %v1094
    %v1268 = vmul.f32 %v1265, %v1095
    %v1269 = vmul.f32 %v1265, %v1096
    %s1270 = sld [smem:[#allocation14 + $0x85]]
    %v1271 = vstv %s1270
    %v1272 = vmul.f32 %v1271, %v1103
    %v1273 = vmul.f32 %v1271, %v1104
    %v1274 = vmul.f32 %v1271, %v1105
    %v1275 = vmul.f32 %v1271, %v1106
    %v1276 = vadd.f32 %v1266, %v1272
    %v1277 = vadd.f32 %v1267, %v1273
    %v1278 = vadd.f32 %v1268, %v1274
    %v1279 = vadd.f32 %v1269, %v1275
    %1284 = vrot.lane.b32.xlu0 %v1276, 123
    %v1285 = vpop.permute.xlu0 %1284
    %1286 = vrot.lane.b32.xlu0 %v1277, 123
    %v1287 = vpop.permute.xlu0 %1286
    %1288 = vrot.lane.b32.xlu0 %v1278, 123
    %v1289 = vpop.permute.xlu0 %1288
    %1290 = vrot.lane.b32.xlu0 %v1279, 123
    %v1291 = vpop.permute.xlu0 %1290
    %v1296 = vadd.f32 %v1260, %v1285
    %v1297 = vadd.f32 %v1261, %v1287
    %v1298 = vadd.f32 %v1262, %v1289
    %v1299 = vadd.f32 %v1263, %v1291
    %s1300 = sld [smem:[#allocation14 + $0x6]]
    %v1301 = vstv %s1300
    %v1302 = vmul.f32 %v1301, %v1093
    %v1303 = vmul.f32 %v1301, %v1094
    %v1304 = vmul.f32 %v1301, %v1095
    %v1305 = vmul.f32 %v1301, %v1096
    %s1306 = sld [smem:[#allocation14 + $0x86]]
    %v1307 = vstv %s1306
    %v1308 = vmul.f32 %v1307, %v1103
    %v1309 = vmul.f32 %v1307, %v1104
    %v1310 = vmul.f32 %v1307, %v1105
    %v1311 = vmul.f32 %v1307, %v1106
    %v1312 = vadd.f32 %v1302, %v1308
    %v1313 = vadd.f32 %v1303, %v1309
    %v1314 = vadd.f32 %v1304, %v1310
    %v1315 = vadd.f32 %v1305, %v1311
    %1320 = vrot.lane.b32.xlu0 %v1312, 122
    %v1321 = vpop.permute.xlu0 %1320
    %1322 = vrot.lane.b32.xlu0 %v1313, 122
    %v1323 = vpop.permute.xlu0 %1322
    %1324 = vrot.lane.b32.xlu0 %v1314, 122
    %v1325 = vpop.permute.xlu0 %1324
    %1326 = vrot.lane.b32.xlu0 %v1315, 122
    %v1327 = vpop.permute.xlu0 %1326
    %v1332 = vadd.f32 %v1296, %v1321
    %v1333 = vadd.f32 %v1297, %v1323
    %v1334 = vadd.f32 %v1298, %v1325
    %v1335 = vadd.f32 %v1299, %v1327
    %s1336 = sld [smem:[#allocation14 + $0x7]]
    %v1337 = vld [vmem:[#allocation2 + $0x1] sm:$0xff]
    %v1338 = vld [vmem:[#allocation2 + $0x9] sm:$0xff]
    %v1339 = vld [vmem:[#allocation2 + $0x19] sm:$0xff]
    %v1340 = vld [vmem:[#allocation2 + $0x21] sm:$0xff]
    %v1341 = vstv %s1336
    %v1342 = vmul.f32 %v1341, %v1337
    %v1343 = vmul.f32 %v1341, %v1338
    %v1344 = vmul.f32 %v1341, %v1339
    %v1345 = vmul.f32 %v1341, %v1340
    %s1346 = sld [smem:[#allocation14 + $0x87]]
    %v1347 = vld [vmem:[%s1084 + $0x1] sm:$0xff]
    %v1348 = vld [vmem:[%s1084 + $0x9] sm:$0xff]
    %v1349 = vld [vmem:[%s1084 + $0x19] sm:$0xff]
    %v1350 = vld [vmem:[%s1084 + $0x21] sm:$0xff]
    %v1351 = vstv %s1346
    %v1352 = vmul.f32 %v1351, %v1347
    %v1353 = vmul.f32 %v1351, %v1348
    %v1354 = vmul.f32 %v1351, %v1349
    %v1355 = vmul.f32 %v1351, %v1350
    %v1356 = vadd.f32 %v1342, %v1352
    %v1357 = vadd.f32 %v1343, %v1353
    %v1358 = vadd.f32 %v1344, %v1354
    %v1359 = vadd.f32 %v1345, %v1355
    %v1360 = vadd.f32 %v1332, %v1356
    %v1361 = vadd.f32 %v1333, %v1357
    %v1362 = vadd.f32 %v1334, %v1358
    %v1363 = vadd.f32 %v1335, %v1359
    %s1364 = sld [smem:[#allocation14 + $0x8]]
    %v1365 = vstv %s1364
    %v1366 = vmul.f32 %v1365, %v1337
    %v1367 = vmul.f32 %v1365, %v1338
    %v1368 = vmul.f32 %v1365, %v1339
    %v1369 = vmul.f32 %v1365, %v1340
    %s1370 = sld [smem:[#allocation14 + $0x88]]
    %v1371 = vstv %s1370
    %v1372 = vmul.f32 %v1371, %v1347
    %v1373 = vmul.f32 %v1371, %v1348
    %v1374 = vmul.f32 %v1371, %v1349
    %v1375 = vmul.f32 %v1371, %v1350
    %v1376 = vadd.f32 %v1366, %v1372
    %v1377 = vadd.f32 %v1367, %v1373
    %v1378 = vadd.f32 %v1368, %v1374
    %v1379 = vadd.f32 %v1369, %v1375
    %1384 = vrot.lane.b32.xlu0 %v1376, 127
    %v1385 = vpop.permute.xlu0 %1384
    %1386 = vrot.lane.b32.xlu0 %v1377, 127
    %v1387 = vpop.permute.xlu0 %1386
    %1388 = vrot.lane.b32.xlu0 %v1378, 127
    %v1389 = vpop.permute.xlu0 %1388
    %1390 = vrot.lane.b32.xlu0 %v1379, 127
    %v1391 = vpop.permute.xlu0 %1390
    %v1396 = vadd.f32 %v1360, %v1385
    %v1397 = vadd.f32 %v1361, %v1387
    %v1398 = vadd.f32 %v1362, %v1389
    %v1399 = vadd.f32 %v1363, %v1391
    %s1400 = sld [smem:[#allocation14 + $0x9]]
    %v1401 = vstv %s1400
    %v1402 = vmul.f32 %v1401, %v1337
    %v1403 = vmul.f32 %v1401, %v1338
    %v1404 = vmul.f32 %v1401, %v1339
    %v1405 = vmul.f32 %v1401, %v1340
    %s1406 = sld [smem:[#allocation14 + $0x89]]
    %v1407 = vstv %s1406
    %v1408 = vmul.f32 %v1407, %v1347
    %v1409 = vmul.f32 %v1407, %v1348
    %v1410 = vmul.f32 %v1407, %v1349
    %v1411 = vmul.f32 %v1407, %v1350
    %v1412 = vadd.f32 %v1402, %v1408
    %v1413 = vadd.f32 %v1403, %v1409
    %v1414 = vadd.f32 %v1404, %v1410
    %v1415 = vadd.f32 %v1405, %v1411
    %1420 = vrot.lane.b32.xlu0 %v1412, 126
    %v1421 = vpop.permute.xlu0 %1420
    %1422 = vrot.lane.b32.xlu0 %v1413, 126
    %v1423 = vpop.permute.xlu0 %1422
    %1424 = vrot.lane.b32.xlu0 %v1414, 126
    %v1425 = vpop.permute.xlu0 %1424
    %1426 = vrot.lane.b32.xlu0 %v1415, 126
    %v1427 = vpop.permute.xlu0 %1426
    %v1432 = vadd.f32 %v1396, %v1421
    %v1433 = vadd.f32 %v1397, %v1423
    %v1434 = vadd.f32 %v1398, %v1425
    %v1435 = vadd.f32 %v1399, %v1427
    %s1436 = sld [smem:[#allocation14 + $0xa]]
    %v1437 = vstv %s1436
    %v1438 = vmul.f32 %v1437, %v1337
    %v1439 = vmul.f32 %v1437, %v1338
    %v1440 = vmul.f32 %v1437, %v1339
    %v1441 = vmul.f32 %v1437, %v1340
    %s1442 = sld [smem:[#allocation14 + $0x8a]]
    %v1443 = vstv %s1442
    %v1444 = vmul.f32 %v1443, %v1347
    %v1445 = vmul.f32 %v1443, %v1348
    %v1446 = vmul.f32 %v1443, %v1349
    %v1447 = vmul.f32 %v1443, %v1350
    %v1448 = vadd.f32 %v1438, %v1444
    %v1449 = vadd.f32 %v1439, %v1445
    %v1450 = vadd.f32 %v1440, %v1446
    %v1451 = vadd.f32 %v1441, %v1447
    %1456 = vrot.lane.b32.xlu0 %v1448, 125
    %v1457 = vpop.permute.xlu0 %1456
    %1458 = vrot.lane.b32.xlu0 %v1449, 125
    %v1459 = vpop.permute.xlu0 %1458
    %1460 = vrot.lane.b32.xlu0 %v1450, 125
    %v1461 = vpop.permute.xlu0 %1460
    %1462 = vrot.lane.b32.xlu0 %v1451, 125
    %v1463 = vpop.permute.xlu0 %1462
    %v1468 = vadd.f32 %v1432, %v1457
    %v1469 = vadd.f32 %v1433, %v1459
    %v1470 = vadd.f32 %v1434, %v1461
    %v1471 = vadd.f32 %v1435, %v1463
    %s1472 = sld [smem:[#allocation14 + $0xb]]
    %v1473 = vstv %s1472
    %v1474 = vmul.f32 %v1473, %v1337
    %v1475 = vmul.f32 %v1473, %v1338
    %v1476 = vmul.f32 %v1473, %v1339
    %v1477 = vmul.f32 %v1473, %v1340
    %s1478 = sld [smem:[#allocation14 + $0x8b]]
    %v1479 = vstv %s1478
    %v1480 = vmul.f32 %v1479, %v1347
    %v1481 = vmul.f32 %v1479, %v1348
    %v1482 = vmul.f32 %v1479, %v1349
    %v1483 = vmul.f32 %v1479, %v1350
    %v1484 = vadd.f32 %v1474, %v1480
    %v1485 = vadd.f32 %v1475, %v1481
    %v1486 = vadd.f32 %v1476, %v1482
    %v1487 = vadd.f32 %v1477, %v1483
    %1492 = vrot.lane.b32.xlu0 %v1484, 124
    %v1493 = vpop.permute.xlu0 %1492
    %1494 = vrot.lane.b32.xlu0 %v1485, 124
    %v1495 = vpop.permute.xlu0 %1494
    %1496 = vrot.lane.b32.xlu0 %v1486, 124
    %v1497 = vpop.permute.xlu0 %1496
    %1498 = vrot.lane.b32.xlu0 %v1487, 124
    %v1499 = vpop.permute.xlu0 %1498
    %v1504 = vadd.f32 %v1468, %v1493
    %v1505 = vadd.f32 %v1469, %v1495
    %v1506 = vadd.f32 %v1470, %v1497
    %v1507 = vadd.f32 %v1471, %v1499
    %s1508 = sld [smem:[#allocation14 + $0xc]]
    %v1509 = vstv %s1508
    %v1510 = vmul.f32 %v1509, %v1337
    %v1511 = vmul.f32 %v1509, %v1338
    %v1512 = vmul.f32 %v1509, %v1339
    %v1513 = vmul.f32 %v1509, %v1340
    %s1514 = sld [smem:[#allocation14 + $0x8c]]
    %v1515 = vstv %s1514
    %v1516 = vmul.f32 %v1515, %v1347
    %v1517 = vmul.f32 %v1515, %v1348
    %v1518 = vmul.f32 %v1515, %v1349
    %v1519 = vmul.f32 %v1515, %v1350
    %v1520 = vadd.f32 %v1510, %v1516
    %v1521 = vadd.f32 %v1511, %v1517
    %v1522 = vadd.f32 %v1512, %v1518
    %v1523 = vadd.f32 %v1513, %v1519
    %1528 = vrot.lane.b32.xlu0 %v1520, 123
    %v1529 = vpop.permute.xlu0 %1528
    %1530 = vrot.lane.b32.xlu0 %v1521, 123
    %v1531 = vpop.permute.xlu0 %1530
    %1532 = vrot.lane.b32.xlu0 %v1522, 123
    %v1533 = vpop.permute.xlu0 %1532
    %1534 = vrot.lane.b32.xlu0 %v1523, 123
    %v1535 = vpop.permute.xlu0 %1534
    %v1540 = vadd.f32 %v1504, %v1529
    %v1541 = vadd.f32 %v1505, %v1531
    %v1542 = vadd.f32 %v1506, %v1533
    %v1543 = vadd.f32 %v1507, %v1535
    %s1544 = sld [smem:[#allocation14 + $0xd]]
    %v1545 = vstv %s1544
    %v1546 = vmul.f32 %v1545, %v1337
    %v1547 = vmul.f32 %v1545, %v1338
    %v1548 = vmul.f32 %v1545, %v1339
    %v1549 = vmul.f32 %v1545, %v1340
    %s1550 = sld [smem:[#allocation14 + $0x8d]]
    %v1551 = vstv %s1550
    %v1552 = vmul.f32 %v1551, %v1347
    %v1553 = vmul.f32 %v1551, %v1348
    %v1554 = vmul.f32 %v1551, %v1349
    %v1555 = vmul.f32 %v1551, %v1350
    %v1556 = vadd.f32 %v1546, %v1552
    %v1557 = vadd.f32 %v1547, %v1553
    %v1558 = vadd.f32 %v1548, %v1554
    %v1559 = vadd.f32 %v1549, %v1555
    %1564 = vrot.lane.b32.xlu0 %v1556, 122
    %v1565 = vpop.permute.xlu0 %1564
    %1566 = vrot.lane.b32.xlu0 %v1557, 122
    %v1567 = vpop.permute.xlu0 %1566
    %1568 = vrot.lane.b32.xlu0 %v1558, 122
    %v1569 = vpop.permute.xlu0 %1568
    %1570 = vrot.lane.b32.xlu0 %v1559, 122
    %v1571 = vpop.permute.xlu0 %1570
    %v1576 = vadd.f32 %v1540, %v1565
    %v1577 = vadd.f32 %v1541, %v1567
    %v1578 = vadd.f32 %v1542, %v1569
    %v1579 = vadd.f32 %v1543, %v1571
    %s1580 = sld [smem:[#allocation14 + $0xe]]
    %v1581 = vld [vmem:[#allocation2 + $0x2] sm:$0xff]
    %v1582 = vld [vmem:[#allocation2 + $0xa] sm:$0xff]
    %v1583 = vld [vmem:[#allocation2 + $0x1a] sm:$0xff]
    %v1584 = vld [vmem:[#allocation2 + $0x22] sm:$0xff]
    %v1585 = vstv %s1580
    %v1586 = vmul.f32 %v1585, %v1581
    %v1587 = vmul.f32 %v1585, %v1582
    %v1588 = vmul.f32 %v1585, %v1583
    %v1589 = vmul.f32 %v1585, %v1584
    %s1590 = sld [smem:[#allocation14 + $0x8e]]
    %v1591 = vld [vmem:[%s1084 + $0x2] sm:$0xff]
    %v1592 = vld [vmem:[%s1084 + $0xa] sm:$0xff]
    %v1593 = vld [vmem:[%s1084 + $0x1a] sm:$0xff]
    %v1594 = vld [vmem:[%s1084 + $0x22] sm:$0xff]
    %v1595 = vstv %s1590
    %v1596 = vmul.f32 %v1595, %v1591
    %v1597 = vmul.f32 %v1595, %v1592
    %v1598 = vmul.f32 %v1595, %v1593
    %v1599 = vmul.f32 %v1595, %v1594
    %v1600 = vadd.f32 %v1586, %v1596
    %v1601 = vadd.f32 %v1587, %v1597
    %v1602 = vadd.f32 %v1588, %v1598
    %v1603 = vadd.f32 %v1589, %v1599
    %v1604 = vadd.f32 %v1576, %v1600
    %v1605 = vadd.f32 %v1577, %v1601
    %v1606 = vadd.f32 %v1578, %v1602
    %v1607 = vadd.f32 %v1579, %v1603
    %s1608 = sld [smem:[#allocation14 + $0xf]]
    %v1609 = vstv %s1608
    %v1610 = vmul.f32 %v1609, %v1581
    %v1611 = vmul.f32 %v1609, %v1582
    %v1612 = vmul.f32 %v1609, %v1583
    %v1613 = vmul.f32 %v1609, %v1584
    %s1614 = sld [smem:[#allocation14 + $0x8f]]
    %v1615 = vstv %s1614
    %v1616 = vmul.f32 %v1615, %v1591
    %v1617 = vmul.f32 %v1615, %v1592
    %v1618 = vmul.f32 %v1615, %v1593
    %v1619 = vmul.f32 %v1615, %v1594
    %v1620 = vadd.f32 %v1610, %v1616
    %v1621 = vadd.f32 %v1611, %v1617
    %v1622 = vadd.f32 %v1612, %v1618
    %v1623 = vadd.f32 %v1613, %v1619
    %1628 = vrot.lane.b32.xlu0 %v1620, 127
    %v1629 = vpop.permute.xlu0 %1628
    %1630 = vrot.lane.b32.xlu0 %v1621, 127
    %v1631 = vpop.permute.xlu0 %1630
    %1632 = vrot.lane.b32.xlu0 %v1622, 127
    %v1633 = vpop.permute.xlu0 %1632
    %1634 = vrot.lane.b32.xlu0 %v1623, 127
    %v1635 = vpop.permute.xlu0 %1634
    %v1640 = vadd.f32 %v1604, %v1629
    %v1641 = vadd.f32 %v1605, %v1631
    %v1642 = vadd.f32 %v1606, %v1633
    %v1643 = vadd.f32 %v1607, %v1635
    %s1644 = sld [smem:[#allocation14 + $0x10]]
    %v1645 = vstv %s1644
    %v1646 = vmul.f32 %v1645, %v1581
    %v1647 = vmul.f32 %v1645, %v1582
    %v1648 = vmul.f32 %v1645, %v1583
    %v1649 = vmul.f32 %v1645, %v1584
    %s1650 = sld [smem:[#allocation14 + $0x90]]
    %v1651 = vstv %s1650
    %v1652 = vmul.f32 %v1651, %v1591
    %v1653 = vmul.f32 %v1651, %v1592
    %v1654 = vmul.f32 %v1651, %v1593
    %v1655 = vmul.f32 %v1651, %v1594
    %v1656 = vadd.f32 %v1646, %v1652
    %v1657 = vadd.f32 %v1647, %v1653
    %v1658 = vadd.f32 %v1648, %v1654
    %v1659 = vadd.f32 %v1649, %v1655
    %1664 = vrot.lane.b32.xlu0 %v1656, 126
    %v1665 = vpop.permute.xlu0 %1664
    %1666 = vrot.lane.b32.xlu0 %v1657, 126
    %v1667 = vpop.permute.xlu0 %1666
    %1668 = vrot.lane.b32.xlu0 %v1658, 126
    %v1669 = vpop.permute.xlu0 %1668
    %1670 = vrot.lane.b32.xlu0 %v1659, 126
    %v1671 = vpop.permute.xlu0 %1670
    %v1676 = vadd.f32 %v1640, %v1665
    %v1677 = vadd.f32 %v1641, %v1667
    %v1678 = vadd.f32 %v1642, %v1669
    %v1679 = vadd.f32 %v1643, %v1671
    %s1680 = sld [smem:[#allocation14 + $0x11]]
    %v1681 = vstv %s1680
    %v1682 = vmul.f32 %v1681, %v1581
    %v1683 = vmul.f32 %v1681, %v1582
    %v1684 = vmul.f32 %v1681, %v1583
    %v1685 = vmul.f32 %v1681, %v1584
    %s1686 = sld [smem:[#allocation14 + $0x91]]
    %v1687 = vstv %s1686
    %v1688 = vmul.f32 %v1687, %v1591
    %v1689 = vmul.f32 %v1687, %v1592
    %v1690 = vmul.f32 %v1687, %v1593
    %v1691 = vmul.f32 %v1687, %v1594
    %v1692 = vadd.f32 %v1682, %v1688
    %v1693 = vadd.f32 %v1683, %v1689
    %v1694 = vadd.f32 %v1684, %v1690
    %v1695 = vadd.f32 %v1685, %v1691
    %1700 = vrot.lane.b32.xlu0 %v1692, 125
    %v1701 = vpop.permute.xlu0 %1700
    %1702 = vrot.lane.b32.xlu0 %v1693, 125
    %v1703 = vpop.permute.xlu0 %1702
    %1704 = vrot.lane.b32.xlu0 %v1694, 125
    %v1705 = vpop.permute.xlu0 %1704
    %1706 = vrot.lane.b32.xlu0 %v1695, 125
    %v1707 = vpop.permute.xlu0 %1706
    %v1712 = vadd.f32 %v1676, %v1701
    %v1713 = vadd.f32 %v1677, %v1703
    %v1714 = vadd.f32 %v1678, %v1705
    %v1715 = vadd.f32 %v1679, %v1707
    %s1716 = sld [smem:[#allocation14 + $0x12]]
    %v1717 = vstv %s1716
    %v1718 = vmul.f32 %v1717, %v1581
    %v1719 = vmul.f32 %v1717, %v1582
    %v1720 = vmul.f32 %v1717, %v1583
    %v1721 = vmul.f32 %v1717, %v1584
    %s1722 = sld [smem:[#allocation14 + $0x92]]
    %v1723 = vstv %s1722
    %v1724 = vmul.f32 %v1723, %v1591
    %v1725 = vmul.f32 %v1723, %v1592
    %v1726 = vmul.f32 %v1723, %v1593
    %v1727 = vmul.f32 %v1723, %v1594
    %v1728 = vadd.f32 %v1718, %v1724
    %v1729 = vadd.f32 %v1719, %v1725
    %v1730 = vadd.f32 %v1720, %v1726
    %v1731 = vadd.f32 %v1721, %v1727
    %1736 = vrot.lane.b32.xlu0 %v1728, 124
    %v1737 = vpop.permute.xlu0 %1736
    %1738 = vrot.lane.b32.xlu0 %v1729, 124
    %v1739 = vpop.permute.xlu0 %1738
    %1740 = vrot.lane.b32.xlu0 %v1730, 124
    %v1741 = vpop.permute.xlu0 %1740
    %1742 = vrot.lane.b32.xlu0 %v1731, 124
    %v1743 = vpop.permute.xlu0 %1742
    %v1748 = vadd.f32 %v1712, %v1737
    %v1749 = vadd.f32 %v1713, %v1739
    %v1750 = vadd.f32 %v1714, %v1741
    %v1751 = vadd.f32 %v1715, %v1743
    %s1752 = sld [smem:[#allocation14 + $0x13]]
    %v1753 = vstv %s1752
    %v1754 = vmul.f32 %v1753, %v1581
    %v1755 = vmul.f32 %v1753, %v1582
    %v1756 = vmul.f32 %v1753, %v1583
    %v1757 = vmul.f32 %v1753, %v1584
    %s1758 = sld [smem:[#allocation14 + $0x93]]
    %v1759 = vstv %s1758
    %v1760 = vmul.f32 %v1759, %v1591
    %v1761 = vmul.f32 %v1759, %v1592
    %v1762 = vmul.f32 %v1759, %v1593
    %v1763 = vmul.f32 %v1759, %v1594
    %v1764 = vadd.f32 %v1754, %v1760
    %v1765 = vadd.f32 %v1755, %v1761
    %v1766 = vadd.f32 %v1756, %v1762
    %v1767 = vadd.f32 %v1757, %v1763
    %1772 = vrot.lane.b32.xlu0 %v1764, 123
    %v1773 = vpop.permute.xlu0 %1772
    %1774 = vrot.lane.b32.xlu0 %v1765, 123
    %v1775 = vpop.permute.xlu0 %1774
    %1776 = vrot.lane.b32.xlu0 %v1766, 123
    %v1777 = vpop.permute.xlu0 %1776
    %1778 = vrot.lane.b32.xlu0 %v1767, 123
    %v1779 = vpop.permute.xlu0 %1778
    %v1784 = vadd.f32 %v1748, %v1773
    %v1785 = vadd.f32 %v1749, %v1775
    %v1786 = vadd.f32 %v1750, %v1777
    %v1787 = vadd.f32 %v1751, %v1779
    %s1788 = sld [smem:[#allocation14 + $0x14]]
    %v1789 = vstv %s1788
    %v1790 = vmul.f32 %v1789, %v1581
    %v1791 = vmul.f32 %v1789, %v1582
    %v1792 = vmul.f32 %v1789, %v1583
    %v1793 = vmul.f32 %v1789, %v1584
    %s1794 = sld [smem:[#allocation14 + $0x94]]
    %v1795 = vstv %s1794
    %v1796 = vmul.f32 %v1795, %v1591
    %v1797 = vmul.f32 %v1795, %v1592
    %v1798 = vmul.f32 %v1795, %v1593
    %v1799 = vmul.f32 %v1795, %v1594
    %v1800 = vadd.f32 %v1790, %v1796
    %v1801 = vadd.f32 %v1791, %v1797
    %v1802 = vadd.f32 %v1792, %v1798
    %v1803 = vadd.f32 %v1793, %v1799
    %1808 = vrot.lane.b32.xlu0 %v1800, 122
    %v1809 = vpop.permute.xlu0 %1808
    %1810 = vrot.lane.b32.xlu0 %v1801, 122
    %v1811 = vpop.permute.xlu0 %1810
    %1812 = vrot.lane.b32.xlu0 %v1802, 122
    %v1813 = vpop.permute.xlu0 %1812
    %1814 = vrot.lane.b32.xlu0 %v1803, 122
    %v1815 = vpop.permute.xlu0 %1814
    %v1820 = vadd.f32 %v1784, %v1809
    %v1821 = vadd.f32 %v1785, %v1811
    %v1822 = vadd.f32 %v1786, %v1813
    %v1823 = vadd.f32 %v1787, %v1815
    %s1824 = sld [smem:[#allocation14 + $0x15]]
    %v1825 = vld [vmem:[#allocation2 + $0x3] sm:$0xff]
    %v1826 = vld [vmem:[#allocation2 + $0xb] sm:$0xff]
    %v1827 = vld [vmem:[#allocation2 + $0x1b] sm:$0xff]
    %v1828 = vld [vmem:[#allocation2 + $0x23] sm:$0xff]
    %v1829 = vstv %s1824
    %v1830 = vmul.f32 %v1829, %v1825
    %v1831 = vmul.f32 %v1829, %v1826
    %v1832 = vmul.f32 %v1829, %v1827
    %v1833 = vmul.f32 %v1829, %v1828
    %s1834 = sld [smem:[#allocation14 + $0x95]]
    %v1835 = vld [vmem:[%s1084 + $0x3] sm:$0xff]
    %v1836 = vld [vmem:[%s1084 + $0xb] sm:$0xff]
    %v1837 = vld [vmem:[%s1084 + $0x1b] sm:$0xff]
    %v1838 = vld [vmem:[%s1084 + $0x23] sm:$0xff]
    %v1839 = vstv %s1834
    %v1840 = vmul.f32 %v1839, %v1835
    %v1841 = vmul.f32 %v1839, %v1836
    %v1842 = vmul.f32 %v1839, %v1837
    %v1843 = vmul.f32 %v1839, %v1838
    %v1844 = vadd.f32 %v1830, %v1840
    %v1845 = vadd.f32 %v1831, %v1841
    %v1846 = vadd.f32 %v1832, %v1842
    %v1847 = vadd.f32 %v1833, %v1843
    %v1848 = vadd.f32 %v1820, %v1844
    %v1849 = vadd.f32 %v1821, %v1845
    %v1850 = vadd.f32 %v1822, %v1846
    %v1851 = vadd.f32 %v1823, %v1847
    %s1852 = sld [smem:[#allocation14 + $0x16]]
    %v1853 = vstv %s1852
    %v1854 = vmul.f32 %v1853, %v1825
    %v1855 = vmul.f32 %v1853, %v1826
    %v1856 = vmul.f32 %v1853, %v1827
    %v1857 = vmul.f32 %v1853, %v1828
    %s1858 = sld [smem:[#allocation14 + $0x96]]
    %v1859 = vstv %s1858
    %v1860 = vmul.f32 %v1859, %v1835
    %v1861 = vmul.f32 %v1859, %v1836
    %v1862 = vmul.f32 %v1859, %v1837
    %v1863 = vmul.f32 %v1859, %v1838
    %v1864 = vadd.f32 %v1854, %v1860
    %v1865 = vadd.f32 %v1855, %v1861
    %v1866 = vadd.f32 %v1856, %v1862
    %v1867 = vadd.f32 %v1857, %v1863
    %1872 = vrot.lane.b32.xlu0 %v1864, 127
    %v1873 = vpop.permute.xlu0 %1872
    %1874 = vrot.lane.b32.xlu0 %v1865, 127
    %v1875 = vpop.permute.xlu0 %1874
    %1876 = vrot.lane.b32.xlu0 %v1866, 127
    %v1877 = vpop.permute.xlu0 %1876
    %1878 = vrot.lane.b32.xlu0 %v1867, 127
    %v1879 = vpop.permute.xlu0 %1878
    %v1884 = vadd.f32 %v1848, %v1873
    %v1885 = vadd.f32 %v1849, %v1875
    %v1886 = vadd.f32 %v1850, %v1877
    %v1887 = vadd.f32 %v1851, %v1879
    %s1888 = sld [smem:[#allocation14 + $0x17]]
    %v1889 = vstv %s1888
    %v1890 = vmul.f32 %v1889, %v1825
    %v1891 = vmul.f32 %v1889, %v1826
    %v1892 = vmul.f32 %v1889, %v1827
    %v1893 = vmul.f32 %v1889, %v1828
    %s1894 = sld [smem:[#allocation14 + $0x97]]
    %v1895 = vstv %s1894
    %v1896 = vmul.f32 %v1895, %v1835
    %v1897 = vmul.f32 %v1895, %v1836
    %v1898 = vmul.f32 %v1895, %v1837
    %v1899 = vmul.f32 %v1895, %v1838
    %v1900 = vadd.f32 %v1890, %v1896
    %v1901 = vadd.f32 %v1891, %v1897
    %v1902 = vadd.f32 %v1892, %v1898
    %v1903 = vadd.f32 %v1893, %v1899
    %1908 = vrot.lane.b32.xlu0 %v1900, 126
    %v1909 = vpop.permute.xlu0 %1908
    %1910 = vrot.lane.b32.xlu0 %v1901, 126
    %v1911 = vpop.permute.xlu0 %1910
    %1912 = vrot.lane.b32.xlu0 %v1902, 126
    %v1913 = vpop.permute.xlu0 %1912
    %1914 = vrot.lane.b32.xlu0 %v1903, 126
    %v1915 = vpop.permute.xlu0 %1914
    %v1920 = vadd.f32 %v1884, %v1909
    %v1921 = vadd.f32 %v1885, %v1911
    %v1922 = vadd.f32 %v1886, %v1913
    %v1923 = vadd.f32 %v1887, %v1915
    %s1924 = sld [smem:[#allocation14 + $0x18]]
    %v1925 = vstv %s1924
    %v1926 = vmul.f32 %v1925, %v1825
    %v1927 = vmul.f32 %v1925, %v1826
    %v1928 = vmul.f32 %v1925, %v1827
    %v1929 = vmul.f32 %v1925, %v1828
    %s1930 = sld [smem:[#allocation14 + $0x98]]
    %v1931 = vstv %s1930
    %v1932 = vmul.f32 %v1931, %v1835
    %v1933 = vmul.f32 %v1931, %v1836
    %v1934 = vmul.f32 %v1931, %v1837
    %v1935 = vmul.f32 %v1931, %v1838
    %v1936 = vadd.f32 %v1926, %v1932
    %v1937 = vadd.f32 %v1927, %v1933
    %v1938 = vadd.f32 %v1928, %v1934
    %v1939 = vadd.f32 %v1929, %v1935
    %1944 = vrot.lane.b32.xlu0 %v1936, 125
    %v1945 = vpop.permute.xlu0 %1944
    %1946 = vrot.lane.b32.xlu0 %v1937, 125
    %v1947 = vpop.permute.xlu0 %1946
    %1948 = vrot.lane.b32.xlu0 %v1938, 125
    %v1949 = vpop.permute.xlu0 %1948
    %1950 = vrot.lane.b32.xlu0 %v1939, 125
    %v1951 = vpop.permute.xlu0 %1950
    %v1956 = vadd.f32 %v1920, %v1945
    %v1957 = vadd.f32 %v1921, %v1947
    %v1958 = vadd.f32 %v1922, %v1949
    %v1959 = vadd.f32 %v1923, %v1951
    %s1960 = sld [smem:[#allocation14 + $0x19]]
    %v1961 = vstv %s1960
    %v1962 = vmul.f32 %v1961, %v1825
    %v1963 = vmul.f32 %v1961, %v1826
    %v1964 = vmul.f32 %v1961, %v1827
    %v1965 = vmul.f32 %v1961, %v1828
    %s1966 = sld [smem:[#allocation14 + $0x99]]
    %v1967 = vstv %s1966
    %v1968 = vmul.f32 %v1967, %v1835
    %v1969 = vmul.f32 %v1967, %v1836
    %v1970 = vmul.f32 %v1967, %v1837
    %v1971 = vmul.f32 %v1967, %v1838
    %v1972 = vadd.f32 %v1962, %v1968
    %v1973 = vadd.f32 %v1963, %v1969
    %v1974 = vadd.f32 %v1964, %v1970
    %v1975 = vadd.f32 %v1965, %v1971
    %1980 = vrot.lane.b32.xlu0 %v1972, 124
    %v1981 = vpop.permute.xlu0 %1980
    %1982 = vrot.lane.b32.xlu0 %v1973, 124
    %v1983 = vpop.permute.xlu0 %1982
    %1984 = vrot.lane.b32.xlu0 %v1974, 124
    %v1985 = vpop.permute.xlu0 %1984
    %1986 = vrot.lane.b32.xlu0 %v1975, 124
    %v1987 = vpop.permute.xlu0 %1986
    %v1992 = vadd.f32 %v1956, %v1981
    %v1993 = vadd.f32 %v1957, %v1983
    %v1994 = vadd.f32 %v1958, %v1985
    %v1995 = vadd.f32 %v1959, %v1987
    %s1996 = sld [smem:[#allocation14 + $0x1a]]
    %v1997 = vstv %s1996
    %v1998 = vmul.f32 %v1997, %v1825
    %v1999 = vmul.f32 %v1997, %v1826
    %v2000 = vmul.f32 %v1997, %v1827
    %v2001 = vmul.f32 %v1997, %v1828
    %s2002 = sld [smem:[#allocation14 + $0x9a]]
    %v2003 = vstv %s2002
    %v2004 = vmul.f32 %v2003, %v1835
    %v2005 = vmul.f32 %v2003, %v1836
    %v2006 = vmul.f32 %v2003, %v1837
    %v2007 = vmul.f32 %v2003, %v1838
    %v2008 = vadd.f32 %v1998, %v2004
    %v2009 = vadd.f32 %v1999, %v2005
    %v2010 = vadd.f32 %v2000, %v2006
    %v2011 = vadd.f32 %v2001, %v2007
    %2016 = vrot.lane.b32.xlu0 %v2008, 123
    %v2017 = vpop.permute.xlu0 %2016
    %2018 = vrot.lane.b32.xlu0 %v2009, 123
    %v2019 = vpop.permute.xlu0 %2018
    %2020 = vrot.lane.b32.xlu0 %v2010, 123
    %v2021 = vpop.permute.xlu0 %2020
    %2022 = vrot.lane.b32.xlu0 %v2011, 123
    %v2023 = vpop.permute.xlu0 %2022
    %v2028 = vadd.f32 %v1992, %v2017
    %v2029 = vadd.f32 %v1993, %v2019
    %v2030 = vadd.f32 %v1994, %v2021
    %v2031 = vadd.f32 %v1995, %v2023
    %s2032 = sld [smem:[#allocation14 + $0x1b]]
    %v2033 = vstv %s2032
    %v2034 = vmul.f32 %v2033, %v1825
    %v2035 = vmul.f32 %v2033, %v1826
    %v2036 = vmul.f32 %v2033, %v1827
    %v2037 = vmul.f32 %v2033, %v1828
    %s2038 = sld [smem:[#allocation14 + $0x9b]]
    %v2039 = vstv %s2038
    %v2040 = vmul.f32 %v2039, %v1835
    %v2041 = vmul.f32 %v2039, %v1836
    %v2042 = vmul.f32 %v2039, %v1837
    %v2043 = vmul.f32 %v2039, %v1838
    %v2044 = vadd.f32 %v2034, %v2040
    %v2045 = vadd.f32 %v2035, %v2041
    %v2046 = vadd.f32 %v2036, %v2042
    %v2047 = vadd.f32 %v2037, %v2043
    %2052 = vrot.lane.b32.xlu0 %v2044, 122
    %v2053 = vpop.permute.xlu0 %2052
    %2054 = vrot.lane.b32.xlu0 %v2045, 122
    %v2055 = vpop.permute.xlu0 %2054
    %2056 = vrot.lane.b32.xlu0 %v2046, 122
    %v2057 = vpop.permute.xlu0 %2056
    %2058 = vrot.lane.b32.xlu0 %v2047, 122
    %v2059 = vpop.permute.xlu0 %2058
    %v2064 = vadd.f32 %v2028, %v2053
    %v2065 = vadd.f32 %v2029, %v2055
    %v2066 = vadd.f32 %v2030, %v2057
    %v2067 = vadd.f32 %v2031, %v2059
    %s2068 = sld [smem:[#allocation14 + $0x1c]]
    %v2069 = vld [vmem:[#allocation2 + $0x4] sm:$0xff]
    %v2070 = vld [vmem:[#allocation2 + $0xc] sm:$0xff]
    %v2071 = vld [vmem:[#allocation2 + $0x1c] sm:$0xff]
    %v2072 = vld [vmem:[#allocation2 + $0x24] sm:$0xff]
    %v2073 = vstv %s2068
    %v2074 = vmul.f32 %v2073, %v2069
    %v2075 = vmul.f32 %v2073, %v2070
    %v2076 = vmul.f32 %v2073, %v2071
    %v2077 = vmul.f32 %v2073, %v2072
    %s2078 = sld [smem:[#allocation14 + $0x9c]]
    %v2079 = vld [vmem:[%s1084 + $0x4] sm:$0xff]
    %v2080 = vld [vmem:[%s1084 + $0xc] sm:$0xff]
    %v2081 = vld [vmem:[%s1084 + $0x1c] sm:$0xff]
    %v2082 = vld [vmem:[%s1084 + $0x24] sm:$0xff]
    %v2083 = vstv %s2078
    %v2084 = vmul.f32 %v2083, %v2079
    %v2085 = vmul.f32 %v2083, %v2080
    %v2086 = vmul.f32 %v2083, %v2081
    %v2087 = vmul.f32 %v2083, %v2082
    %v2088 = vadd.f32 %v2074, %v2084
    %v2089 = vadd.f32 %v2075, %v2085
    %v2090 = vadd.f32 %v2076, %v2086
    %v2091 = vadd.f32 %v2077, %v2087
    %v2092 = vadd.f32 %v2064, %v2088
    %v2093 = vadd.f32 %v2065, %v2089
    %v2094 = vadd.f32 %v2066, %v2090
    %v2095 = vadd.f32 %v2067, %v2091
    %s2096 = sld [smem:[#allocation14 + $0x1d]]
    %v2097 = vstv %s2096
    %v2098 = vmul.f32 %v2097, %v2069
    %v2099 = vmul.f32 %v2097, %v2070
    %v2100 = vmul.f32 %v2097, %v2071
    %v2101 = vmul.f32 %v2097, %v2072
    %s2102 = sld [smem:[#allocation14 + $0x9d]]
    %v2103 = vstv %s2102
    %v2104 = vmul.f32 %v2103, %v2079
    %v2105 = vmul.f32 %v2103, %v2080
    %v2106 = vmul.f32 %v2103, %v2081
    %v2107 = vmul.f32 %v2103, %v2082
    %v2108 = vadd.f32 %v2098, %v2104
    %v2109 = vadd.f32 %v2099, %v2105
    %v2110 = vadd.f32 %v2100, %v2106
    %v2111 = vadd.f32 %v2101, %v2107
    %2116 = vrot.lane.b32.xlu0 %v2108, 127
    %v2117 = vpop.permute.xlu0 %2116
    %2118 = vrot.lane.b32.xlu0 %v2109, 127
    %v2119 = vpop.permute.xlu0 %2118
    %2120 = vrot.lane.b32.xlu0 %v2110, 127
    %v2121 = vpop.permute.xlu0 %2120
    %2122 = vrot.lane.b32.xlu0 %v2111, 127
    %v2123 = vpop.permute.xlu0 %2122
    %v2128 = vadd.f32 %v2092, %v2117
    %v2129 = vadd.f32 %v2093, %v2119
    %v2130 = vadd.f32 %v2094, %v2121
    %v2131 = vadd.f32 %v2095, %v2123
    %s2132 = sld [smem:[#allocation14 + $0x1e]]
    %v2133 = vstv %s2132
    %v2134 = vmul.f32 %v2133, %v2069
    %v2135 = vmul.f32 %v2133, %v2070
    %v2136 = vmul.f32 %v2133, %v2071
    %v2137 = vmul.f32 %v2133, %v2072
    %s2138 = sld [smem:[#allocation14 + $0x9e]]
    %v2139 = vstv %s2138
    %v2140 = vmul.f32 %v2139, %v2079
    %v2141 = vmul.f32 %v2139, %v2080
    %v2142 = vmul.f32 %v2139, %v2081
    %v2143 = vmul.f32 %v2139, %v2082
    %v2144 = vadd.f32 %v2134, %v2140
    %v2145 = vadd.f32 %v2135, %v2141
    %v2146 = vadd.f32 %v2136, %v2142
    %v2147 = vadd.f32 %v2137, %v2143
    %2152 = vrot.lane.b32.xlu0 %v2144, 126
    %v2153 = vpop.permute.xlu0 %2152
    %2154 = vrot.lane.b32.xlu0 %v2145, 126
    %v2155 = vpop.permute.xlu0 %2154
    %2156 = vrot.lane.b32.xlu0 %v2146, 126
    %v2157 = vpop.permute.xlu0 %2156
    %2158 = vrot.lane.b32.xlu0 %v2147, 126
    %v2159 = vpop.permute.xlu0 %2158
    %v2164 = vadd.f32 %v2128, %v2153
    %v2165 = vadd.f32 %v2129, %v2155
    %v2166 = vadd.f32 %v2130, %v2157
    %v2167 = vadd.f32 %v2131, %v2159
    %s2168 = sld [smem:[#allocation14 + $0x1f]]
    %v2169 = vstv %s2168
    %v2170 = vmul.f32 %v2169, %v2069
    %v2171 = vmul.f32 %v2169, %v2070
    %v2172 = vmul.f32 %v2169, %v2071
    %v2173 = vmul.f32 %v2169, %v2072
    %s2174 = sld [smem:[#allocation14 + $0x9f]]
    %v2175 = vstv %s2174
    %v2176 = vmul.f32 %v2175, %v2079
    %v2177 = vmul.f32 %v2175, %v2080
    %v2178 = vmul.f32 %v2175, %v2081
    %v2179 = vmul.f32 %v2175, %v2082
    %v2180 = vadd.f32 %v2170, %v2176
    %v2181 = vadd.f32 %v2171, %v2177
    %v2182 = vadd.f32 %v2172, %v2178
    %v2183 = vadd.f32 %v2173, %v2179
    %2188 = vrot.lane.b32.xlu0 %v2180, 125
    %v2189 = vpop.permute.xlu0 %2188
    %2190 = vrot.lane.b32.xlu0 %v2181, 125
    %v2191 = vpop.permute.xlu0 %2190
    %2192 = vrot.lane.b32.xlu0 %v2182, 125
    %v2193 = vpop.permute.xlu0 %2192
    %2194 = vrot.lane.b32.xlu0 %v2183, 125
    %v2195 = vpop.permute.xlu0 %2194
    %v2200 = vadd.f32 %v2164, %v2189
    %v2201 = vadd.f32 %v2165, %v2191
    %v2202 = vadd.f32 %v2166, %v2193
    %v2203 = vadd.f32 %v2167, %v2195
    %s2204 = sld [smem:[#allocation14 + $0x20]]
    %v2205 = vstv %s2204
    %v2206 = vmul.f32 %v2205, %v2069
    %v2207 = vmul.f32 %v2205, %v2070
    %v2208 = vmul.f32 %v2205, %v2071
    %v2209 = vmul.f32 %v2205, %v2072
    %s2210 = sld [smem:[#allocation14 + $0xa0]]
    %v2211 = vstv %s2210
    %v2212 = vmul.f32 %v2211, %v2079
    %v2213 = vmul.f32 %v2211, %v2080
    %v2214 = vmul.f32 %v2211, %v2081
    %v2215 = vmul.f32 %v2211, %v2082
    %v2216 = vadd.f32 %v2206, %v2212
    %v2217 = vadd.f32 %v2207, %v2213
    %v2218 = vadd.f32 %v2208, %v2214
    %v2219 = vadd.f32 %v2209, %v2215
    %2224 = vrot.lane.b32.xlu0 %v2216, 124
    %v2225 = vpop.permute.xlu0 %2224
    %2226 = vrot.lane.b32.xlu0 %v2217, 124
    %v2227 = vpop.permute.xlu0 %2226
    %2228 = vrot.lane.b32.xlu0 %v2218, 124
    %v2229 = vpop.permute.xlu0 %2228
    %2230 = vrot.lane.b32.xlu0 %v2219, 124
    %v2231 = vpop.permute.xlu0 %2230
    %v2236 = vadd.f32 %v2200, %v2225
    %v2237 = vadd.f32 %v2201, %v2227
    %v2238 = vadd.f32 %v2202, %v2229
    %v2239 = vadd.f32 %v2203, %v2231
    %s2240 = sld [smem:[#allocation14 + $0x21]]
    %v2241 = vstv %s2240
    %v2242 = vmul.f32 %v2241, %v2069
    %v2243 = vmul.f32 %v2241, %v2070
    %v2244 = vmul.f32 %v2241, %v2071
    %v2245 = vmul.f32 %v2241, %v2072
    %s2246 = sld [smem:[#allocation14 + $0xa1]]
    %v2247 = vstv %s2246
    %v2248 = vmul.f32 %v2247, %v2079
    %v2249 = vmul.f32 %v2247, %v2080
    %v2250 = vmul.f32 %v2247, %v2081
    %v2251 = vmul.f32 %v2247, %v2082
    %v2252 = vadd.f32 %v2242, %v2248
    %v2253 = vadd.f32 %v2243, %v2249
    %v2254 = vadd.f32 %v2244, %v2250
    %v2255 = vadd.f32 %v2245, %v2251
    %2260 = vrot.lane.b32.xlu0 %v2252, 123
    %v2261 = vpop.permute.xlu0 %2260
    %2262 = vrot.lane.b32.xlu0 %v2253, 123
    %v2263 = vpop.permute.xlu0 %2262
    %2264 = vrot.lane.b32.xlu0 %v2254, 123
    %v2265 = vpop.permute.xlu0 %2264
    %2266 = vrot.lane.b32.xlu0 %v2255, 123
    %v2267 = vpop.permute.xlu0 %2266
    %v2272 = vadd.f32 %v2236, %v2261
    %v2273 = vadd.f32 %v2237, %v2263
    %v2274 = vadd.f32 %v2238, %v2265
    %v2275 = vadd.f32 %v2239, %v2267
    %s2276 = sld [smem:[#allocation14 + $0x22]]
    %v2277 = vstv %s2276
    %v2278 = vmul.f32 %v2277, %v2069
    %v2279 = vmul.f32 %v2277, %v2070
    %v2280 = vmul.f32 %v2277, %v2071
    %v2281 = vmul.f32 %v2277, %v2072
    %s2282 = sld [smem:[#allocation14 + $0xa2]]
    %v2283 = vstv %s2282
    %v2284 = vmul.f32 %v2283, %v2079
    %v2285 = vmul.f32 %v2283, %v2080
    %v2286 = vmul.f32 %v2283, %v2081
    %v2287 = vmul.f32 %v2283, %v2082
    %v2288 = vadd.f32 %v2278, %v2284
    %v2289 = vadd.f32 %v2279, %v2285
    %v2290 = vadd.f32 %v2280, %v2286
    %v2291 = vadd.f32 %v2281, %v2287
    %2296 = vrot.lane.b32.xlu0 %v2288, 122
    %v2297 = vpop.permute.xlu0 %2296
    %2298 = vrot.lane.b32.xlu0 %v2289, 122
    %v2299 = vpop.permute.xlu0 %2298
    %2300 = vrot.lane.b32.xlu0 %v2290, 122
    %v2301 = vpop.permute.xlu0 %2300
    %2302 = vrot.lane.b32.xlu0 %v2291, 122
    %v2303 = vpop.permute.xlu0 %2302
    %v2308 = vadd.f32 %v2272, %v2297
    %v2309 = vadd.f32 %v2273, %v2299
    %v2310 = vadd.f32 %v2274, %v2301
    %v2311 = vadd.f32 %v2275, %v2303
    %s2312 = sld [smem:[#allocation14 + $0x23]]
    %v2313 = vld [vmem:[#allocation2 + $0x5] sm:$0xff]
    %v2314 = vld [vmem:[#allocation2 + $0xd] sm:$0xff]
    %v2315 = vld [vmem:[#allocation2 + $0x1d] sm:$0xff]
    %v2316 = vld [vmem:[#allocation2 + $0x25] sm:$0xff]
    %v2317 = vstv %s2312
    %v2318 = vmul.f32 %v2317, %v2313
    %v2319 = vmul.f32 %v2317, %v2314
    %v2320 = vmul.f32 %v2317, %v2315
    %v2321 = vmul.f32 %v2317, %v2316
    %s2322 = sld [smem:[#allocation14 + $0xa3]]
    %v2323 = vld [vmem:[%s1084 + $0x5] sm:$0xff]
    %v2324 = vld [vmem:[%s1084 + $0xd] sm:$0xff]
    %v2325 = vld [vmem:[%s1084 + $0x1d] sm:$0xff]
    %v2326 = vld [vmem:[%s1084 + $0x25] sm:$0xff]
    %v2327 = vstv %s2322
    %v2328 = vmul.f32 %v2327, %v2323
    %v2329 = vmul.f32 %v2327, %v2324
    %v2330 = vmul.f32 %v2327, %v2325
    %v2331 = vmul.f32 %v2327, %v2326
    %v2332 = vadd.f32 %v2318, %v2328
    %v2333 = vadd.f32 %v2319, %v2329
    %v2334 = vadd.f32 %v2320, %v2330
    %v2335 = vadd.f32 %v2321, %v2331
    %v2336 = vadd.f32 %v2308, %v2332
    %v2337 = vadd.f32 %v2309, %v2333
    %v2338 = vadd.f32 %v2310, %v2334
    %v2339 = vadd.f32 %v2311, %v2335
    %s2340 = sld [smem:[#allocation14 + $0x24]]
    %v2341 = vstv %s2340
    %v2342 = vmul.f32 %v2341, %v2313
    %v2343 = vmul.f32 %v2341, %v2314
    %v2344 = vmul.f32 %v2341, %v2315
    %v2345 = vmul.f32 %v2341, %v2316
    %s2346 = sld [smem:[#allocation14 + $0xa4]]
    %v2347 = vstv %s2346
    %v2348 = vmul.f32 %v2347, %v2323
    %v2349 = vmul.f32 %v2347, %v2324
    %v2350 = vmul.f32 %v2347, %v2325
    %v2351 = vmul.f32 %v2347, %v2326
    %v2352 = vadd.f32 %v2342, %v2348
    %v2353 = vadd.f32 %v2343, %v2349
    %v2354 = vadd.f32 %v2344, %v2350
    %v2355 = vadd.f32 %v2345, %v2351
    %2360 = vrot.lane.b32.xlu0 %v2352, 127
    %v2361 = vpop.permute.xlu0 %2360
    %2362 = vrot.lane.b32.xlu0 %v2353, 127
    %v2363 = vpop.permute.xlu0 %2362
    %2364 = vrot.lane.b32.xlu0 %v2354, 127
    %v2365 = vpop.permute.xlu0 %2364
    %2366 = vrot.lane.b32.xlu0 %v2355, 127
    %v2367 = vpop.permute.xlu0 %2366
    %v2372 = vadd.f32 %v2336, %v2361
    %v2373 = vadd.f32 %v2337, %v2363
    %v2374 = vadd.f32 %v2338, %v2365
    %v2375 = vadd.f32 %v2339, %v2367
    %s2376 = sld [smem:[#allocation14 + $0x25]]
    %v2377 = vstv %s2376
    %v2378 = vmul.f32 %v2377, %v2313
    %v2379 = vmul.f32 %v2377, %v2314
    %v2380 = vmul.f32 %v2377, %v2315
    %v2381 = vmul.f32 %v2377, %v2316
    %s2382 = sld [smem:[#allocation14 + $0xa5]]
    %v2383 = vstv %s2382
    %v2384 = vmul.f32 %v2383, %v2323
    %v2385 = vmul.f32 %v2383, %v2324
    %v2386 = vmul.f32 %v2383, %v2325
    %v2387 = vmul.f32 %v2383, %v2326
    %v2388 = vadd.f32 %v2378, %v2384
    %v2389 = vadd.f32 %v2379, %v2385
    %v2390 = vadd.f32 %v2380, %v2386
    %v2391 = vadd.f32 %v2381, %v2387
    %2396 = vrot.lane.b32.xlu0 %v2388, 126
    %v2397 = vpop.permute.xlu0 %2396
    %2398 = vrot.lane.b32.xlu0 %v2389, 126
    %v2399 = vpop.permute.xlu0 %2398
    %2400 = vrot.lane.b32.xlu0 %v2390, 126
    %v2401 = vpop.permute.xlu0 %2400
    %2402 = vrot.lane.b32.xlu0 %v2391, 126
    %v2403 = vpop.permute.xlu0 %2402
    %v2408 = vadd.f32 %v2372, %v2397
    %v2409 = vadd.f32 %v2373, %v2399
    %v2410 = vadd.f32 %v2374, %v2401
    %v2411 = vadd.f32 %v2375, %v2403
    %s2412 = sld [smem:[#allocation14 + $0x26]]
    %v2413 = vstv %s2412
    %v2414 = vmul.f32 %v2413, %v2313
    %v2415 = vmul.f32 %v2413, %v2314
    %v2416 = vmul.f32 %v2413, %v2315
    %v2417 = vmul.f32 %v2413, %v2316
    %s2418 = sld [smem:[#allocation14 + $0xa6]]
    %v2419 = vstv %s2418
    %v2420 = vmul.f32 %v2419, %v2323
    %v2421 = vmul.f32 %v2419, %v2324
    %v2422 = vmul.f32 %v2419, %v2325
    %v2423 = vmul.f32 %v2419, %v2326
    %v2424 = vadd.f32 %v2414, %v2420
    %v2425 = vadd.f32 %v2415, %v2421
    %v2426 = vadd.f32 %v2416, %v2422
    %v2427 = vadd.f32 %v2417, %v2423
    %2432 = vrot.lane.b32.xlu0 %v2424, 125
    %v2433 = vpop.permute.xlu0 %2432
    %2434 = vrot.lane.b32.xlu0 %v2425, 125
    %v2435 = vpop.permute.xlu0 %2434
    %2436 = vrot.lane.b32.xlu0 %v2426, 125
    %v2437 = vpop.permute.xlu0 %2436
    %2438 = vrot.lane.b32.xlu0 %v2427, 125
    %v2439 = vpop.permute.xlu0 %2438
    %v2444 = vadd.f32 %v2408, %v2433
    %v2445 = vadd.f32 %v2409, %v2435
    %v2446 = vadd.f32 %v2410, %v2437
    %v2447 = vadd.f32 %v2411, %v2439
    %s2448 = sld [smem:[#allocation14 + $0x27]]
    %v2449 = vstv %s2448
    %v2450 = vmul.f32 %v2449, %v2313
    %v2451 = vmul.f32 %v2449, %v2314
    %v2452 = vmul.f32 %v2449, %v2315
    %v2453 = vmul.f32 %v2449, %v2316
    %s2454 = sld [smem:[#allocation14 + $0xa7]]
    %v2455 = vstv %s2454
    %v2456 = vmul.f32 %v2455, %v2323
    %v2457 = vmul.f32 %v2455, %v2324
    %v2458 = vmul.f32 %v2455, %v2325
    %v2459 = vmul.f32 %v2455, %v2326
    %v2460 = vadd.f32 %v2450, %v2456
    %v2461 = vadd.f32 %v2451, %v2457
    %v2462 = vadd.f32 %v2452, %v2458
    %v2463 = vadd.f32 %v2453, %v2459
    %2468 = vrot.lane.b32.xlu0 %v2460, 124
    %v2469 = vpop.permute.xlu0 %2468
    %2470 = vrot.lane.b32.xlu0 %v2461, 124
    %v2471 = vpop.permute.xlu0 %2470
    %2472 = vrot.lane.b32.xlu0 %v2462, 124
    %v2473 = vpop.permute.xlu0 %2472
    %2474 = vrot.lane.b32.xlu0 %v2463, 124
    %v2475 = vpop.permute.xlu0 %2474
    %v2480 = vadd.f32 %v2444, %v2469
    %v2481 = vadd.f32 %v2445, %v2471
    %v2482 = vadd.f32 %v2446, %v2473
    %v2483 = vadd.f32 %v2447, %v2475
    %s2484 = sld [smem:[#allocation14 + $0x28]]
    %v2485 = vstv %s2484
    %v2486 = vmul.f32 %v2485, %v2313
    %v2487 = vmul.f32 %v2485, %v2314
    %v2488 = vmul.f32 %v2485, %v2315
    %v2489 = vmul.f32 %v2485, %v2316
    %s2490 = sld [smem:[#allocation14 + $0xa8]]
    %v2491 = vstv %s2490
    %v2492 = vmul.f32 %v2491, %v2323
    %v2493 = vmul.f32 %v2491, %v2324
    %v2494 = vmul.f32 %v2491, %v2325
    %v2495 = vmul.f32 %v2491, %v2326
    %v2496 = vadd.f32 %v2486, %v2492
    %v2497 = vadd.f32 %v2487, %v2493
    %v2498 = vadd.f32 %v2488, %v2494
    %v2499 = vadd.f32 %v2489, %v2495
    %2504 = vrot.lane.b32.xlu0 %v2496, 123
    %v2505 = vpop.permute.xlu0 %2504
    %2506 = vrot.lane.b32.xlu0 %v2497, 123
    %v2507 = vpop.permute.xlu0 %2506
    %2508 = vrot.lane.b32.xlu0 %v2498, 123
    %v2509 = vpop.permute.xlu0 %2508
    %2510 = vrot.lane.b32.xlu0 %v2499, 123
    %v2511 = vpop.permute.xlu0 %2510
    %v2516 = vadd.f32 %v2480, %v2505
    %v2517 = vadd.f32 %v2481, %v2507
    %v2518 = vadd.f32 %v2482, %v2509
    %v2519 = vadd.f32 %v2483, %v2511
    %s2520 = sld [smem:[#allocation14 + $0x29]]
    %v2521 = vstv %s2520
    %v2522 = vmul.f32 %v2521, %v2313
    %v2523 = vmul.f32 %v2521, %v2314
    %v2524 = vmul.f32 %v2521, %v2315
    %v2525 = vmul.f32 %v2521, %v2316
    %s2526 = sld [smem:[#allocation14 + $0xa9]]
    %v2527 = vstv %s2526
    %v2528 = vmul.f32 %v2527, %v2323
    %v2529 = vmul.f32 %v2527, %v2324
    %v2530 = vmul.f32 %v2527, %v2325
    %v2531 = vmul.f32 %v2527, %v2326
    %v2532 = vadd.f32 %v2522, %v2528
    %v2533 = vadd.f32 %v2523, %v2529
    %v2534 = vadd.f32 %v2524, %v2530
    %v2535 = vadd.f32 %v2525, %v2531
    %2540 = vrot.lane.b32.xlu0 %v2532, 122
    %v2541 = vpop.permute.xlu0 %2540
    %2542 = vrot.lane.b32.xlu0 %v2533, 122
    %v2543 = vpop.permute.xlu0 %2542
    %2544 = vrot.lane.b32.xlu0 %v2534, 122
    %v2545 = vpop.permute.xlu0 %2544
    %2546 = vrot.lane.b32.xlu0 %v2535, 122
    %v2547 = vpop.permute.xlu0 %2546
    %v2552 = vadd.f32 %v2516, %v2541
    %v2553 = vadd.f32 %v2517, %v2543
    %v2554 = vadd.f32 %v2518, %v2545
    %v2555 = vadd.f32 %v2519, %v2547
    %s2556 = sld [smem:[#allocation14 + $0x2a]]
    %v2557 = vld [vmem:[#allocation2 + $0x6] sm:$0xff]
    %v2558 = vld [vmem:[#allocation2 + $0xe] sm:$0xff]
    %v2559 = vld [vmem:[#allocation2 + $0x1e] sm:$0xff]
    %v2560 = vld [vmem:[#allocation2 + $0x26] sm:$0xff]
    %v2561 = vstv %s2556
    %v2562 = vmul.f32 %v2561, %v2557
    %v2563 = vmul.f32 %v2561, %v2558
    %v2564 = vmul.f32 %v2561, %v2559
    %v2565 = vmul.f32 %v2561, %v2560
    %s2566 = sld [smem:[#allocation14 + $0xaa]]
    %v2567 = vld [vmem:[%s1084 + $0x6] sm:$0xff]
    %v2568 = vld [vmem:[%s1084 + $0xe] sm:$0xff]
    %v2569 = vld [vmem:[%s1084 + $0x1e] sm:$0xff]
    %v2570 = vld [vmem:[%s1084 + $0x26] sm:$0xff]
    %v2571 = vstv %s2566
    %v2572 = vmul.f32 %v2571, %v2567
    %v2573 = vmul.f32 %v2571, %v2568
    %v2574 = vmul.f32 %v2571, %v2569
    %v2575 = vmul.f32 %v2571, %v2570
    %v2576 = vadd.f32 %v2562, %v2572
    %v2577 = vadd.f32 %v2563, %v2573
    %v2578 = vadd.f32 %v2564, %v2574
    %v2579 = vadd.f32 %v2565, %v2575
    %v2580 = vadd.f32 %v2552, %v2576
    %v2581 = vadd.f32 %v2553, %v2577
    %v2582 = vadd.f32 %v2554, %v2578
    %v2583 = vadd.f32 %v2555, %v2579
    %s2584 = sld [smem:[#allocation14 + $0x2b]]
    %v2585 = vstv %s2584
    %v2586 = vmul.f32 %v2585, %v2557
    %v2587 = vmul.f32 %v2585, %v2558
    %v2588 = vmul.f32 %v2585, %v2559
    %v2589 = vmul.f32 %v2585, %v2560
    %s2590 = sld [smem:[#allocation14 + $0xab]]
    %v2591 = vstv %s2590
    %v2592 = vmul.f32 %v2591, %v2567
    %v2593 = vmul.f32 %v2591, %v2568
    %v2594 = vmul.f32 %v2591, %v2569
    %v2595 = vmul.f32 %v2591, %v2570
    %v2596 = vadd.f32 %v2586, %v2592
    %v2597 = vadd.f32 %v2587, %v2593
    %v2598 = vadd.f32 %v2588, %v2594
    %v2599 = vadd.f32 %v2589, %v2595
    %2604 = vrot.lane.b32.xlu0 %v2596, 127
    %v2605 = vpop.permute.xlu0 %2604
    %2606 = vrot.lane.b32.xlu0 %v2597, 127
    %v2607 = vpop.permute.xlu0 %2606
    %2608 = vrot.lane.b32.xlu0 %v2598, 127
    %v2609 = vpop.permute.xlu0 %2608
    %2610 = vrot.lane.b32.xlu0 %v2599, 127
    %v2611 = vpop.permute.xlu0 %2610
    %v2616 = vadd.f32 %v2580, %v2605
    %v2617 = vadd.f32 %v2581, %v2607
    %v2618 = vadd.f32 %v2582, %v2609
    %v2619 = vadd.f32 %v2583, %v2611
    %s2620 = sld [smem:[#allocation14 + $0x2c]]
    %v2621 = vstv %s2620
    %v2622 = vmul.f32 %v2621, %v2557
    %v2623 = vmul.f32 %v2621, %v2558
    %v2624 = vmul.f32 %v2621, %v2559
    %v2625 = vmul.f32 %v2621, %v2560
    %s2626 = sld [smem:[#allocation14 + $0xac]]
    %v2627 = vstv %s2626
    %v2628 = vmul.f32 %v2627, %v2567
    %v2629 = vmul.f32 %v2627, %v2568
    %v2630 = vmul.f32 %v2627, %v2569
    %v2631 = vmul.f32 %v2627, %v2570
    %v2632 = vadd.f32 %v2622, %v2628
    %v2633 = vadd.f32 %v2623, %v2629
    %v2634 = vadd.f32 %v2624, %v2630
    %v2635 = vadd.f32 %v2625, %v2631
    %2640 = vrot.lane.b32.xlu0 %v2632, 126
    %v2641 = vpop.permute.xlu0 %2640
    %2642 = vrot.lane.b32.xlu0 %v2633, 126
    %v2643 = vpop.permute.xlu0 %2642
    %2644 = vrot.lane.b32.xlu0 %v2634, 126
    %v2645 = vpop.permute.xlu0 %2644
    %2646 = vrot.lane.b32.xlu0 %v2635, 126
    %v2647 = vpop.permute.xlu0 %2646
    %v2652 = vadd.f32 %v2616, %v2641
    %v2653 = vadd.f32 %v2617, %v2643
    %v2654 = vadd.f32 %v2618, %v2645
    %v2655 = vadd.f32 %v2619, %v2647
    %s2656 = sld [smem:[#allocation14 + $0x2d]]
    %v2657 = vstv %s2656
    %v2658 = vmul.f32 %v2657, %v2557
    %v2659 = vmul.f32 %v2657, %v2558
    %v2660 = vmul.f32 %v2657, %v2559
    %v2661 = vmul.f32 %v2657, %v2560
    %s2662 = sld [smem:[#allocation14 + $0xad]]
    %v2663 = vstv %s2662
    %v2664 = vmul.f32 %v2663, %v2567
    %v2665 = vmul.f32 %v2663, %v2568
    %v2666 = vmul.f32 %v2663, %v2569
    %v2667 = vmul.f32 %v2663, %v2570
    %v2668 = vadd.f32 %v2658, %v2664
    %v2669 = vadd.f32 %v2659, %v2665
    %v2670 = vadd.f32 %v2660, %v2666
    %v2671 = vadd.f32 %v2661, %v2667
    %2676 = vrot.lane.b32.xlu0 %v2668, 125
    %v2677 = vpop.permute.xlu0 %2676
    %2678 = vrot.lane.b32.xlu0 %v2669, 125
    %v2679 = vpop.permute.xlu0 %2678
    %2680 = vrot.lane.b32.xlu0 %v2670, 125
    %v2681 = vpop.permute.xlu0 %2680
    %2682 = vrot.lane.b32.xlu0 %v2671, 125
    %v2683 = vpop.permute.xlu0 %2682
    %v2688 = vadd.f32 %v2652, %v2677
    %v2689 = vadd.f32 %v2653, %v2679
    %v2690 = vadd.f32 %v2654, %v2681
    %v2691 = vadd.f32 %v2655, %v2683
    %s2692 = sld [smem:[#allocation14 + $0x2e]]
    %v2693 = vstv %s2692
    %v2694 = vmul.f32 %v2693, %v2557
    %v2695 = vmul.f32 %v2693, %v2558
    %v2696 = vmul.f32 %v2693, %v2559
    %v2697 = vmul.f32 %v2693, %v2560
    %s2698 = sld [smem:[#allocation14 + $0xae]]
    %v2699 = vstv %s2698
    %v2700 = vmul.f32 %v2699, %v2567
    %v2701 = vmul.f32 %v2699, %v2568
    %v2702 = vmul.f32 %v2699, %v2569
    %v2703 = vmul.f32 %v2699, %v2570
    %v2704 = vadd.f32 %v2694, %v2700
    %v2705 = vadd.f32 %v2695, %v2701
    %v2706 = vadd.f32 %v2696, %v2702
    %v2707 = vadd.f32 %v2697, %v2703
    %2712 = vrot.lane.b32.xlu0 %v2704, 124
    %v2713 = vpop.permute.xlu0 %2712
    %2714 = vrot.lane.b32.xlu0 %v2705, 124
    %v2715 = vpop.permute.xlu0 %2714
    %2716 = vrot.lane.b32.xlu0 %v2706, 124
    %v2717 = vpop.permute.xlu0 %2716
    %2718 = vrot.lane.b32.xlu0 %v2707, 124
    %v2719 = vpop.permute.xlu0 %2718
    %v2724 = vadd.f32 %v2688, %v2713
    %v2725 = vadd.f32 %v2689, %v2715
    %v2726 = vadd.f32 %v2690, %v2717
    %v2727 = vadd.f32 %v2691, %v2719
    %s2728 = sld [smem:[#allocation14 + $0x2f]]
    %v2729 = vstv %s2728
    %v2730 = vmul.f32 %v2729, %v2557
    %v2731 = vmul.f32 %v2729, %v2558
    %v2732 = vmul.f32 %v2729, %v2559
    %v2733 = vmul.f32 %v2729, %v2560
    %s2734 = sld [smem:[#allocation14 + $0xaf]]
    %v2735 = vstv %s2734
    %v2736 = vmul.f32 %v2735, %v2567
    %v2737 = vmul.f32 %v2735, %v2568
    %v2738 = vmul.f32 %v2735, %v2569
    %v2739 = vmul.f32 %v2735, %v2570
    %v2740 = vadd.f32 %v2730, %v2736
    %v2741 = vadd.f32 %v2731, %v2737
    %v2742 = vadd.f32 %v2732, %v2738
    %v2743 = vadd.f32 %v2733, %v2739
    %2748 = vrot.lane.b32.xlu0 %v2740, 123
    %v2749 = vpop.permute.xlu0 %2748
    %2750 = vrot.lane.b32.xlu0 %v2741, 123
    %v2751 = vpop.permute.xlu0 %2750
    %2752 = vrot.lane.b32.xlu0 %v2742, 123
    %v2753 = vpop.permute.xlu0 %2752
    %2754 = vrot.lane.b32.xlu0 %v2743, 123
    %v2755 = vpop.permute.xlu0 %2754
    %v2760 = vadd.f32 %v2724, %v2749
    %v2761 = vadd.f32 %v2725, %v2751
    %v2762 = vadd.f32 %v2726, %v2753
    %v2763 = vadd.f32 %v2727, %v2755
    %s2764 = sld [smem:[#allocation14 + $0x30]]
    %v2765 = vstv %s2764
    %v2766 = vmul.f32 %v2765, %v2557
    %v2767 = vmul.f32 %v2765, %v2558
    %v2768 = vmul.f32 %v2765, %v2559
    %v2769 = vmul.f32 %v2765, %v2560
    %s2770 = sld [smem:[#allocation14 + $0xb0]]
    %v2771 = vstv %s2770
    %v2772 = vmul.f32 %v2771, %v2567
    %v2773 = vmul.f32 %v2771, %v2568
    %v2774 = vmul.f32 %v2771, %v2569
    %v2775 = vmul.f32 %v2771, %v2570
    %v2776 = vadd.f32 %v2766, %v2772
    %v2777 = vadd.f32 %v2767, %v2773
    %v2778 = vadd.f32 %v2768, %v2774
    %v2779 = vadd.f32 %v2769, %v2775
    %2784 = vrot.lane.b32.xlu0 %v2776, 122
    %v2785 = vpop.permute.xlu0 %2784
    %2786 = vrot.lane.b32.xlu0 %v2777, 122
    %v2787 = vpop.permute.xlu0 %2786
    %2788 = vrot.lane.b32.xlu0 %v2778, 122
    %v2789 = vpop.permute.xlu0 %2788
    %2790 = vrot.lane.b32.xlu0 %v2779, 122
    %v2791 = vpop.permute.xlu0 %2790
    %v2796 = vadd.f32 %v2760, %v2785
    %v2797 = vadd.f32 %v2761, %v2787
    %v2798 = vadd.f32 %v2762, %v2789
    %v2799 = vadd.f32 %v2763, %v2791
    %v2800 = vxor.u32 %v2796, 2147483648
    %v2801 = vxor.u32 %v2797, 2147483648
    %v2802 = vxor.u32 %v2798, 2147483648
    %v2803 = vxor.u32 %v2799, 2147483648
    %v2804 = vmul.f32 %v2800, 1.442695
    %v2805 = vpow.pop %v2804
    %v2806 = vmul.f32 %v2801, 1.442695
    %v2807 = vpow.pop %v2806
    %v2808 = vmul.f32 %v2802, 1.442695
    %v2809 = vpow.pop %v2808
    %v2810 = vmul.f32 %v2803, 1.442695
    %v2811 = vpow.pop %v2810
    %v2812 = vadd.f32 %v2805, 1.0
    %v2813 = vadd.f32 %v2807, 1.0
    %v2814 = vadd.f32 %v2809, 1.0
    %v2815 = vadd.f32 %v2811, 1.0
    %v2816 = vrcp.pop %v2812
    %v2817 = vmul.f32 1.0, %v2816
    %v2818 = vrcp.pop %v2813
    %v2819 = vmul.f32 1.0, %v2818
    %v2820 = vrcp.pop %v2814
    %v2821 = vmul.f32 1.0, %v2820
    %v2822 = vrcp.pop %v2815
    %v2823 = vmul.f32 1.0, %v2822
    %v2824 = vcombine.high %v2817, 0.0
    %v2826 = vunpack.c.l.s4 1983009808
    %v2827 = vunpack.c.0.s8 %v2826
    %v2828 = vlaneseq
    %v2829 = vshrl.u32 %v2828, 7
    %v2830 = vsub.s32 %v2827, %v2829
    %v2831 = vrot.slane %v2817, %v2830
    %v2833 = vunpack.c.l.s4 1983009808
    %v2834 = vunpack.c.0.s8 %v2833
    %v2835 = vlaneseq
    %v2836 = vshrl.u32 %v2835, 7
    %v2837 = vsub.s32 %v2834, %v2836
    %v2838 = vrot.slane %v2824, %v2837
    %v2839 = vcombine.high %v2831, 0.0
    %v2841 = vunpack.c.l.s4 1934713408
    %v2842 = vunpack.c.0.s8 %v2841
    %v2843 = vlaneseq
    %v2844 = vshrl.u32 %v2843, 7
    %v2845 = vsub.s32 %v2842, %v2844
    %v2846 = vrot.slane %v2831, %v2845
    %v2848 = vunpack.c.l.s4 1934713408
    %v2849 = vunpack.c.0.s8 %v2848
    %v2850 = vlaneseq
    %v2851 = vshrl.u32 %v2850, 7
    %v2852 = vsub.s32 %v2849, %v2851
    %v2853 = vrot.slane %v2839, %v2852
    %v2854 = vcombine.high %v2838, 0.0
    %v2856 = vunpack.c.l.s4 1934713408
    %v2857 = vunpack.c.0.s8 %v2856
    %v2858 = vlaneseq
    %v2859 = vshrl.u32 %v2858, 7
    %v2860 = vsub.s32 %v2857, %v2859
    %v2861 = vrot.slane %v2838, %v2860
    %v2863 = vunpack.c.l.s4 1934713408
    %v2864 = vunpack.c.0.s8 %v2863
    %v2865 = vlaneseq
    %v2866 = vshrl.u32 %v2865, 7
    %v2867 = vsub.s32 %v2864, %v2866
    %v2868 = vrot.slane %v2854, %v2867
    %v2869 = vcombine.high %v2846, 0.0
    %v2870 = vcombine.high %v2853, 0.0
    %v2871 = vcombine.high %v2861, 0.0
    %v2872 = vcombine.high %v2868, 0.0
    %v2873 = vcombine.high %v2819, 0.0
    %v2875 = vunpack.c.l.s4 1983009808
    %v2876 = vunpack.c.0.s8 %v2875
    %v2877 = vlaneseq
    %v2878 = vshrl.u32 %v2877, 7
    %v2879 = vsub.s32 %v2876, %v2878
    %v2880 = vrot.slane %v2819, %v2879
    %v2882 = vunpack.c.l.s4 1983009808
    %v2883 = vunpack.c.0.s8 %v2882
    %v2884 = vlaneseq
    %v2885 = vshrl.u32 %v2884, 7
    %v2886 = vsub.s32 %v2883, %v2885
    %v2887 = vrot.slane %v2873, %v2886
    %v2888 = vcombine.high %v2880, 0.0
    %v2890 = vunpack.c.l.s4 1934713408
    %v2891 = vunpack.c.0.s8 %v2890
    %v2892 = vlaneseq
    %v2893 = vshrl.u32 %v2892, 7
    %v2894 = vsub.s32 %v2891, %v2893
    %v2895 = vrot.slane %v2880, %v2894
    %v2897 = vunpack.c.l.s4 1934713408
    %v2898 = vunpack.c.0.s8 %v2897
    %v2899 = vlaneseq
    %v2900 = vshrl.u32 %v2899, 7
    %v2901 = vsub.s32 %v2898, %v2900
    %v2902 = vrot.slane %v2888, %v2901
    %v2903 = vcombine.high %v2887, 0.0
    %v2905 = vunpack.c.l.s4 1934713408
    %v2906 = vunpack.c.0.s8 %v2905
    %v2907 = vlaneseq
    %v2908 = vshrl.u32 %v2907, 7
    %v2909 = vsub.s32 %v2906, %v2908
    %v2910 = vrot.slane %v2887, %v2909
    %v2912 = vunpack.c.l.s4 1934713408
    %v2913 = vunpack.c.0.s8 %v2912
    %v2914 = vlaneseq
    %v2915 = vshrl.u32 %v2914, 7
    %v2916 = vsub.s32 %v2913, %v2915
    %v2917 = vrot.slane %v2903, %v2916
    %v2918 = vcombine.high %v2895, 0.0
    %v2919 = vcombine.high %v2902, 0.0
    %v2920 = vcombine.high %v2910, 0.0
    %v2921 = vcombine.high %v2917, 0.0
    %v2922 = vcombine.high %v2821, 0.0
    %v2924 = vunpack.c.l.s4 1983009808
    %v2925 = vunpack.c.0.s8 %v2924
    %v2926 = vlaneseq
    %v2927 = vshrl.u32 %v2926, 7
    %v2928 = vsub.s32 %v2925, %v2927
    %v2929 = vrot.slane %v2821, %v2928
    %v2931 = vunpack.c.l.s4 1983009808
    %v2932 = vunpack.c.0.s8 %v2931
    %v2933 = vlaneseq
    %v2934 = vshrl.u32 %v2933, 7
    %v2935 = vsub.s32 %v2932, %v2934
    %v2936 = vrot.slane %v2922, %v2935
    %v2937 = vcombine.high %v2929, 0.0
    %v2939 = vunpack.c.l.s4 1934713408
    %v2940 = vunpack.c.0.s8 %v2939
    %v2941 = vlaneseq
    %v2942 = vshrl.u32 %v2941, 7
    %v2943 = vsub.s32 %v2940, %v2942
    %v2944 = vrot.slane %v2929, %v2943
    %v2946 = vunpack.c.l.s4 1934713408
    %v2947 = vunpack.c.0.s8 %v2946
    %v2948 = vlaneseq
    %v2949 = vshrl.u32 %v2948, 7
    %v2950 = vsub.s32 %v2947, %v2949
    %v2951 = vrot.slane %v2937, %v2950
    %v2952 = vcombine.high %v2936, 0.0
    %v2954 = vunpack.c.l.s4 1934713408
    %v2955 = vunpack.c.0.s8 %v2954
    %v2956 = vlaneseq
    %v2957 = vshrl.u32 %v2956, 7
    %v2958 = vsub.s32 %v2955, %v2957
    %v2959 = vrot.slane %v2936, %v2958
    %v2961 = vunpack.c.l.s4 1934713408
    %v2962 = vunpack.c.0.s8 %v2961
    %v2963 = vlaneseq
    %v2964 = vshrl.u32 %v2963, 7
    %v2965 = vsub.s32 %v2962, %v2964
    %v2966 = vrot.slane %v2952, %v2965
    %v2967 = vcombine.high %v2944, 0.0
    %v2968 = vcombine.high %v2951, 0.0
    %v2969 = vcombine.high %v2959, 0.0
    %v2970 = vcombine.high %v2966, 0.0
    %v2971 = vcombine.high %v2823, 0.0
    %v2973 = vunpack.c.l.s4 1983009808
    %v2974 = vunpack.c.0.s8 %v2973
    %v2975 = vlaneseq
    %v2976 = vshrl.u32 %v2975, 7
    %v2977 = vsub.s32 %v2974, %v2976
    %v2978 = vrot.slane %v2823, %v2977
    %v2980 = vunpack.c.l.s4 1983009808
    %v2981 = vunpack.c.0.s8 %v2980
    %v2982 = vlaneseq
    %v2983 = vshrl.u32 %v2982, 7
    %v2984 = vsub.s32 %v2981, %v2983
    %v2985 = vrot.slane %v2971, %v2984
    %v2986 = vcombine.high %v2978, 0.0
    %v2988 = vunpack.c.l.s4 1934713408
    %v2989 = vunpack.c.0.s8 %v2988
    %v2990 = vlaneseq
    %v2991 = vshrl.u32 %v2990, 7
    %v2992 = vsub.s32 %v2989, %v2991
    %v2993 = vrot.slane %v2978, %v2992
    %v2995 = vunpack.c.l.s4 1934713408
    %v2996 = vunpack.c.0.s8 %v2995
    %v2997 = vlaneseq
    %v2998 = vshrl.u32 %v2997, 7
    %v2999 = vsub.s32 %v2996, %v2998
    %v3000 = vrot.slane %v2986, %v2999
    %v3001 = vcombine.high %v2985, 0.0
    %v3003 = vunpack.c.l.s4 1934713408
    %v3004 = vunpack.c.0.s8 %v3003
    %v3005 = vlaneseq
    %v3006 = vshrl.u32 %v3005, 7
    %v3007 = vsub.s32 %v3004, %v3006
    %v3008 = vrot.slane %v2985, %v3007
    %v3010 = vunpack.c.l.s4 1934713408
    %v3011 = vunpack.c.0.s8 %v3010
    %v3012 = vlaneseq
    %v3013 = vshrl.u32 %v3012, 7
    %v3014 = vsub.s32 %v3011, %v3013
    %v3015 = vrot.slane %v3001, %v3014
    %v3016 = vcombine.high %v2993, 0.0
    %v3017 = vcombine.high %v3000, 0.0
    %v3018 = vcombine.high %v3008, 0.0
    %v3019 = vcombine.high %v3015, 0.0
    %3022 = vrot.lane.b32.xlu0 %v2869, 16
    %v3023 = vpop.permute.xlu0 %3022
    %3024 = vrot.lane.b32.xlu0 %v2967, 16
    %v3025 = vpop.permute.xlu0 %3024
    %3030 = vrot.lane.b32.xlu0 %v2853, 32
    %v3031 = vpop.permute.xlu0 %3030
    %3032 = vrot.lane.b32.xlu0 %v2951, 32
    %v3033 = vpop.permute.xlu0 %3032
    %3038 = vrot.lane.b32.xlu0 %v2870, 48
    %v3039 = vpop.permute.xlu0 %3038
    %3040 = vrot.lane.b32.xlu0 %v2968, 48
    %v3041 = vpop.permute.xlu0 %3040
    %3046 = vrot.lane.b32.xlu0 %v2861, 64
    %v3047 = vpop.permute.xlu0 %3046
    %3048 = vrot.lane.b32.xlu0 %v2959, 64
    %v3049 = vpop.permute.xlu0 %3048
    %3054 = vrot.lane.b32.xlu0 %v2871, 80
    %v3055 = vpop.permute.xlu0 %3054
    %3056 = vrot.lane.b32.xlu0 %v2969, 80
    %v3057 = vpop.permute.xlu0 %3056
    %3062 = vrot.lane.b32.xlu0 %v2868, 96
    %v3063 = vpop.permute.xlu0 %3062
    %3064 = vrot.lane.b32.xlu0 %v2966, 96
    %v3065 = vpop.permute.xlu0 %3064
    %3070 = vrot.lane.b32.xlu0 %v2872, 112
    %v3071 = vpop.permute.xlu0 %3070
    %3072 = vrot.lane.b32.xlu0 %v2970, 112
    %v3073 = vpop.permute.xlu0 %3072
    %3078 = vrot.lane.b32.xlu0 %v2918, 16
    %v3079 = vpop.permute.xlu0 %3078
    %3080 = vrot.lane.b32.xlu0 %v3016, 16
    %v3081 = vpop.permute.xlu0 %3080
    %3086 = vrot.lane.b32.xlu0 %v2902, 32
    %v3087 = vpop.permute.xlu0 %3086
    %3088 = vrot.lane.b32.xlu0 %v3000, 32
    %v3089 = vpop.permute.xlu0 %3088
    %3094 = vrot.lane.b32.xlu0 %v2919, 48
    %v3095 = vpop.permute.xlu0 %3094
    %3096 = vrot.lane.b32.xlu0 %v3017, 48
    %v3097 = vpop.permute.xlu0 %3096
    %3102 = vrot.lane.b32.xlu0 %v2910, 64
    %v3103 = vpop.permute.xlu0 %3102
    %3104 = vrot.lane.b32.xlu0 %v3008, 64
    %v3105 = vpop.permute.xlu0 %3104
    %3110 = vrot.lane.b32.xlu0 %v2920, 80
    %v3111 = vpop.permute.xlu0 %3110
    %3112 = vrot.lane.b32.xlu0 %v3018, 80
    %v3113 = vpop.permute.xlu0 %3112
    %3118 = vrot.lane.b32.xlu0 %v2917, 96
    %v3119 = vpop.permute.xlu0 %3118
    %3120 = vrot.lane.b32.xlu0 %v3015, 96
    %v3121 = vpop.permute.xlu0 %3120
    %3126 = vrot.lane.b32.xlu0 %v2921, 112
    %v3127 = vpop.permute.xlu0 %3126
    %3128 = vrot.lane.b32.xlu0 %v3019, 112
    %v3129 = vpop.permute.xlu0 %3128
    %vm3132 = vcmask 130048
    %v3133 = vsel %vm3132, %v2846, %v3023
    %v3134 = vsel %vm3132, %v2944, %v3025
    %v3135 = vsel %vm293, %v3133, %v3031
    %v3136 = vsel %vm293, %v3134, %v3033
    %vm3137 = vcmask 392192
    %v3138 = vsel %vm3137, %v3135, %v3039
    %v3139 = vsel %vm3137, %v3136, %v3041
    %vm3140 = vcmask 523264
    %v3141 = vsel %vm3140, %v3138, %v3047
    %v3142 = vsel %vm3140, %v3139, %v3049
    %vm3143 = vcmask 654336
    %v3144 = vsel %vm3143, %v3141, %v3055
    %v3145 = vsel %vm3143, %v3142, %v3057
    %vm3146 = vcmask 785408
    %v3147 = vsel %vm3146, %v3144, %v3063
    %v3148 = vsel %vm3146, %v3145, %v3065
    %vm3149 = vcmask 916480
    %v3150 = vsel %vm3149, %v3147, %v3071
    %v3151 = vsel %vm3149, %v3148, %v3073
    %v3152 = vsel %vm3132, %v2895, %v3079
    %v3153 = vsel %vm3132, %v2993, %v3081
    %v3154 = vsel %vm293, %v3152, %v3087
    %v3155 = vsel %vm293, %v3153, %v3089
    %v3156 = vsel %vm3137, %v3154, %v3095
    %v3157 = vsel %vm3137, %v3155, %v3097
    %v3158 = vsel %vm3140, %v3156, %v3103
    %v3159 = vsel %vm3140, %v3157, %v3105
    %v3160 = vsel %vm3143, %v3158, %v3111
    %v3161 = vsel %vm3143, %v3159, %v3113
    %v3162 = vsel %vm3146, %v3160, %v3119
    %v3163 = vsel %vm3146, %v3161, %v3121
    %v3164 = vsel %vm3149, %v3162, %v3127
    %v3165 = vsel %vm3149, %v3163, %v3129
    %v3166 = vlaneseq
    %v3167 = vshrl.u32 %v3166, 7
    %v3168 = vsub.s32 0, %v3167
    %v3169 = vrot.slane %v3150, %v3168
    %v3170 = vlaneseq
    %v3171 = vshrl.u32 %v3170, 7
    %v3172 = vsub.s32 0, %v3171
    %v3173 = vrot.slane %v3164, %v3172
    %v3174 = vlaneseq
    %v3175 = vshrl.u32 %v3174, 7
    %v3176 = vsub.s32 0, %v3175
    %v3177 = vrot.slane %v3151, %v3176
    %v3178 = vlaneseq
    %v3179 = vshrl.u32 %v3178, 7
    %v3180 = vsub.s32 0, %v3179
    %v3181 = vrot.slane %v3165, %v3180
    %v3182 = vmul.f32 %v501, %v3169
    %v3183 = vmul.f32 %v502, %v3173
    %v3184 = vmul.f32 %v503, %v3169
    %v3185 = vmul.f32 %v504, %v3173
    %v3186 = vmul.f32 %v505, %v3169
    %v3187 = vmul.f32 %v506, %v3173
    %v3188 = vmul.f32 %v507, %v3169
    %v3189 = vmul.f32 %v508, %v3173
    %v3190 = vmul.f32 %v509, %v3177
    %v3191 = vmul.f32 %v510, %v3181
    %v3192 = vmul.f32 %v511, %v3177
    %v3193 = vmul.f32 %v512, %v3181
    %v3194 = vmul.f32 %v513, %v3177
    %v3195 = vmul.f32 %v514, %v3181
    %v3196 = vmul.f32 %v515, %v3177
    %v3197 = vmul.f32 %v516, %v3181
    %3198 = vst [vmem:[#allocation15] sm:$0xff] %v3182
    %3199 = vst [vmem:[#allocation15 + $0x8] sm:$0xff] %v3183
    %3200 = vst [vmem:[#allocation15 + $0x10] sm:$0xff] %v3184
    %3201 = vst [vmem:[#allocation15 + $0x18] sm:$0xff] %v3185
    %3202 = vst [vmem:[#allocation15 + $0x20] sm:$0xff] %v3186
    %3203 = vst [vmem:[#allocation15 + $0x28] sm:$0xff] %v3187
    %3204 = vst [vmem:[#allocation15 + $0x30] sm:$0xff] %v3188
    %3205 = vst [vmem:[#allocation15 + $0x38] sm:$0xff] %v3189
    %3206 = vst [vmem:[#allocation15 + $0x40] sm:$0xff] %v3190
    %3207 = vst [vmem:[#allocation15 + $0x48] sm:$0xff] %v3191
    %3208 = vst [vmem:[#allocation15 + $0x50] sm:$0xff] %v3192
    %3209 = vst [vmem:[#allocation15 + $0x58] sm:$0xff] %v3193
    %3210 = vst [vmem:[#allocation15 + $0x60] sm:$0xff] %v3194
    %3211 = vst [vmem:[#allocation15 + $0x68] sm:$0xff] %v3195
    %3212 = vst [vmem:[#allocation15 + $0x70] sm:$0xff] %v3196
    %3213 = vst [vmem:[#allocation15 + $0x78] sm:$0xff] %v3197
    // Predicated region
    $region54: #{cbam_pallas.1} parent=1 // pred_check
      _
    $region55: #{cbam_pallas.1} parent=1 // pred_check_branch
      %3215 = sbr.rel (0) target = $region57
    $region56: #{cbam_pallas.1} parent=1 // pred_region
      %s3217 = ssub.s32 2048, 2048
      %3218 = vsyncadd [#allocation6], %s3217
      %s3219 = sshll.u32 [#allocation15], 4
      %s3220 = int_to_ptr.vmem [resolvable:$true] %s3219
      %3225 = dma.vmem_to_hbm [thread:$0]  %s3220, 2048, %s7, [#allocation6], 256, 256, 16
    $region57: #{cbam_pallas.1} parent=1 // pred_fallthru
      _
    // Predicated region
    $region58: #{cbam_pallas.1} parent=1 // pred_check
      _
    $region59: #{cbam_pallas.1} parent=1 // pred_check_branch
      %3227 = sbr.rel (0) target = $region61
    $region60: #{cbam_pallas.1} parent=1 // pred_region
      %3228 = dma.done [#allocation6], 2048
    $region61: #{cbam_pallas.1} parent=1 // pred_fallthru
      _
    %3229 = vsyncpa [#allocation5], 1
    %3230 = vsyncpa [#allocation9], 1
    %3231 = vsyncpa [#allocation12], 1
    %3232 = vsyncpa [#allocation6], 1
    %3233 = vsyncpa [#allocation7], 1

</llo_original>
